<compile_context>
chip_gen: v6e
topology: v6e:2x2x1
jax: 0.10.0
libtpu: 0.0.40
codegen_flags: <defaults>
</compile_context>

<pallas_src>
import functools
import math

import jax
import jax.numpy as jnp
from jax.experimental import pallas as pl
from jax.experimental.pallas import tpu as pltpu


def _round_up(x, m):
    return -(-x // m) * m


def _vmem_limit_bytes():
    """Generation-aware scoped-VMEM request (bytes)."""
    cap = 128 * 1024 * 1024                      # v5e / v6e physical VMEM
    try:
        cap = int(pltpu.get_tpu_info().vmem_capacity_bytes)   # v7x: 64 MiB
    except Exception:
        pass
    # ~3/8 of physical, clamped: 48 MiB on v5e/v6e, 32 MiB on v7x.
    return max(32 * 1024 * 1024, min(cap * 3 // 8, 96 * 1024 * 1024))


def _pick_group_size(G, per_slice_bytes, budget_bytes, cap=2048):
    """Number of independent slices per grid step.

    Prefers a divisor of G (so no padding / extra HBM traffic).  The cap keeps
    a single step's footprint bounded (v7x: 64 MiB physical VMEM) and leaves
    >= 2 pipelined "parallel" steps once G is large (DMA/compute overlap and
    megacore sharding on 2-TC chips).
    """
    gb_max = int(max(1, min(cap, budget_bytes // max(1, per_slice_bytes))))
    if G <= gb_max:
        return G, 1, G                           # one maximal block, no padding
    best = 0
    for d in range(1, int(math.isqrt(G)) + 1):
        if G % d == 0:
            for c in (d, G // d):
                if c <= gb_max and c % 8 == 0 and c > best:
                    best = c
    if best * 4 >= gb_max:                       # divisor close enough to target
        return best, G // best, G
    # Rare fallback (e.g. prime G): pad the group axis up to a multiple of gb.
    gb = max(8, (gb_max // 8) * 8)
    n_steps = -(-G // gb)
    return gb, n_steps, gb * n_steps


# ---------------------------------------------------------------------------
# Lane-dense VPU kernel: blocks are (gb, len2*d_k), fully dense in HBM & VMEM.
# ---------------------------------------------------------------------------
def _lane_dense_kernel(q_ref, k_ref, v_ref, o_ref, *, L2, Dk, approx):
    scale = 1.0 / math.sqrt(Dk)
    f32 = jnp.float32
    # One XLU transpose per operand puts the group axis on lanes; from here on
    # every VPU/EUP op runs on fully-dense vregs (gb live lanes).
    qt = q_ref[...].astype(f32).T * scale        # (L2*Dk, gb)
    kt = k_ref[...].astype(f32).T
    vt = v_ref[...].astype(f32).T

    rows = []
    for n in range(L2):                          # unrolled: L2 <= 16 here
        qn = qt[n * Dk:(n + 1) * Dk, :]          # (Dk, gb)
        # scores vs every key position m (d-reduction over sublanes).
        s = [jnp.sum(qn * kt[m * Dk:(m + 1) * Dk, :], axis=0, keepdims=True)
             for m in range(L2)]                 # L2 x (1, gb), f32
        m_max = s[0]
        for m in range(1, L2):
            m_max = jnp.maximum(m_max, s[m])
        e = [jnp.exp(s[m] - m_max) for m in range(L2)]
        denom = e[0]
        for m in range(1, L2):
            denom = denom + e[m]
        inv = pl.reciprocal(denom, approx=True) if approx else 1.0 / denom
        ctx = e[0] * vt[0:Dk, :]
        for m in range(1, L2):
            ctx = ctx + e[m] * vt[m * Dk:(m + 1) * Dk, :]   # (Dk, gb)
        rows.append(ctx * inv)
    ctx_t = jnp.concatenate(rows, axis=0)        # (L2*Dk, gb)
    # Transpose back -> lane-dense (gb, L2*Dk) store (unmasked vst).
    o_ref[...] = ctx_t.T.astype(o_ref.dtype)


def _attention_lane_dense(Q, K, V, approx, vmem_limit):
    B, H, L1, L2, Dk = Q.shape
    G = B * H * L1
    LD = L2 * Dk
    itemsize = jnp.dtype(Q.dtype).itemsize
    # Padded-tile VMEM cost per slice: 4 operands double-buffered by the
    # pipeline + ~9 f32 working copies inside the kernel (q/k/v transposes,
    # context rows, output transpose) -- conservative.
    per_slice = _round_up(LD, 128) * (4 * 2 * itemsize + 9 * 4)
    gb, n_steps, Gp = _pick_group_size(G, per_slice, vmem_limit // 2)

    qf = Q.reshape(G, LD)                        # free reshape (contiguous)
    kf = K.reshape(G, LD)
    vf = V.reshape(G, LD)
    if Gp != G:                                  # rare fallback path only
        pad = ((0, Gp - G), (0, 0))
        qf, kf, vf = jnp.pad(qf, pad), jnp.pad(kf, pad), jnp.pad(vf, pad)

    blk = pl.BlockSpec((gb, LD), lambda i: (i, 0))
    kernel = functools.partial(_lane_dense_kernel, L2=L2, Dk=Dk, approx=approx)
    out = pl.pallas_call(
        kernel,
        out_shape=jax.ShapeDtypeStruct((Gp, LD), Q.dtype),
        grid_spec=pltpu.PrefetchScalarGridSpec(
            num_scalar_prefetch=0,
            grid=(n_steps,),
            in_specs=[blk, blk, blk],
            out_specs=blk),
        compiler_params=pltpu.CompilerParams(
            dimension_semantics=("parallel",),
            vmem_limit_bytes=vmem_limit),
    )(qf, kf, vf)
    if Gp != G:
        out = out[:G]
    return out.reshape(B, H, L1, L2, Dk)


# ---------------------------------------------------------------------------
# MXU einsum kernel: blocks are (gb, len2, d_k); used when len2/d_k are large
# enough that the MXU contraction is efficient.
# ---------------------------------------------------------------------------
def _mxu_kernel(q_ref, k_ref, v_ref, o_ref, *, approx):
    q = q_ref[...]
    k = k_ref[...]
    v = v_ref[...]
    scale = 1.0 / math.sqrt(q.shape[-1])
    scores = jnp.einsum("gnd,gmd->gnm", q, k,
                        preferred_element_type=jnp.float32) * scale
    m = jnp.max(scores, axis=-1, keepdims=True)
    e = jnp.exp(scores - m)
    l = jnp.sum(e, axis=-1, keepdims=True)
    ctx = jnp.einsum("gnm,gmd->gnd", e.astype(v.dtype), v,
                     preferred_element_type=jnp.float32)
    inv = pl.reciprocal(l, approx=True) if approx else 1.0 / l
    o_ref[...] = (ctx * inv).astype(o_ref.dtype)


def _attention_mxu(Q, K, V, approx, vmem_limit):
    B, H, L1, L2, Dk = Q.shape
    G = B * H * L1
    itemsize = jnp.dtype(Q.dtype).itemsize
    sub = 8 if itemsize >= 4 else 16             # sublane packing of the dtype
    tile_in = _round_up(L2, sub) * _round_up(Dk, 128) * itemsize
    tile_s = _round_up(L2, 8) * _round_up(L2, 128) * 4
    tile_c = _round_up(L2, 8) * _round_up(Dk, 128) * 4
    per_slice = 4 * 2 * tile_in + 2 * tile_s + 3 * tile_c   # padded-tile bytes
    gb, n_steps, Gp = _pick_group_size(G, per_slice, vmem_limit // 2, cap=1024)

    qf = Q.reshape(G, L2, Dk)
    kf = K.reshape(G, L2, Dk)
    vf = V.reshape(G, L2, Dk)
    if Gp != G:
        pad = ((0, Gp - G), (0, 0), (0, 0))
        qf, kf, vf = jnp.pad(qf, pad), jnp.pad(kf, pad), jnp.pad(vf, pad)

    blk = pl.BlockSpec((gb, L2, Dk), lambda i: (i, 0, 0))
    kernel = functools.partial(_mxu_kernel, approx=approx)
    out = pl.pallas_call(
        kernel,
        out_shape=jax.ShapeDtypeStruct((Gp, L2, Dk), Q.dtype),
        grid_spec=pltpu.PrefetchScalarGridSpec(
            num_scalar_prefetch=0,
            grid=(n_steps,),
            in_specs=[blk, blk, blk],
            out_specs=blk),
        compiler_params=pltpu.CompilerParams(
            dimension_semantics=("parallel",),
            vmem_limit_bytes=vmem_limit),
    )(qf, kf, vf)
    if Gp != G:
        out = out[:G]
    return out.reshape(B, H, L1, L2, Dk)


def scaled_dot_product_attention(Q, K, V, *, approx_reciprocal=True):
    """Pallas equivalent of ScaledDotProductAttention.forward.

    Q, K, V: [B, n_heads, len1, len2, d_k] (same shape; f32 or bf16 -- bf16
    inputs halve HBM traffic, softmax math is always f32).
    """
    assert Q.shape == K.shape == V.shape
    _, _, _, L2, Dk = Q.shape
    vmem_limit = _vmem_limit_bytes()

    if L2 <= 16 and Dk <= 64:
        try:
            return _attention_lane_dense(Q, K, V, approx_reciprocal, vmem_limit)
        except Exception:
            # TODO(synk): remove this guard once the lane-dense relayout path
            # (in-kernel 2-D transposes / sublane reductions) is verified on
            # every Mosaic version; fall back to the proven MXU path.
            pass
    return _attention_mxu(Q, K, V, approx_reciprocal, vmem_limit)


def _reference(Q, K, V):
    d_k = Q.shape[-1]
    scores = jnp.einsum("bhtnd,bhtmd->bhtnm", Q, K) / jnp.sqrt(jnp.float32(d_k))
    attn = jax.nn.softmax(scores, axis=-1)
    return jnp.einsum("bhtnm,bhtmd->bhtnd", attn, V)


if __name__ == "__main__":
    # Small shapes consistent with the module's 5-D attention:
    # batch=2, heads=2, len1=4 (outer seq), len2=8 (attended seq), d_k=16.
    B, H, L1, L2, Dk = 2, 2, 4, 8, 16
    key = jax.random.PRNGKey(0)
    kq, kk, kv = jax.random.split(key, 3)
    Q = jax.random.normal(kq, (B, H, L1, L2, Dk), dtype=jnp.float32)
    K = jax.random.normal(kk, (B, H, L1, L2, Dk), dtype=jnp.float32)
    V = jax.random.normal(kv, (B, H, L1, L2, Dk), dtype=jnp.float32)

    out = scaled_dot_product_attention(Q, K, V)
    out = jax.block_until_ready(out)

    ref = _reference(Q, K, V)
    assert out.shape == (B, H, L1, L2, Dk)
    assert jnp.allclose(out, ref, atol=2e-3, rtol=2e-3), "mismatch vs reference"

    print("KERNEL_OK")
</pallas_src>

<mosaic_0001>
module attributes {stable_mosaic.version = 11 : i64} {
  func.func @_lane_dense_kernel(%arg0: i32, %arg1: memref<16x128xf32, #tpu.memory_space<vmem>>, %arg2: memref<16x128xf32, #tpu.memory_space<vmem>>, %arg3: memref<16x128xf32, #tpu.memory_space<vmem>>, %arg4: memref<16x128xf32, #tpu.memory_space<vmem>>) attributes {dimension_semantics = [#tpu.dimension_semantics<parallel>], iteration_bounds = array<i64: 1>, scalar_prefetch = 0 : i64, scratch_operands = 0 : i64, tpu.core_type = #tpu.core_type<tc>, window_params = [{transform_indices = @transform_0, window_bounds = array<i64: 16, 128>}, {transform_indices = @transform_1, window_bounds = array<i64: 16, 128>}, {transform_indices = @transform_2, window_bounds = array<i64: 16, 128>}, {transform_indices = @transform_3, window_bounds = array<i64: 16, 128>}]} {
    %c0 = arith.constant 0 : index
    %c0_0 = arith.constant 0 : index
    %0 = vector.load %arg1[%c0, %c0_0] : memref<16x128xf32, #tpu.memory_space<vmem>>, vector<16x128xf32>
    %1 = tpu.transpose %0, [1, 0] : vector<16x128xf32> -> vector<128x16xf32>
    %cst = arith.constant 2.500000e-01 : f32
    %2 = vector.broadcast %cst : f32 to vector<128x16xf32>
    %3 = arith.mulf %1, %2 : vector<128x16xf32>
    %c0_1 = arith.constant 0 : index
    %c0_2 = arith.constant 0 : index
    %4 = vector.load %arg2[%c0_1, %c0_2] : memref<16x128xf32, #tpu.memory_space<vmem>>, vector<16x128xf32>
    %5 = tpu.transpose %4, [1, 0] : vector<16x128xf32> -> vector<128x16xf32>
    %c0_3 = arith.constant 0 : index
    %c0_4 = arith.constant 0 : index
    %6 = vector.load %arg3[%c0_3, %c0_4] : memref<16x128xf32, #tpu.memory_space<vmem>>, vector<16x128xf32>
    %7 = tpu.transpose %6, [1, 0] : vector<16x128xf32> -> vector<128x16xf32>
    %8 = vector.extract_strided_slice %3 {offsets = [0, 0], sizes = [16, 16], strides = [1, 1]} : vector<128x16xf32> to vector<16x16xf32>
    %9 = vector.extract_strided_slice %5 {offsets = [0, 0], sizes = [16, 16], strides = [1, 1]} : vector<128x16xf32> to vector<16x16xf32>
    %10 = arith.mulf %8, %9 : vector<16x16xf32>
    %cst_5 = arith.constant dense<0.000000e+00> : vector<16xf32>
    %11 = vector.multi_reduction <add>, %10, %cst_5 [0] : vector<16x16xf32> to vector<16xf32>
    %12 = vector.shape_cast %11 : vector<16xf32> to vector<1x16xf32>
    %13 = vector.extract_strided_slice %5 {offsets = [16, 0], sizes = [16, 16], strides = [1, 1]} : vector<128x16xf32> to vector<16x16xf32>
    %14 = arith.mulf %8, %13 : vector<16x16xf32>
    %cst_6 = arith.constant dense<0.000000e+00> : vector<16xf32>
    %15 = vector.multi_reduction <add>, %14, %cst_6 [0] : vector<16x16xf32> to vector<16xf32>
    %16 = vector.shape_cast %15 : vector<16xf32> to vector<1x16xf32>
    %17 = vector.extract_strided_slice %5 {offsets = [32, 0], sizes = [16, 16], strides = [1, 1]} : vector<128x16xf32> to vector<16x16xf32>
    %18 = arith.mulf %8, %17 : vector<16x16xf32>
    %cst_7 = arith.constant dense<0.000000e+00> : vector<16xf32>
    %19 = vector.multi_reduction <add>, %18, %cst_7 [0] : vector<16x16xf32> to vector<16xf32>
    %20 = vector.shape_cast %19 : vector<16xf32> to vector<1x16xf32>
    %21 = vector.extract_strided_slice %5 {offsets = [48, 0], sizes = [16, 16], strides = [1, 1]} : vector<128x16xf32> to vector<16x16xf32>
    %22 = arith.mulf %8, %21 : vector<16x16xf32>
    %cst_8 = arith.constant dense<0.000000e+00> : vector<16xf32>
    %23 = vector.multi_reduction <add>, %22, %cst_8 [0] : vector<16x16xf32> to vector<16xf32>
    %24 = vector.shape_cast %23 : vector<16xf32> to vector<1x16xf32>
    %25 = vector.extract_strided_slice %5 {offsets = [64, 0], sizes = [16, 16], strides = [1, 1]} : vector<128x16xf32> to vector<16x16xf32>
    %26 = arith.mulf %8, %25 : vector<16x16xf32>
    %cst_9 = arith.constant dense<0.000000e+00> : vector<16xf32>
    %27 = vector.multi_reduction <add>, %26, %cst_9 [0] : vector<16x16xf32> to vector<16xf32>
    %28 = vector.shape_cast %27 : vector<16xf32> to vector<1x16xf32>
    %29 = vector.extract_strided_slice %5 {offsets = [80, 0], sizes = [16, 16], strides = [1, 1]} : vector<128x16xf32> to vector<16x16xf32>
    %30 = arith.mulf %8, %29 : vector<16x16xf32>
    %cst_10 = arith.constant dense<0.000000e+00> : vector<16xf32>
    %31 = vector.multi_reduction <add>, %30, %cst_10 [0] : vector<16x16xf32> to vector<16xf32>
    %32 = vector.shape_cast %31 : vector<16xf32> to vector<1x16xf32>
    %33 = vector.extract_strided_slice %5 {offsets = [96, 0], sizes = [16, 16], strides = [1, 1]} : vector<128x16xf32> to vector<16x16xf32>
    %34 = arith.mulf %8, %33 : vector<16x16xf32>
    %cst_11 = arith.constant dense<0.000000e+00> : vector<16xf32>
    %35 = vector.multi_reduction <add>, %34, %cst_11 [0] : vector<16x16xf32> to vector<16xf32>
    %36 = vector.shape_cast %35 : vector<16xf32> to vector<1x16xf32>
    %37 = vector.extract_strided_slice %5 {offsets = [112, 0], sizes = [16, 16], strides = [1, 1]} : vector<128x16xf32> to vector<16x16xf32>
    %38 = arith.mulf %8, %37 : vector<16x16xf32>
    %cst_12 = arith.constant dense<0.000000e+00> : vector<16xf32>
    %39 = vector.multi_reduction <add>, %38, %cst_12 [0] : vector<16x16xf32> to vector<16xf32>
    %40 = vector.shape_cast %39 : vector<16xf32> to vector<1x16xf32>
    %41 = arith.maximumf %12, %16 : vector<1x16xf32>
    %42 = arith.maximumf %41, %20 : vector<1x16xf32>
    %43 = arith.maximumf %42, %24 : vector<1x16xf32>
    %44 = arith.maximumf %43, %28 : vector<1x16xf32>
    %45 = arith.maximumf %44, %32 : vector<1x16xf32>
    %46 = arith.maximumf %45, %36 : vector<1x16xf32>
    %47 = arith.maximumf %46, %40 : vector<1x16xf32>
    %48 = arith.subf %12, %47 : vector<1x16xf32>
    %49 = math.exp %48 : vector<1x16xf32>
    %50 = arith.subf %16, %47 : vector<1x16xf32>
    %51 = math.exp %50 : vector<1x16xf32>
    %52 = arith.subf %20, %47 : vector<1x16xf32>
    %53 = math.exp %52 : vector<1x16xf32>
    %54 = arith.subf %24, %47 : vector<1x16xf32>
    %55 = math.exp %54 : vector<1x16xf32>
    %56 = arith.subf %28, %47 : vector<1x16xf32>
    %57 = math.exp %56 : vector<1x16xf32>
    %58 = arith.subf %32, %47 : vector<1x16xf32>
    %59 = math.exp %58 : vector<1x16xf32>
    %60 = arith.subf %36, %47 : vector<1x16xf32>
    %61 = math.exp %60 : vector<1x16xf32>
    %62 = arith.subf %40, %47 : vector<1x16xf32>
    %63 = math.exp %62 : vector<1x16xf32>
    %64 = arith.addf %49, %51 : vector<1x16xf32>
    %65 = arith.addf %64, %53 : vector<1x16xf32>
    %66 = arith.addf %65, %55 : vector<1x16xf32>
    %67 = arith.addf %66, %57 : vector<1x16xf32>
    %68 = arith.addf %67, %59 : vector<1x16xf32>
    %69 = arith.addf %68, %61 : vector<1x16xf32>
    %70 = arith.addf %69, %63 : vector<1x16xf32>
    %71 = tpu.reciprocal %70 {approx = true} : vector<1x16xf32> -> vector<1x16xf32>
    %72 = vector.extract_strided_slice %7 {offsets = [0, 0], sizes = [16, 16], strides = [1, 1]} : vector<128x16xf32> to vector<16x16xf32>
    %73 = vector.broadcast %49 : vector<1x16xf32> to vector<16x16xf32>
    %74 = arith.mulf %73, %72 : vector<16x16xf32>
    %75 = vector.extract_strided_slice %7 {offsets = [16, 0], sizes = [16, 16], strides = [1, 1]} : vector<128x16xf32> to vector<16x16xf32>
    %76 = vector.broadcast %51 : vector<1x16xf32> to vector<16x16xf32>
    %77 = arith.mulf %76, %75 : vector<16x16xf32>
    %78 = arith.addf %74, %77 : vector<16x16xf32>
    %79 = vector.extract_strided_slice %7 {offsets = [32, 0], sizes = [16, 16], strides = [1, 1]} : vector<128x16xf32> to vector<16x16xf32>
    %80 = vector.broadcast %53 : vector<1x16xf32> to vector<16x16xf32>
    %81 = arith.mulf %80, %79 : vector<16x16xf32>
    %82 = arith.addf %78, %81 : vector<16x16xf32>
    %83 = vector.extract_strided_slice %7 {offsets = [48, 0], sizes = [16, 16], strides = [1, 1]} : vector<128x16xf32> to vector<16x16xf32>
    %84 = vector.broadcast %55 : vector<1x16xf32> to vector<16x16xf32>
    %85 = arith.mulf %84, %83 : vector<16x16xf32>
    %86 = arith.addf %82, %85 : vector<16x16xf32>
    %87 = vector.extract_strided_slice %7 {offsets = [64, 0], sizes = [16, 16], strides = [1, 1]} : vector<128x16xf32> to vector<16x16xf32>
    %88 = vector.broadcast %57 : vector<1x16xf32> to vector<16x16xf32>
    %89 = arith.mulf %88, %87 : vector<16x16xf32>
    %90 = arith.addf %86, %89 : vector<16x16xf32>
    %91 = vector.extract_strided_slice %7 {offsets = [80, 0], sizes = [16, 16], strides = [1, 1]} : vector<128x16xf32> to vector<16x16xf32>
    %92 = vector.broadcast %59 : vector<1x16xf32> to vector<16x16xf32>
    %93 = arith.mulf %92, %91 : vector<16x16xf32>
    %94 = arith.addf %90, %93 : vector<16x16xf32>
    %95 = vector.extract_strided_slice %7 {offsets = [96, 0], sizes = [16, 16], strides = [1, 1]} : vector<128x16xf32> to vector<16x16xf32>
    %96 = vector.broadcast %61 : vector<1x16xf32> to vector<16x16xf32>
    %97 = arith.mulf %96, %95 : vector<16x16xf32>
    %98 = arith.addf %94, %97 : vector<16x16xf32>
    %99 = vector.extract_strided_slice %7 {offsets = [112, 0], sizes = [16, 16], strides = [1, 1]} : vector<128x16xf32> to vector<16x16xf32>
    %100 = vector.broadcast %63 : vector<1x16xf32> to vector<16x16xf32>
    %101 = arith.mulf %100, %99 : vector<16x16xf32>
    %102 = arith.addf %98, %101 : vector<16x16xf32>
    %103 = vector.broadcast %71 : vector<1x16xf32> to vector<16x16xf32>
    %104 = arith.mulf %102, %103 : vector<16x16xf32>
    %105 = vector.extract_strided_slice %3 {offsets = [16, 0], sizes = [16, 16], strides = [1, 1]} : vector<128x16xf32> to vector<16x16xf32>
    %106 = vector.extract_strided_slice %5 {offsets = [0, 0], sizes = [16, 16], strides = [1, 1]} : vector<128x16xf32> to vector<16x16xf32>
    %107 = arith.mulf %105, %106 : vector<16x16xf32>
    %cst_13 = arith.constant dense<0.000000e+00> : vector<16xf32>
    %108 = vector.multi_reduction <add>, %107, %cst_13 [0] : vector<16x16xf32> to vector<16xf32>
    %109 = vector.shape_cast %108 : vector<16xf32> to vector<1x16xf32>
    %110 = vector.extract_strided_slice %5 {offsets = [16, 0], sizes = [16, 16], strides = [1, 1]} : vector<128x16xf32> to vector<16x16xf32>
    %111 = arith.mulf %105, %110 : vector<16x16xf32>
    %cst_14 = arith.constant dense<0.000000e+00> : vector<16xf32>
    %112 = vector.multi_reduction <add>, %111, %cst_14 [0] : vector<16x16xf32> to vector<16xf32>
    %113 = vector.shape_cast %112 : vector<16xf32> to vector<1x16xf32>
    %114 = vector.extract_strided_slice %5 {offsets = [32, 0], sizes = [16, 16], strides = [1, 1]} : vector<128x16xf32> to vector<16x16xf32>
    %115 = arith.mulf %105, %114 : vector<16x16xf32>
    %cst_15 = arith.constant dense<0.000000e+00> : vector<16xf32>
    %116 = vector.multi_reduction <add>, %115, %cst_15 [0] : vector<16x16xf32> to vector<16xf32>
    %117 = vector.shape_cast %116 : vector<16xf32> to vector<1x16xf32>
    %118 = vector.extract_strided_slice %5 {offsets = [48, 0], sizes = [16, 16], strides = [1, 1]} : vector<128x16xf32> to vector<16x16xf32>
    %119 = arith.mulf %105, %118 : vector<16x16xf32>
    %cst_16 = arith.constant dense<0.000000e+00> : vector<16xf32>
    %120 = vector.multi_reduction <add>, %119, %cst_16 [0] : vector<16x16xf32> to vector<16xf32>
    %121 = vector.shape_cast %120 : vector<16xf32> to vector<1x16xf32>
    %122 = vector.extract_strided_slice %5 {offsets = [64, 0], sizes = [16, 16], strides = [1, 1]} : vector<128x16xf32> to vector<16x16xf32>
    %123 = arith.mulf %105, %122 : vector<16x16xf32>
    %cst_17 = arith.constant dense<0.000000e+00> : vector<16xf32>
    %124 = vector.multi_reduction <add>, %123, %cst_17 [0] : vector<16x16xf32> to vector<16xf32>
    %125 = vector.shape_cast %124 : vector<16xf32> to vector<1x16xf32>
    %126 = vector.extract_strided_slice %5 {offsets = [80, 0], sizes = [16, 16], strides = [1, 1]} : vector<128x16xf32> to vector<16x16xf32>
    %127 = arith.mulf %105, %126 : vector<16x16xf32>
    %cst_18 = arith.constant dense<0.000000e+00> : vector<16xf32>
    %128 = vector.multi_reduction <add>, %127, %cst_18 [0] : vector<16x16xf32> to vector<16xf32>
    %129 = vector.shape_cast %128 : vector<16xf32> to vector<1x16xf32>
    %130 = vector.extract_strided_slice %5 {offsets = [96, 0], sizes = [16, 16], strides = [1, 1]} : vector<128x16xf32> to vector<16x16xf32>
    %131 = arith.mulf %105, %130 : vector<16x16xf32>
    %cst_19 = arith.constant dense<0.000000e+00> : vector<16xf32>
    %132 = vector.multi_reduction <add>, %131, %cst_19 [0] : vector<16x16xf32> to vector<16xf32>
    %133 = vector.shape_cast %132 : vector<16xf32> to vector<1x16xf32>
    %134 = vector.extract_strided_slice %5 {offsets = [112, 0], sizes = [16, 16], strides = [1, 1]} : vector<128x16xf32> to vector<16x16xf32>
    %135 = arith.mulf %105, %134 : vector<16x16xf32>
    %cst_20 = arith.constant dense<0.000000e+00> : vector<16xf32>
    %136 = vector.multi_reduction <add>, %135, %cst_20 [0] : vector<16x16xf32> to vector<16xf32>
    %137 = vector.shape_cast %136 : vector<16xf32> to vector<1x16xf32>
    %138 = arith.maximumf %109, %113 : vector<1x16xf32>
    %139 = arith.maximumf %138, %117 : vector<1x16xf32>
    %140 = arith.maximumf %139, %121 : vector<1x16xf32>
    %141 = arith.maximumf %140, %125 : vector<1x16xf32>
    %142 = arith.maximumf %141, %129 : vector<1x16xf32>
    %143 = arith.maximumf %142, %133 : vector<1x16xf32>
    %144 = arith.maximumf %143, %137 : vector<1x16xf32>
    %145 = arith.subf %109, %144 : vector<1x16xf32>
    %146 = math.exp %145 : vector<1x16xf32>
    %147 = arith.subf %113, %144 : vector<1x16xf32>
    %148 = math.exp %147 : vector<1x16xf32>
    %149 = arith.subf %117, %144 : vector<1x16xf32>
    %150 = math.exp %149 : vector<1x16xf32>
    %151 = arith.subf %121, %144 : vector<1x16xf32>
    %152 = math.exp %151 : vector<1x16xf32>
    %153 = arith.subf %125, %144 : vector<1x16xf32>
    %154 = math.exp %153 : vector<1x16xf32>
    %155 = arith.subf %129, %144 : vector<1x16xf32>
    %156 = math.exp %155 : vector<1x16xf32>
    %157 = arith.subf %133, %144 : vector<1x16xf32>
    %158 = math.exp %157 : vector<1x16xf32>
    %159 = arith.subf %137, %144 : vector<1x16xf32>
    %160 = math.exp %159 : vector<1x16xf32>
    %161 = arith.addf %146, %148 : vector<1x16xf32>
    %162 = arith.addf %161, %150 : vector<1x16xf32>
    %163 = arith.addf %162, %152 : vector<1x16xf32>
    %164 = arith.addf %163, %154 : vector<1x16xf32>
    %165 = arith.addf %164, %156 : vector<1x16xf32>
    %166 = arith.addf %165, %158 : vector<1x16xf32>
    %167 = arith.addf %166, %160 : vector<1x16xf32>
    %168 = tpu.reciprocal %167 {approx = true} : vector<1x16xf32> -> vector<1x16xf32>
    %169 = vector.extract_strided_slice %7 {offsets = [0, 0], sizes = [16, 16], strides = [1, 1]} : vector<128x16xf32> to vector<16x16xf32>
    %170 = vector.broadcast %146 : vector<1x16xf32> to vector<16x16xf32>
    %171 = arith.mulf %170, %169 : vector<16x16xf32>
    %172 = vector.extract_strided_slice %7 {offsets = [16, 0], sizes = [16, 16], strides = [1, 1]} : vector<128x16xf32> to vector<16x16xf32>
    %173 = vector.broadcast %148 : vector<1x16xf32> to vector<16x16xf32>
    %174 = arith.mulf %173, %172 : vector<16x16xf32>
    %175 = arith.addf %171, %174 : vector<16x16xf32>
    %176 = vector.extract_strided_slice %7 {offsets = [32, 0], sizes = [16, 16], strides = [1, 1]} : vector<128x16xf32> to vector<16x16xf32>
    %177 = vector.broadcast %150 : vector<1x16xf32> to vector<16x16xf32>
    %178 = arith.mulf %177, %176 : vector<16x16xf32>
    %179 = arith.addf %175, %178 : vector<16x16xf32>
    %180 = vector.extract_strided_slice %7 {offsets = [48, 0], sizes = [16, 16], strides = [1, 1]} : vector<128x16xf32> to vector<16x16xf32>
    %181 = vector.broadcast %152 : vector<1x16xf32> to vector<16x16xf32>
    %182 = arith.mulf %181, %180 : vector<16x16xf32>
    %183 = arith.addf %179, %182 : vector<16x16xf32>
    %184 = vector.extract_strided_slice %7 {offsets = [64, 0], sizes = [16, 16], strides = [1, 1]} : vector<128x16xf32> to vector<16x16xf32>
    %185 = vector.broadcast %154 : vector<1x16xf32> to vector<16x16xf32>
    %186 = arith.mulf %185, %184 : vector<16x16xf32>
    %187 = arith.addf %183, %186 : vector<16x16xf32>
    %188 = vector.extract_strided_slice %7 {offsets = [80, 0], sizes = [16, 16], strides = [1, 1]} : vector<128x16xf32> to vector<16x16xf32>
    %189 = vector.broadcast %156 : vector<1x16xf32> to vector<16x16xf32>
    %190 = arith.mulf %189, %188 : vector<16x16xf32>
    %191 = arith.addf %187, %190 : vector<16x16xf32>
    %192 = vector.extract_strided_slice %7 {offsets = [96, 0], sizes = [16, 16], strides = [1, 1]} : vector<128x16xf32> to vector<16x16xf32>
    %193 = vector.broadcast %158 : vector<1x16xf32> to vector<16x16xf32>
    %194 = arith.mulf %193, %192 : vector<16x16xf32>
    %195 = arith.addf %191, %194 : vector<16x16xf32>
    %196 = vector.extract_strided_slice %7 {offsets = [112, 0], sizes = [16, 16], strides = [1, 1]} : vector<128x16xf32> to vector<16x16xf32>
    %197 = vector.broadcast %160 : vector<1x16xf32> to vector<16x16xf32>
    %198 = arith.mulf %197, %196 : vector<16x16xf32>
    %199 = arith.addf %195, %198 : vector<16x16xf32>
    %200 = vector.broadcast %168 : vector<1x16xf32> to vector<16x16xf32>
    %201 = arith.mulf %199, %200 : vector<16x16xf32>
    %202 = vector.extract_strided_slice %3 {offsets = [32, 0], sizes = [16, 16], strides = [1, 1]} : vector<128x16xf32> to vector<16x16xf32>
    %203 = vector.extract_strided_slice %5 {offsets = [0, 0], sizes = [16, 16], strides = [1, 1]} : vector<128x16xf32> to vector<16x16xf32>
    %204 = arith.mulf %202, %203 : vector<16x16xf32>
    %cst_21 = arith.constant dense<0.000000e+00> : vector<16xf32>
    %205 = vector.multi_reduction <add>, %204, %cst_21 [0] : vector<16x16xf32> to vector<16xf32>
    %206 = vector.shape_cast %205 : vector<16xf32> to vector<1x16xf32>
    %207 = vector.extract_strided_slice %5 {offsets = [16, 0], sizes = [16, 16], strides = [1, 1]} : vector<128x16xf32> to vector<16x16xf32>
    %208 = arith.mulf %202, %207 : vector<16x16xf32>
    %cst_22 = arith.constant dense<0.000000e+00> : vector<16xf32>
    %209 = vector.multi_reduction <add>, %208, %cst_22 [0] : vector<16x16xf32> to vector<16xf32>
    %210 = vector.shape_cast %209 : vector<16xf32> to vector<1x16xf32>
    %211 = vector.extract_strided_slice %5 {offsets = [32, 0], sizes = [16, 16], strides = [1, 1]} : vector<128x16xf32> to vector<16x16xf32>
    %212 = arith.mulf %202, %211 : vector<16x16xf32>
    %cst_23 = arith.constant dense<0.000000e+00> : vector<16xf32>
    %213 = vector.multi_reduction <add>, %212, %cst_23 [0] : vector<16x16xf32> to vector<16xf32>
    %214 = vector.shape_cast %213 : vector<16xf32> to vector<1x16xf32>
    %215 = vector.extract_strided_slice %5 {offsets = [48, 0], sizes = [16, 16], strides = [1, 1]} : vector<128x16xf32> to vector<16x16xf32>
    %216 = arith.mulf %202, %215 : vector<16x16xf32>
    %cst_24 = arith.constant dense<0.000000e+00> : vector<16xf32>
    %217 = vector.multi_reduction <add>, %216, %cst_24 [0] : vector<16x16xf32> to vector<16xf32>
    %218 = vector.shape_cast %217 : vector<16xf32> to vector<1x16xf32>
    %219 = vector.extract_strided_slice %5 {offsets = [64, 0], sizes = [16, 16], strides = [1, 1]} : vector<128x16xf32> to vector<16x16xf32>
    %220 = arith.mulf %202, %219 : vector<16x16xf32>
    %cst_25 = arith.constant dense<0.000000e+00> : vector<16xf32>
    %221 = vector.multi_reduction <add>, %220, %cst_25 [0] : vector<16x16xf32> to vector<16xf32>
    %222 = vector.shape_cast %221 : vector<16xf32> to vector<1x16xf32>
    %223 = vector.extract_strided_slice %5 {offsets = [80, 0], sizes = [16, 16], strides = [1, 1]} : vector<128x16xf32> to vector<16x16xf32>
    %224 = arith.mulf %202, %223 : vector<16x16xf32>
    %cst_26 = arith.constant dense<0.000000e+00> : vector<16xf32>
    %225 = vector.multi_reduction <add>, %224, %cst_26 [0] : vector<16x16xf32> to vector<16xf32>
    %226 = vector.shape_cast %225 : vector<16xf32> to vector<1x16xf32>
    %227 = vector.extract_strided_slice %5 {offsets = [96, 0], sizes = [16, 16], strides = [1, 1]} : vector<128x16xf32> to vector<16x16xf32>
    %228 = arith.mulf %202, %227 : vector<16x16xf32>
    %cst_27 = arith.constant dense<0.000000e+00> : vector<16xf32>
    %229 = vector.multi_reduction <add>, %228, %cst_27 [0] : vector<16x16xf32> to vector<16xf32>
    %230 = vector.shape_cast %229 : vector<16xf32> to vector<1x16xf32>
    %231 = vector.extract_strided_slice %5 {offsets = [112, 0], sizes = [16, 16], strides = [1, 1]} : vector<128x16xf32> to vector<16x16xf32>
    %232 = arith.mulf %202, %231 : vector<16x16xf32>
    %cst_28 = arith.constant dense<0.000000e+00> : vector<16xf32>
    %233 = vector.multi_reduction <add>, %232, %cst_28 [0] : vector<16x16xf32> to vector<16xf32>
    %234 = vector.shape_cast %233 : vector<16xf32> to vector<1x16xf32>
    %235 = arith.maximumf %206, %210 : vector<1x16xf32>
    %236 = arith.maximumf %235, %214 : vector<1x16xf32>
    %237 = arith.maximumf %236, %218 : vector<1x16xf32>
    %238 = arith.maximumf %237, %222 : vector<1x16xf32>
    %239 = arith.maximumf %238, %226 : vector<1x16xf32>
    %240 = arith.maximumf %239, %230 : vector<1x16xf32>
    %241 = arith.maximumf %240, %234 : vector<1x16xf32>
    %242 = arith.subf %206, %241 : vector<1x16xf32>
    %243 = math.exp %242 : vector<1x16xf32>
    %244 = arith.subf %210, %241 : vector<1x16xf32>
    %245 = math.exp %244 : vector<1x16xf32>
    %246 = arith.subf %214, %241 : vector<1x16xf32>
    %247 = math.exp %246 : vector<1x16xf32>
    %248 = arith.subf %218, %241 : vector<1x16xf32>
    %249 = math.exp %248 : vector<1x16xf32>
    %250 = arith.subf %222, %241 : vector<1x16xf32>
    %251 = math.exp %250 : vector<1x16xf32>
    %252 = arith.subf %226, %241 : vector<1x16xf32>
    %253 = math.exp %252 : vector<1x16xf32>
    %254 = arith.subf %230, %241 : vector<1x16xf32>
    %255 = math.exp %254 : vector<1x16xf32>
    %256 = arith.subf %234, %241 : vector<1x16xf32>
    %257 = math.exp %256 : vector<1x16xf32>
    %258 = arith.addf %243, %245 : vector<1x16xf32>
    %259 = arith.addf %258, %247 : vector<1x16xf32>
    %260 = arith.addf %259, %249 : vector<1x16xf32>
    %261 = arith.addf %260, %251 : vector<1x16xf32>
    %262 = arith.addf %261, %253 : vector<1x16xf32>
    %263 = arith.addf %262, %255 : vector<1x16xf32>
    %264 = arith.addf %263, %257 : vector<1x16xf32>
    %265 = tpu.reciprocal %264 {approx = true} : vector<1x16xf32> -> vector<1x16xf32>
    %266 = vector.extract_strided_slice %7 {offsets = [0, 0], sizes = [16, 16], strides = [1, 1]} : vector<128x16xf32> to vector<16x16xf32>
    %267 = vector.broadcast %243 : vector<1x16xf32> to vector<16x16xf32>
    %268 = arith.mulf %267, %266 : vector<16x16xf32>
    %269 = vector.extract_strided_slice %7 {offsets = [16, 0], sizes = [16, 16], strides = [1, 1]} : vector<128x16xf32> to vector<16x16xf32>
    %270 = vector.broadcast %245 : vector<1x16xf32> to vector<16x16xf32>
    %271 = arith.mulf %270, %269 : vector<16x16xf32>
    %272 = arith.addf %268, %271 : vector<16x16xf32>
    %273 = vector.extract_strided_slice %7 {offsets = [32, 0], sizes = [16, 16], strides = [1, 1]} : vector<128x16xf32> to vector<16x16xf32>
    %274 = vector.broadcast %247 : vector<1x16xf32> to vector<16x16xf32>
    %275 = arith.mulf %274, %273 : vector<16x16xf32>
    %276 = arith.addf %272, %275 : vector<16x16xf32>
    %277 = vector.extract_strided_slice %7 {offsets = [48, 0], sizes = [16, 16], strides = [1, 1]} : vector<128x16xf32> to vector<16x16xf32>
    %278 = vector.broadcast %249 : vector<1x16xf32> to vector<16x16xf32>
    %279 = arith.mulf %278, %277 : vector<16x16xf32>
    %280 = arith.addf %276, %279 : vector<16x16xf32>
    %281 = vector.extract_strided_slice %7 {offsets = [64, 0], sizes = [16, 16], strides = [1, 1]} : vector<128x16xf32> to vector<16x16xf32>
    %282 = vector.broadcast %251 : vector<1x16xf32> to vector<16x16xf32>
    %283 = arith.mulf %282, %281 : vector<16x16xf32>
    %284 = arith.addf %280, %283 : vector<16x16xf32>
    %285 = vector.extract_strided_slice %7 {offsets = [80, 0], sizes = [16, 16], strides = [1, 1]} : vector<128x16xf32> to vector<16x16xf32>
    %286 = vector.broadcast %253 : vector<1x16xf32> to vector<16x16xf32>
    %287 = arith.mulf %286, %285 : vector<16x16xf32>
    %288 = arith.addf %284, %287 : vector<16x16xf32>
    %289 = vector.extract_strided_slice %7 {offsets = [96, 0], sizes = [16, 16], strides = [1, 1]} : vector<128x16xf32> to vector<16x16xf32>
    %290 = vector.broadcast %255 : vector<1x16xf32> to vector<16x16xf32>
    %291 = arith.mulf %290, %289 : vector<16x16xf32>
    %292 = arith.addf %288, %291 : vector<16x16xf32>
    %293 = vector.extract_strided_slice %7 {offsets = [112, 0], sizes = [16, 16], strides = [1, 1]} : vector<128x16xf32> to vector<16x16xf32>
    %294 = vector.broadcast %257 : vector<1x16xf32> to vector<16x16xf32>
    %295 = arith.mulf %294, %293 : vector<16x16xf32>
    %296 = arith.addf %292, %295 : vector<16x16xf32>
    %297 = vector.broadcast %265 : vector<1x16xf32> to vector<16x16xf32>
    %298 = arith.mulf %296, %297 : vector<16x16xf32>
    %299 = vector.extract_strided_slice %3 {offsets = [48, 0], sizes = [16, 16], strides = [1, 1]} : vector<128x16xf32> to vector<16x16xf32>
    %300 = vector.extract_strided_slice %5 {offsets = [0, 0], sizes = [16, 16], strides = [1, 1]} : vector<128x16xf32> to vector<16x16xf32>
    %301 = arith.mulf %299, %300 : vector<16x16xf32>
    %cst_29 = arith.constant dense<0.000000e+00> : vector<16xf32>
    %302 = vector.multi_reduction <add>, %301, %cst_29 [0] : vector<16x16xf32> to vector<16xf32>
    %303 = vector.shape_cast %302 : vector<16xf32> to vector<1x16xf32>
    %304 = vector.extract_strided_slice %5 {offsets = [16, 0], sizes = [16, 16], strides = [1, 1]} : vector<128x16xf32> to vector<16x16xf32>
    %305 = arith.mulf %299, %304 : vector<16x16xf32>
    %cst_30 = arith.constant dense<0.000000e+00> : vector<16xf32>
    %306 = vector.multi_reduction <add>, %305, %cst_30 [0] : vector<16x16xf32> to vector<16xf32>
    %307 = vector.shape_cast %306 : vector<16xf32> to vector<1x16xf32>
    %308 = vector.extract_strided_slice %5 {offsets = [32, 0], sizes = [16, 16], strides = [1, 1]} : vector<128x16xf32> to vector<16x16xf32>
    %309 = arith.mulf %299, %308 : vector<16x16xf32>
    %cst_31 = arith.constant dense<0.000000e+00> : vector<16xf32>
    %310 = vector.multi_reduction <add>, %309, %cst_31 [0] : vector<16x16xf32> to vector<16xf32>
    %311 = vector.shape_cast %310 : vector<16xf32> to vector<1x16xf32>
    %312 = vector.extract_strided_slice %5 {offsets = [48, 0], sizes = [16, 16], strides = [1, 1]} : vector<128x16xf32> to vector<16x16xf32>
    %313 = arith.mulf %299, %312 : vector<16x16xf32>
    %cst_32 = arith.constant dense<0.000000e+00> : vector<16xf32>
    %314 = vector.multi_reduction <add>, %313, %cst_32 [0] : vector<16x16xf32> to vector<16xf32>
    %315 = vector.shape_cast %314 : vector<16xf32> to vector<1x16xf32>
    %316 = vector.extract_strided_slice %5 {offsets = [64, 0], sizes = [16, 16], strides = [1, 1]} : vector<128x16xf32> to vector<16x16xf32>
    %317 = arith.mulf %299, %316 : vector<16x16xf32>
    %cst_33 = arith.constant dense<0.000000e+00> : vector<16xf32>
    %318 = vector.multi_reduction <add>, %317, %cst_33 [0] : vector<16x16xf32> to vector<16xf32>
    %319 = vector.shape_cast %318 : vector<16xf32> to vector<1x16xf32>
    %320 = vector.extract_strided_slice %5 {offsets = [80, 0], sizes = [16, 16], strides = [1, 1]} : vector<128x16xf32> to vector<16x16xf32>
    %321 = arith.mulf %299, %320 : vector<16x16xf32>
    %cst_34 = arith.constant dense<0.000000e+00> : vector<16xf32>
    %322 = vector.multi_reduction <add>, %321, %cst_34 [0] : vector<16x16xf32> to vector<16xf32>
    %323 = vector.shape_cast %322 : vector<16xf32> to vector<1x16xf32>
    %324 = vector.extract_strided_slice %5 {offsets = [96, 0], sizes = [16, 16], strides = [1, 1]} : vector<128x16xf32> to vector<16x16xf32>
    %325 = arith.mulf %299, %324 : vector<16x16xf32>
    %cst_35 = arith.constant dense<0.000000e+00> : vector<16xf32>
    %326 = vector.multi_reduction <add>, %325, %cst_35 [0] : vector<16x16xf32> to vector<16xf32>
    %327 = vector.shape_cast %326 : vector<16xf32> to vector<1x16xf32>
    %328 = vector.extract_strided_slice %5 {offsets = [112, 0], sizes = [16, 16], strides = [1, 1]} : vector<128x16xf32> to vector<16x16xf32>
    %329 = arith.mulf %299, %328 : vector<16x16xf32>
    %cst_36 = arith.constant dense<0.000000e+00> : vector<16xf32>
    %330 = vector.multi_reduction <add>, %329, %cst_36 [0] : vector<16x16xf32> to vector<16xf32>
    %331 = vector.shape_cast %330 : vector<16xf32> to vector<1x16xf32>
    %332 = arith.maximumf %303, %307 : vector<1x16xf32>
    %333 = arith.maximumf %332, %311 : vector<1x16xf32>
    %334 = arith.maximumf %333, %315 : vector<1x16xf32>
    %335 = arith.maximumf %334, %319 : vector<1x16xf32>
    %336 = arith.maximumf %335, %323 : vector<1x16xf32>
    %337 = arith.maximumf %336, %327 : vector<1x16xf32>
    %338 = arith.maximumf %337, %331 : vector<1x16xf32>
    %339 = arith.subf %303, %338 : vector<1x16xf32>
    %340 = math.exp %339 : vector<1x16xf32>
    %341 = arith.subf %307, %338 : vector<1x16xf32>
    %342 = math.exp %341 : vector<1x16xf32>
    %343 = arith.subf %311, %338 : vector<1x16xf32>
    %344 = math.exp %343 : vector<1x16xf32>
    %345 = arith.subf %315, %338 : vector<1x16xf32>
    %346 = math.exp %345 : vector<1x16xf32>
    %347 = arith.subf %319, %338 : vector<1x16xf32>
    %348 = math.exp %347 : vector<1x16xf32>
    %349 = arith.subf %323, %338 : vector<1x16xf32>
    %350 = math.exp %349 : vector<1x16xf32>
    %351 = arith.subf %327, %338 : vector<1x16xf32>
    %352 = math.exp %351 : vector<1x16xf32>
    %353 = arith.subf %331, %338 : vector<1x16xf32>
    %354 = math.exp %353 : vector<1x16xf32>
    %355 = arith.addf %340, %342 : vector<1x16xf32>
    %356 = arith.addf %355, %344 : vector<1x16xf32>
    %357 = arith.addf %356, %346 : vector<1x16xf32>
    %358 = arith.addf %357, %348 : vector<1x16xf32>
    %359 = arith.addf %358, %350 : vector<1x16xf32>
    %360 = arith.addf %359, %352 : vector<1x16xf32>
    %361 = arith.addf %360, %354 : vector<1x16xf32>
    %362 = tpu.reciprocal %361 {approx = true} : vector<1x16xf32> -> vector<1x16xf32>
    %363 = vector.extract_strided_slice %7 {offsets = [0, 0], sizes = [16, 16], strides = [1, 1]} : vector<128x16xf32> to vector<16x16xf32>
    %364 = vector.broadcast %340 : vector<1x16xf32> to vector<16x16xf32>
    %365 = arith.mulf %364, %363 : vector<16x16xf32>
    %366 = vector.extract_strided_slice %7 {offsets = [16, 0], sizes = [16, 16], strides = [1, 1]} : vector<128x16xf32> to vector<16x16xf32>
    %367 = vector.broadcast %342 : vector<1x16xf32> to vector<16x16xf32>
    %368 = arith.mulf %367, %366 : vector<16x16xf32>
    %369 = arith.addf %365, %368 : vector<16x16xf32>
    %370 = vector.extract_strided_slice %7 {offsets = [32, 0], sizes = [16, 16], strides = [1, 1]} : vector<128x16xf32> to vector<16x16xf32>
    %371 = vector.broadcast %344 : vector<1x16xf32> to vector<16x16xf32>
    %372 = arith.mulf %371, %370 : vector<16x16xf32>
    %373 = arith.addf %369, %372 : vector<16x16xf32>
    %374 = vector.extract_strided_slice %7 {offsets = [48, 0], sizes = [16, 16], strides = [1, 1]} : vector<128x16xf32> to vector<16x16xf32>
    %375 = vector.broadcast %346 : vector<1x16xf32> to vector<16x16xf32>
    %376 = arith.mulf %375, %374 : vector<16x16xf32>
    %377 = arith.addf %373, %376 : vector<16x16xf32>
    %378 = vector.extract_strided_slice %7 {offsets = [64, 0], sizes = [16, 16], strides = [1, 1]} : vector<128x16xf32> to vector<16x16xf32>
    %379 = vector.broadcast %348 : vector<1x16xf32> to vector<16x16xf32>
    %380 = arith.mulf %379, %378 : vector<16x16xf32>
    %381 = arith.addf %377, %380 : vector<16x16xf32>
    %382 = vector.extract_strided_slice %7 {offsets = [80, 0], sizes = [16, 16], strides = [1, 1]} : vector<128x16xf32> to vector<16x16xf32>
    %383 = vector.broadcast %350 : vector<1x16xf32> to vector<16x16xf32>
    %384 = arith.mulf %383, %382 : vector<16x16xf32>
    %385 = arith.addf %381, %384 : vector<16x16xf32>
    %386 = vector.extract_strided_slice %7 {offsets = [96, 0], sizes = [16, 16], strides = [1, 1]} : vector<128x16xf32> to vector<16x16xf32>
    %387 = vector.broadcast %352 : vector<1x16xf32> to vector<16x16xf32>
    %388 = arith.mulf %387, %386 : vector<16x16xf32>
    %389 = arith.addf %385, %388 : vector<16x16xf32>
    %390 = vector.extract_strided_slice %7 {offsets = [112, 0], sizes = [16, 16], strides = [1, 1]} : vector<128x16xf32> to vector<16x16xf32>
    %391 = vector.broadcast %354 : vector<1x16xf32> to vector<16x16xf32>
    %392 = arith.mulf %391, %390 : vector<16x16xf32>
    %393 = arith.addf %389, %392 : vector<16x16xf32>
    %394 = vector.broadcast %362 : vector<1x16xf32> to vector<16x16xf32>
    %395 = arith.mulf %393, %394 : vector<16x16xf32>
    %396 = vector.extract_strided_slice %3 {offsets = [64, 0], sizes = [16, 16], strides = [1, 1]} : vector<128x16xf32> to vector<16x16xf32>
    %397 = vector.extract_strided_slice %5 {offsets = [0, 0], sizes = [16, 16], strides = [1, 1]} : vector<128x16xf32> to vector<16x16xf32>
    %398 = arith.mulf %396, %397 : vector<16x16xf32>
    %cst_37 = arith.constant dense<0.000000e+00> : vector<16xf32>
    %399 = vector.multi_reduction <add>, %398, %cst_37 [0] : vector<16x16xf32> to vector<16xf32>
    %400 = vector.shape_cast %399 : vector<16xf32> to vector<1x16xf32>
    %401 = vector.extract_strided_slice %5 {offsets = [16, 0], sizes = [16, 16], strides = [1, 1]} : vector<128x16xf32> to vector<16x16xf32>
    %402 = arith.mulf %396, %401 : vector<16x16xf32>
    %cst_38 = arith.constant dense<0.000000e+00> : vector<16xf32>
    %403 = vector.multi_reduction <add>, %402, %cst_38 [0] : vector<16x16xf32> to vector<16xf32>
    %404 = vector.shape_cast %403 : vector<16xf32> to vector<1x16xf32>
    %405 = vector.extract_strided_slice %5 {offsets = [32, 0], sizes = [16, 16], strides = [1, 1]} : vector<128x16xf32> to vector<16x16xf32>
    %406 = arith.mulf %396, %405 : vector<16x16xf32>
    %cst_39 = arith.constant dense<0.000000e+00> : vector<16xf32>
    %407 = vector.multi_reduction <add>, %406, %cst_39 [0] : vector<16x16xf32> to vector<16xf32>
    %408 = vector.shape_cast %407 : vector<16xf32> to vector<1x16xf32>
    %409 = vector.extract_strided_slice %5 {offsets = [48, 0], sizes = [16, 16], strides = [1, 1]} : vector<128x16xf32> to vector<16x16xf32>
    %410 = arith.mulf %396, %409 : vector<16x16xf32>
    %cst_40 = arith.constant dense<0.000000e+00> : vector<16xf32>
    %411 = vector.multi_reduction <add>, %410, %cst_40 [0] : vector<16x16xf32> to vector<16xf32>
    %412 = vector.shape_cast %411 : vector<16xf32> to vector<1x16xf32>
    %413 = vector.extract_strided_slice %5 {offsets = [64, 0], sizes = [16, 16], strides = [1, 1]} : vector<128x16xf32> to vector<16x16xf32>
    %414 = arith.mulf %396, %413 : vector<16x16xf32>
    %cst_41 = arith.constant dense<0.000000e+00> : vector<16xf32>
    %415 = vector.multi_reduction <add>, %414, %cst_41 [0] : vector<16x16xf32> to vector<16xf32>
    %416 = vector.shape_cast %415 : vector<16xf32> to vector<1x16xf32>
    %417 = vector.extract_strided_slice %5 {offsets = [80, 0], sizes = [16, 16], strides = [1, 1]} : vector<128x16xf32> to vector<16x16xf32>
    %418 = arith.mulf %396, %417 : vector<16x16xf32>
    %cst_42 = arith.constant dense<0.000000e+00> : vector<16xf32>
    %419 = vector.multi_reduction <add>, %418, %cst_42 [0] : vector<16x16xf32> to vector<16xf32>
    %420 = vector.shape_cast %419 : vector<16xf32> to vector<1x16xf32>
    %421 = vector.extract_strided_slice %5 {offsets = [96, 0], sizes = [16, 16], strides = [1, 1]} : vector<128x16xf32> to vector<16x16xf32>
    %422 = arith.mulf %396, %421 : vector<16x16xf32>
    %cst_43 = arith.constant dense<0.000000e+00> : vector<16xf32>
    %423 = vector.multi_reduction <add>, %422, %cst_43 [0] : vector<16x16xf32> to vector<16xf32>
    %424 = vector.shape_cast %423 : vector<16xf32> to vector<1x16xf32>
    %425 = vector.extract_strided_slice %5 {offsets = [112, 0], sizes = [16, 16], strides = [1, 1]} : vector<128x16xf32> to vector<16x16xf32>
    %426 = arith.mulf %396, %425 : vector<16x16xf32>
    %cst_44 = arith.constant dense<0.000000e+00> : vector<16xf32>
    %427 = vector.multi_reduction <add>, %426, %cst_44 [0] : vector<16x16xf32> to vector<16xf32>
    %428 = vector.shape_cast %427 : vector<16xf32> to vector<1x16xf32>
    %429 = arith.maximumf %400, %404 : vector<1x16xf32>
    %430 = arith.maximumf %429, %408 : vector<1x16xf32>
    %431 = arith.maximumf %430, %412 : vector<1x16xf32>
    %432 = arith.maximumf %431, %416 : vector<1x16xf32>
    %433 = arith.maximumf %432, %420 : vector<1x16xf32>
    %434 = arith.maximumf %433, %424 : vector<1x16xf32>
    %435 = arith.maximumf %434, %428 : vector<1x16xf32>
    %436 = arith.subf %400, %435 : vector<1x16xf32>
    %437 = math.exp %436 : vector<1x16xf32>
    %438 = arith.subf %404, %435 : vector<1x16xf32>
    %439 = math.exp %438 : vector<1x16xf32>
    %440 = arith.subf %408, %435 : vector<1x16xf32>
    %441 = math.exp %440 : vector<1x16xf32>
    %442 = arith.subf %412, %435 : vector<1x16xf32>
    %443 = math.exp %442 : vector<1x16xf32>
    %444 = arith.subf %416, %435 : vector<1x16xf32>
    %445 = math.exp %444 : vector<1x16xf32>
    %446 = arith.subf %420, %435 : vector<1x16xf32>
    %447 = math.exp %446 : vector<1x16xf32>
    %448 = arith.subf %424, %435 : vector<1x16xf32>
    %449 = math.exp %448 : vector<1x16xf32>
    %450 = arith.subf %428, %435 : vector<1x16xf32>
    %451 = math.exp %450 : vector<1x16xf32>
    %452 = arith.addf %437, %439 : vector<1x16xf32>
    %453 = arith.addf %452, %441 : vector<1x16xf32>
    %454 = arith.addf %453, %443 : vector<1x16xf32>
    %455 = arith.addf %454, %445 : vector<1x16xf32>
    %456 = arith.addf %455, %447 : vector<1x16xf32>
    %457 = arith.addf %456, %449 : vector<1x16xf32>
    %458 = arith.addf %457, %451 : vector<1x16xf32>
    %459 = tpu.reciprocal %458 {approx = true} : vector<1x16xf32> -> vector<1x16xf32>
    %460 = vector.extract_strided_slice %7 {offsets = [0, 0], sizes = [16, 16], strides = [1, 1]} : vector<128x16xf32> to vector<16x16xf32>
    %461 = vector.broadcast %437 : vector<1x16xf32> to vector<16x16xf32>
    %462 = arith.mulf %461, %460 : vector<16x16xf32>
    %463 = vector.extract_strided_slice %7 {offsets = [16, 0], sizes = [16, 16], strides = [1, 1]} : vector<128x16xf32> to vector<16x16xf32>
    %464 = vector.broadcast %439 : vector<1x16xf32> to vector<16x16xf32>
    %465 = arith.mulf %464, %463 : vector<16x16xf32>
    %466 = arith.addf %462, %465 : vector<16x16xf32>
    %467 = vector.extract_strided_slice %7 {offsets = [32, 0], sizes = [16, 16], strides = [1, 1]} : vector<128x16xf32> to vector<16x16xf32>
    %468 = vector.broadcast %441 : vector<1x16xf32> to vector<16x16xf32>
    %469 = arith.mulf %468, %467 : vector<16x16xf32>
    %470 = arith.addf %466, %469 : vector<16x16xf32>
    %471 = vector.extract_strided_slice %7 {offsets = [48, 0], sizes = [16, 16], strides = [1, 1]} : vector<128x16xf32> to vector<16x16xf32>
    %472 = vector.broadcast %443 : vector<1x16xf32> to vector<16x16xf32>
    %473 = arith.mulf %472, %471 : vector<16x16xf32>
    %474 = arith.addf %470, %473 : vector<16x16xf32>
    %475 = vector.extract_strided_slice %7 {offsets = [64, 0], sizes = [16, 16], strides = [1, 1]} : vector<128x16xf32> to vector<16x16xf32>
    %476 = vector.broadcast %445 : vector<1x16xf32> to vector<16x16xf32>
    %477 = arith.mulf %476, %475 : vector<16x16xf32>
    %478 = arith.addf %474, %477 : vector<16x16xf32>
    %479 = vector.extract_strided_slice %7 {offsets = [80, 0], sizes = [16, 16], strides = [1, 1]} : vector<128x16xf32> to vector<16x16xf32>
    %480 = vector.broadcast %447 : vector<1x16xf32> to vector<16x16xf32>
    %481 = arith.mulf %480, %479 : vector<16x16xf32>
    %482 = arith.addf %478, %481 : vector<16x16xf32>
    %483 = vector.extract_strided_slice %7 {offsets = [96, 0], sizes = [16, 16], strides = [1, 1]} : vector<128x16xf32> to vector<16x16xf32>
    %484 = vector.broadcast %449 : vector<1x16xf32> to vector<16x16xf32>
    %485 = arith.mulf %484, %483 : vector<16x16xf32>
    %486 = arith.addf %482, %485 : vector<16x16xf32>
    %487 = vector.extract_strided_slice %7 {offsets = [112, 0], sizes = [16, 16], strides = [1, 1]} : vector<128x16xf32> to vector<16x16xf32>
    %488 = vector.broadcast %451 : vector<1x16xf32> to vector<16x16xf32>
    %489 = arith.mulf %488, %487 : vector<16x16xf32>
    %490 = arith.addf %486, %489 : vector<16x16xf32>
    %491 = vector.broadcast %459 : vector<1x16xf32> to vector<16x16xf32>
    %492 = arith.mulf %490, %491 : vector<16x16xf32>
    %493 = vector.extract_strided_slice %3 {offsets = [80, 0], sizes = [16, 16], strides = [1, 1]} : vector<128x16xf32> to vector<16x16xf32>
    %494 = vector.extract_strided_slice %5 {offsets = [0, 0], sizes = [16, 16], strides = [1, 1]} : vector<128x16xf32> to vector<16x16xf32>
    %495 = arith.mulf %493, %494 : vector<16x16xf32>
    %cst_45 = arith.constant dense<0.000000e+00> : vector<16xf32>
    %496 = vector.multi_reduction <add>, %495, %cst_45 [0] : vector<16x16xf32> to vector<16xf32>
    %497 = vector.shape_cast %496 : vector<16xf32> to vector<1x16xf32>
    %498 = vector.extract_strided_slice %5 {offsets = [16, 0], sizes = [16, 16], strides = [1, 1]} : vector<128x16xf32> to vector<16x16xf32>
    %499 = arith.mulf %493, %498 : vector<16x16xf32>
    %cst_46 = arith.constant dense<0.000000e+00> : vector<16xf32>
    %500 = vector.multi_reduction <add>, %499, %cst_46 [0] : vector<16x16xf32> to vector<16xf32>
    %501 = vector.shape_cast %500 : vector<16xf32> to vector<1x16xf32>
    %502 = vector.extract_strided_slice %5 {offsets = [32, 0], sizes = [16, 16], strides = [1, 1]} : vector<128x16xf32> to vector<16x16xf32>
    %503 = arith.mulf %493, %502 : vector<16x16xf32>
    %cst_47 = arith.constant dense<0.000000e+00> : vector<16xf32>
    %504 = vector.multi_reduction <add>, %503, %cst_47 [0] : vector<16x16xf32> to vector<16xf32>
    %505 = vector.shape_cast %504 : vector<16xf32> to vector<1x16xf32>
    %506 = vector.extract_strided_slice %5 {offsets = [48, 0], sizes = [16, 16], strides = [1, 1]} : vector<128x16xf32> to vector<16x16xf32>
    %507 = arith.mulf %493, %506 : vector<16x16xf32>
    %cst_48 = arith.constant dense<0.000000e+00> : vector<16xf32>
    %508 = vector.multi_reduction <add>, %507, %cst_48 [0] : vector<16x16xf32> to vector<16xf32>
    %509 = vector.shape_cast %508 : vector<16xf32> to vector<1x16xf32>
    %510 = vector.extract_strided_slice %5 {offsets = [64, 0], sizes = [16, 16], strides = [1, 1]} : vector<128x16xf32> to vector<16x16xf32>
    %511 = arith.mulf %493, %510 : vector<16x16xf32>
    %cst_49 = arith.constant dense<0.000000e+00> : vector<16xf32>
    %512 = vector.multi_reduction <add>, %511, %cst_49 [0] : vector<16x16xf32> to vector<16xf32>
    %513 = vector.shape_cast %512 : vector<16xf32> to vector<1x16xf32>
    %514 = vector.extract_strided_slice %5 {offsets = [80, 0], sizes = [16, 16], strides = [1, 1]} : vector<128x16xf32> to vector<16x16xf32>
    %515 = arith.mulf %493, %514 : vector<16x16xf32>
    %cst_50 = arith.constant dense<0.000000e+00> : vector<16xf32>
    %516 = vector.multi_reduction <add>, %515, %cst_50 [0] : vector<16x16xf32> to vector<16xf32>
    %517 = vector.shape_cast %516 : vector<16xf32> to vector<1x16xf32>
    %518 = vector.extract_strided_slice %5 {offsets = [96, 0], sizes = [16, 16], strides = [1, 1]} : vector<128x16xf32> to vector<16x16xf32>
    %519 = arith.mulf %493, %518 : vector<16x16xf32>
    %cst_51 = arith.constant dense<0.000000e+00> : vector<16xf32>
    %520 = vector.multi_reduction <add>, %519, %cst_51 [0] : vector<16x16xf32> to vector<16xf32>
    %521 = vector.shape_cast %520 : vector<16xf32> to vector<1x16xf32>
    %522 = vector.extract_strided_slice %5 {offsets = [112, 0], sizes = [16, 16], strides = [1, 1]} : vector<128x16xf32> to vector<16x16xf32>
    %523 = arith.mulf %493, %522 : vector<16x16xf32>
    %cst_52 = arith.constant dense<0.000000e+00> : vector<16xf32>
    %524 = vector.multi_reduction <add>, %523, %cst_52 [0] : vector<16x16xf32> to vector<16xf32>
    %525 = vector.shape_cast %524 : vector<16xf32> to vector<1x16xf32>
    %526 = arith.maximumf %497, %501 : vector<1x16xf32>
    %527 = arith.maximumf %526, %505 : vector<1x16xf32>
    %528 = arith.maximumf %527, %509 : vector<1x16xf32>
    %529 = arith.maximumf %528, %513 : vector<1x16xf32>
    %530 = arith.maximumf %529, %517 : vector<1x16xf32>
    %531 = arith.maximumf %530, %521 : vector<1x16xf32>
    %532 = arith.maximumf %531, %525 : vector<1x16xf32>
    %533 = arith.subf %497, %532 : vector<1x16xf32>
    %534 = math.exp %533 : vector<1x16xf32>
    %535 = arith.subf %501, %532 : vector<1x16xf32>
    %536 = math.exp %535 : vector<1x16xf32>
    %537 = arith.subf %505, %532 : vector<1x16xf32>
    %538 = math.exp %537 : vector<1x16xf32>
    %539 = arith.subf %509, %532 : vector<1x16xf32>
    %540 = math.exp %539 : vector<1x16xf32>
    %541 = arith.subf %513, %532 : vector<1x16xf32>
    %542 = math.exp %541 : vector<1x16xf32>
    %543 = arith.subf %517, %532 : vector<1x16xf32>
    %544 = math.exp %543 : vector<1x16xf32>
    %545 = arith.subf %521, %532 : vector<1x16xf32>
    %546 = math.exp %545 : vector<1x16xf32>
    %547 = arith.subf %525, %532 : vector<1x16xf32>
    %548 = math.exp %547 : vector<1x16xf32>
    %549 = arith.addf %534, %536 : vector<1x16xf32>
    %550 = arith.addf %549, %538 : vector<1x16xf32>
    %551 = arith.addf %550, %540 : vector<1x16xf32>
    %552 = arith.addf %551, %542 : vector<1x16xf32>
    %553 = arith.addf %552, %544 : vector<1x16xf32>
    %554 = arith.addf %553, %546 : vector<1x16xf32>
    %555 = arith.addf %554, %548 : vector<1x16xf32>
    %556 = tpu.reciprocal %555 {approx = true} : vector<1x16xf32> -> vector<1x16xf32>
    %557 = vector.extract_strided_slice %7 {offsets = [0, 0], sizes = [16, 16], strides = [1, 1]} : vector<128x16xf32> to vector<16x16xf32>
    %558 = vector.broadcast %534 : vector<1x16xf32> to vector<16x16xf32>
    %559 = arith.mulf %558, %557 : vector<16x16xf32>
    %560 = vector.extract_strided_slice %7 {offsets = [16, 0], sizes = [16, 16], strides = [1, 1]} : vector<128x16xf32> to vector<16x16xf32>
    %561 = vector.broadcast %536 : vector<1x16xf32> to vector<16x16xf32>
    %562 = arith.mulf %561, %560 : vector<16x16xf32>
    %563 = arith.addf %559, %562 : vector<16x16xf32>
    %564 = vector.extract_strided_slice %7 {offsets = [32, 0], sizes = [16, 16], strides = [1, 1]} : vector<128x16xf32> to vector<16x16xf32>
    %565 = vector.broadcast %538 : vector<1x16xf32> to vector<16x16xf32>
    %566 = arith.mulf %565, %564 : vector<16x16xf32>
    %567 = arith.addf %563, %566 : vector<16x16xf32>
    %568 = vector.extract_strided_slice %7 {offsets = [48, 0], sizes = [16, 16], strides = [1, 1]} : vector<128x16xf32> to vector<16x16xf32>
    %569 = vector.broadcast %540 : vector<1x16xf32> to vector<16x16xf32>
    %570 = arith.mulf %569, %568 : vector<16x16xf32>
    %571 = arith.addf %567, %570 : vector<16x16xf32>
    %572 = vector.extract_strided_slice %7 {offsets = [64, 0], sizes = [16, 16], strides = [1, 1]} : vector<128x16xf32> to vector<16x16xf32>
    %573 = vector.broadcast %542 : vector<1x16xf32> to vector<16x16xf32>
    %574 = arith.mulf %573, %572 : vector<16x16xf32>
    %575 = arith.addf %571, %574 : vector<16x16xf32>
    %576 = vector.extract_strided_slice %7 {offsets = [80, 0], sizes = [16, 16], strides = [1, 1]} : vector<128x16xf32> to vector<16x16xf32>
    %577 = vector.broadcast %544 : vector<1x16xf32> to vector<16x16xf32>
    %578 = arith.mulf %577, %576 : vector<16x16xf32>
    %579 = arith.addf %575, %578 : vector<16x16xf32>
    %580 = vector.extract_strided_slice %7 {offsets = [96, 0], sizes = [16, 16], strides = [1, 1]} : vector<128x16xf32> to vector<16x16xf32>
    %581 = vector.broadcast %546 : vector<1x16xf32> to vector<16x16xf32>
    %582 = arith.mulf %581, %580 : vector<16x16xf32>
    %583 = arith.addf %579, %582 : vector<16x16xf32>
    %584 = vector.extract_strided_slice %7 {offsets = [112, 0], sizes = [16, 16], strides = [1, 1]} : vector<128x16xf32> to vector<16x16xf32>
    %585 = vector.broadcast %548 : vector<1x16xf32> to vector<16x16xf32>
    %586 = arith.mulf %585, %584 : vector<16x16xf32>
    %587 = arith.addf %583, %586 : vector<16x16xf32>
    %588 = vector.broadcast %556 : vector<1x16xf32> to vector<16x16xf32>
    %589 = arith.mulf %587, %588 : vector<16x16xf32>
    %590 = vector.extract_strided_slice %3 {offsets = [96, 0], sizes = [16, 16], strides = [1, 1]} : vector<128x16xf32> to vector<16x16xf32>
    %591 = vector.extract_strided_slice %5 {offsets = [0, 0], sizes = [16, 16], strides = [1, 1]} : vector<128x16xf32> to vector<16x16xf32>
    %592 = arith.mulf %590, %591 : vector<16x16xf32>
    %cst_53 = arith.constant dense<0.000000e+00> : vector<16xf32>
    %593 = vector.multi_reduction <add>, %592, %cst_53 [0] : vector<16x16xf32> to vector<16xf32>
    %594 = vector.shape_cast %593 : vector<16xf32> to vector<1x16xf32>
    %595 = vector.extract_strided_slice %5 {offsets = [16, 0], sizes = [16, 16], strides = [1, 1]} : vector<128x16xf32> to vector<16x16xf32>
    %596 = arith.mulf %590, %595 : vector<16x16xf32>
    %cst_54 = arith.constant dense<0.000000e+00> : vector<16xf32>
    %597 = vector.multi_reduction <add>, %596, %cst_54 [0] : vector<16x16xf32> to vector<16xf32>
    %598 = vector.shape_cast %597 : vector<16xf32> to vector<1x16xf32>
    %599 = vector.extract_strided_slice %5 {offsets = [32, 0], sizes = [16, 16], strides = [1, 1]} : vector<128x16xf32> to vector<16x16xf32>
    %600 = arith.mulf %590, %599 : vector<16x16xf32>
    %cst_55 = arith.constant dense<0.000000e+00> : vector<16xf32>
    %601 = vector.multi_reduction <add>, %600, %cst_55 [0] : vector<16x16xf32> to vector<16xf32>
    %602 = vector.shape_cast %601 : vector<16xf32> to vector<1x16xf32>
    %603 = vector.extract_strided_slice %5 {offsets = [48, 0], sizes = [16, 16], strides = [1, 1]} : vector<128x16xf32> to vector<16x16xf32>
    %604 = arith.mulf %590, %603 : vector<16x16xf32>
    %cst_56 = arith.constant dense<0.000000e+00> : vector<16xf32>
    %605 = vector.multi_reduction <add>, %604, %cst_56 [0] : vector<16x16xf32> to vector<16xf32>
    %606 = vector.shape_cast %605 : vector<16xf32> to vector<1x16xf32>
    %607 = vector.extract_strided_slice %5 {offsets = [64, 0], sizes = [16, 16], strides = [1, 1]} : vector<128x16xf32> to vector<16x16xf32>
    %608 = arith.mulf %590, %607 : vector<16x16xf32>
    %cst_57 = arith.constant dense<0.000000e+00> : vector<16xf32>
    %609 = vector.multi_reduction <add>, %608, %cst_57 [0] : vector<16x16xf32> to vector<16xf32>
    %610 = vector.shape_cast %609 : vector<16xf32> to vector<1x16xf32>
    %611 = vector.extract_strided_slice %5 {offsets = [80, 0], sizes = [16, 16], strides = [1, 1]} : vector<128x16xf32> to vector<16x16xf32>
    %612 = arith.mulf %590, %611 : vector<16x16xf32>
    %cst_58 = arith.constant dense<0.000000e+00> : vector<16xf32>
    %613 = vector.multi_reduction <add>, %612, %cst_58 [0] : vector<16x16xf32> to vector<16xf32>
    %614 = vector.shape_cast %613 : vector<16xf32> to vector<1x16xf32>
    %615 = vector.extract_strided_slice %5 {offsets = [96, 0], sizes = [16, 16], strides = [1, 1]} : vector<128x16xf32> to vector<16x16xf32>
    %616 = arith.mulf %590, %615 : vector<16x16xf32>
    %cst_59 = arith.constant dense<0.000000e+00> : vector<16xf32>
    %617 = vector.multi_reduction <add>, %616, %cst_59 [0] : vector<16x16xf32> to vector<16xf32>
    %618 = vector.shape_cast %617 : vector<16xf32> to vector<1x16xf32>
    %619 = vector.extract_strided_slice %5 {offsets = [112, 0], sizes = [16, 16], strides = [1, 1]} : vector<128x16xf32> to vector<16x16xf32>
    %620 = arith.mulf %590, %619 : vector<16x16xf32>
    %cst_60 = arith.constant dense<0.000000e+00> : vector<16xf32>
    %621 = vector.multi_reduction <add>, %620, %cst_60 [0] : vector<16x16xf32> to vector<16xf32>
    %622 = vector.shape_cast %621 : vector<16xf32> to vector<1x16xf32>
    %623 = arith.maximumf %594, %598 : vector<1x16xf32>
    %624 = arith.maximumf %623, %602 : vector<1x16xf32>
    %625 = arith.maximumf %624, %606 : vector<1x16xf32>
    %626 = arith.maximumf %625, %610 : vector<1x16xf32>
    %627 = arith.maximumf %626, %614 : vector<1x16xf32>
    %628 = arith.maximumf %627, %618 : vector<1x16xf32>
    %629 = arith.maximumf %628, %622 : vector<1x16xf32>
    %630 = arith.subf %594, %629 : vector<1x16xf32>
    %631 = math.exp %630 : vector<1x16xf32>
    %632 = arith.subf %598, %629 : vector<1x16xf32>
    %633 = math.exp %632 : vector<1x16xf32>
    %634 = arith.subf %602, %629 : vector<1x16xf32>
    %635 = math.exp %634 : vector<1x16xf32>
    %636 = arith.subf %606, %629 : vector<1x16xf32>
    %637 = math.exp %636 : vector<1x16xf32>
    %638 = arith.subf %610, %629 : vector<1x16xf32>
    %639 = math.exp %638 : vector<1x16xf32>
    %640 = arith.subf %614, %629 : vector<1x16xf32>
    %641 = math.exp %640 : vector<1x16xf32>
    %642 = arith.subf %618, %629 : vector<1x16xf32>
    %643 = math.exp %642 : vector<1x16xf32>
    %644 = arith.subf %622, %629 : vector<1x16xf32>
    %645 = math.exp %644 : vector<1x16xf32>
    %646 = arith.addf %631, %633 : vector<1x16xf32>
    %647 = arith.addf %646, %635 : vector<1x16xf32>
    %648 = arith.addf %647, %637 : vector<1x16xf32>
    %649 = arith.addf %648, %639 : vector<1x16xf32>
    %650 = arith.addf %649, %641 : vector<1x16xf32>
    %651 = arith.addf %650, %643 : vector<1x16xf32>
    %652 = arith.addf %651, %645 : vector<1x16xf32>
    %653 = tpu.reciprocal %652 {approx = true} : vector<1x16xf32> -> vector<1x16xf32>
    %654 = vector.extract_strided_slice %7 {offsets = [0, 0], sizes = [16, 16], strides = [1, 1]} : vector<128x16xf32> to vector<16x16xf32>
    %655 = vector.broadcast %631 : vector<1x16xf32> to vector<16x16xf32>
    %656 = arith.mulf %655, %654 : vector<16x16xf32>
    %657 = vector.extract_strided_slice %7 {offsets = [16, 0], sizes = [16, 16], strides = [1, 1]} : vector<128x16xf32> to vector<16x16xf32>
    %658 = vector.broadcast %633 : vector<1x16xf32> to vector<16x16xf32>
    %659 = arith.mulf %658, %657 : vector<16x16xf32>
    %660 = arith.addf %656, %659 : vector<16x16xf32>
    %661 = vector.extract_strided_slice %7 {offsets = [32, 0], sizes = [16, 16], strides = [1, 1]} : vector<128x16xf32> to vector<16x16xf32>
    %662 = vector.broadcast %635 : vector<1x16xf32> to vector<16x16xf32>
    %663 = arith.mulf %662, %661 : vector<16x16xf32>
    %664 = arith.addf %660, %663 : vector<16x16xf32>
    %665 = vector.extract_strided_slice %7 {offsets = [48, 0], sizes = [16, 16], strides = [1, 1]} : vector<128x16xf32> to vector<16x16xf32>
    %666 = vector.broadcast %637 : vector<1x16xf32> to vector<16x16xf32>
    %667 = arith.mulf %666, %665 : vector<16x16xf32>
    %668 = arith.addf %664, %667 : vector<16x16xf32>
    %669 = vector.extract_strided_slice %7 {offsets = [64, 0], sizes = [16, 16], strides = [1, 1]} : vector<128x16xf32> to vector<16x16xf32>
    %670 = vector.broadcast %639 : vector<1x16xf32> to vector<16x16xf32>
    %671 = arith.mulf %670, %669 : vector<16x16xf32>
    %672 = arith.addf %668, %671 : vector<16x16xf32>
    %673 = vector.extract_strided_slice %7 {offsets = [80, 0], sizes = [16, 16], strides = [1, 1]} : vector<128x16xf32> to vector<16x16xf32>
    %674 = vector.broadcast %641 : vector<1x16xf32> to vector<16x16xf32>
    %675 = arith.mulf %674, %673 : vector<16x16xf32>
    %676 = arith.addf %672, %675 : vector<16x16xf32>
    %677 = vector.extract_strided_slice %7 {offsets = [96, 0], sizes = [16, 16], strides = [1, 1]} : vector<128x16xf32> to vector<16x16xf32>
    %678 = vector.broadcast %643 : vector<1x16xf32> to vector<16x16xf32>
    %679 = arith.mulf %678, %677 : vector<16x16xf32>
    %680 = arith.addf %676, %679 : vector<16x16xf32>
    %681 = vector.extract_strided_slice %7 {offsets = [112, 0], sizes = [16, 16], strides = [1, 1]} : vector<128x16xf32> to vector<16x16xf32>
    %682 = vector.broadcast %645 : vector<1x16xf32> to vector<16x16xf32>
    %683 = arith.mulf %682, %681 : vector<16x16xf32>
    %684 = arith.addf %680, %683 : vector<16x16xf32>
    %685 = vector.broadcast %653 : vector<1x16xf32> to vector<16x16xf32>
    %686 = arith.mulf %684, %685 : vector<16x16xf32>
    %687 = vector.extract_strided_slice %3 {offsets = [112, 0], sizes = [16, 16], strides = [1, 1]} : vector<128x16xf32> to vector<16x16xf32>
    %688 = vector.extract_strided_slice %5 {offsets = [0, 0], sizes = [16, 16], strides = [1, 1]} : vector<128x16xf32> to vector<16x16xf32>
    %689 = arith.mulf %687, %688 : vector<16x16xf32>
    %cst_61 = arith.constant dense<0.000000e+00> : vector<16xf32>
    %690 = vector.multi_reduction <add>, %689, %cst_61 [0] : vector<16x16xf32> to vector<16xf32>
    %691 = vector.shape_cast %690 : vector<16xf32> to vector<1x16xf32>
    %692 = vector.extract_strided_slice %5 {offsets = [16, 0], sizes = [16, 16], strides = [1, 1]} : vector<128x16xf32> to vector<16x16xf32>
    %693 = arith.mulf %687, %692 : vector<16x16xf32>
    %cst_62 = arith.constant dense<0.000000e+00> : vector<16xf32>
    %694 = vector.multi_reduction <add>, %693, %cst_62 [0] : vector<16x16xf32> to vector<16xf32>
    %695 = vector.shape_cast %694 : vector<16xf32> to vector<1x16xf32>
    %696 = vector.extract_strided_slice %5 {offsets = [32, 0], sizes = [16, 16], strides = [1, 1]} : vector<128x16xf32> to vector<16x16xf32>
    %697 = arith.mulf %687, %696 : vector<16x16xf32>
    %cst_63 = arith.constant dense<0.000000e+00> : vector<16xf32>
    %698 = vector.multi_reduction <add>, %697, %cst_63 [0] : vector<16x16xf32> to vector<16xf32>
    %699 = vector.shape_cast %698 : vector<16xf32> to vector<1x16xf32>
    %700 = vector.extract_strided_slice %5 {offsets = [48, 0], sizes = [16, 16], strides = [1, 1]} : vector<128x16xf32> to vector<16x16xf32>
    %701 = arith.mulf %687, %700 : vector<16x16xf32>
    %cst_64 = arith.constant dense<0.000000e+00> : vector<16xf32>
    %702 = vector.multi_reduction <add>, %701, %cst_64 [0] : vector<16x16xf32> to vector<16xf32>
    %703 = vector.shape_cast %702 : vector<16xf32> to vector<1x16xf32>
    %704 = vector.extract_strided_slice %5 {offsets = [64, 0], sizes = [16, 16], strides = [1, 1]} : vector<128x16xf32> to vector<16x16xf32>
    %705 = arith.mulf %687, %704 : vector<16x16xf32>
    %cst_65 = arith.constant dense<0.000000e+00> : vector<16xf32>
    %706 = vector.multi_reduction <add>, %705, %cst_65 [0] : vector<16x16xf32> to vector<16xf32>
    %707 = vector.shape_cast %706 : vector<16xf32> to vector<1x16xf32>
    %708 = vector.extract_strided_slice %5 {offsets = [80, 0], sizes = [16, 16], strides = [1, 1]} : vector<128x16xf32> to vector<16x16xf32>
    %709 = arith.mulf %687, %708 : vector<16x16xf32>
    %cst_66 = arith.constant dense<0.000000e+00> : vector<16xf32>
    %710 = vector.multi_reduction <add>, %709, %cst_66 [0] : vector<16x16xf32> to vector<16xf32>
    %711 = vector.shape_cast %710 : vector<16xf32> to vector<1x16xf32>
    %712 = vector.extract_strided_slice %5 {offsets = [96, 0], sizes = [16, 16], strides = [1, 1]} : vector<128x16xf32> to vector<16x16xf32>
    %713 = arith.mulf %687, %712 : vector<16x16xf32>
    %cst_67 = arith.constant dense<0.000000e+00> : vector<16xf32>
    %714 = vector.multi_reduction <add>, %713, %cst_67 [0] : vector<16x16xf32> to vector<16xf32>
    %715 = vector.shape_cast %714 : vector<16xf32> to vector<1x16xf32>
    %716 = vector.extract_strided_slice %5 {offsets = [112, 0], sizes = [16, 16], strides = [1, 1]} : vector<128x16xf32> to vector<16x16xf32>
    %717 = arith.mulf %687, %716 : vector<16x16xf32>
    %cst_68 = arith.constant dense<0.000000e+00> : vector<16xf32>
    %718 = vector.multi_reduction <add>, %717, %cst_68 [0] : vector<16x16xf32> to vector<16xf32>
    %719 = vector.shape_cast %718 : vector<16xf32> to vector<1x16xf32>
    %720 = arith.maximumf %691, %695 : vector<1x16xf32>
    %721 = arith.maximumf %720, %699 : vector<1x16xf32>
    %722 = arith.maximumf %721, %703 : vector<1x16xf32>
    %723 = arith.maximumf %722, %707 : vector<1x16xf32>
    %724 = arith.maximumf %723, %711 : vector<1x16xf32>
    %725 = arith.maximumf %724, %715 : vector<1x16xf32>
    %726 = arith.maximumf %725, %719 : vector<1x16xf32>
    %727 = arith.subf %691, %726 : vector<1x16xf32>
    %728 = math.exp %727 : vector<1x16xf32>
    %729 = arith.subf %695, %726 : vector<1x16xf32>
    %730 = math.exp %729 : vector<1x16xf32>
    %731 = arith.subf %699, %726 : vector<1x16xf32>
    %732 = math.exp %731 : vector<1x16xf32>
    %733 = arith.subf %703, %726 : vector<1x16xf32>
    %734 = math.exp %733 : vector<1x16xf32>
    %735 = arith.subf %707, %726 : vector<1x16xf32>
    %736 = math.exp %735 : vector<1x16xf32>
    %737 = arith.subf %711, %726 : vector<1x16xf32>
    %738 = math.exp %737 : vector<1x16xf32>
    %739 = arith.subf %715, %726 : vector<1x16xf32>
    %740 = math.exp %739 : vector<1x16xf32>
    %741 = arith.subf %719, %726 : vector<1x16xf32>
    %742 = math.exp %741 : vector<1x16xf32>
    %743 = arith.addf %728, %730 : vector<1x16xf32>
    %744 = arith.addf %743, %732 : vector<1x16xf32>
    %745 = arith.addf %744, %734 : vector<1x16xf32>
    %746 = arith.addf %745, %736 : vector<1x16xf32>
    %747 = arith.addf %746, %738 : vector<1x16xf32>
    %748 = arith.addf %747, %740 : vector<1x16xf32>
    %749 = arith.addf %748, %742 : vector<1x16xf32>
    %750 = tpu.reciprocal %749 {approx = true} : vector<1x16xf32> -> vector<1x16xf32>
    %751 = vector.extract_strided_slice %7 {offsets = [0, 0], sizes = [16, 16], strides = [1, 1]} : vector<128x16xf32> to vector<16x16xf32>
    %752 = vector.broadcast %728 : vector<1x16xf32> to vector<16x16xf32>
    %753 = arith.mulf %752, %751 : vector<16x16xf32>
    %754 = vector.extract_strided_slice %7 {offsets = [16, 0], sizes = [16, 16], strides = [1, 1]} : vector<128x16xf32> to vector<16x16xf32>
    %755 = vector.broadcast %730 : vector<1x16xf32> to vector<16x16xf32>
    %756 = arith.mulf %755, %754 : vector<16x16xf32>
    %757 = arith.addf %753, %756 : vector<16x16xf32>
    %758 = vector.extract_strided_slice %7 {offsets = [32, 0], sizes = [16, 16], strides = [1, 1]} : vector<128x16xf32> to vector<16x16xf32>
    %759 = vector.broadcast %732 : vector<1x16xf32> to vector<16x16xf32>
    %760 = arith.mulf %759, %758 : vector<16x16xf32>
    %761 = arith.addf %757, %760 : vector<16x16xf32>
    %762 = vector.extract_strided_slice %7 {offsets = [48, 0], sizes = [16, 16], strides = [1, 1]} : vector<128x16xf32> to vector<16x16xf32>
    %763 = vector.broadcast %734 : vector<1x16xf32> to vector<16x16xf32>
    %764 = arith.mulf %763, %762 : vector<16x16xf32>
    %765 = arith.addf %761, %764 : vector<16x16xf32>
    %766 = vector.extract_strided_slice %7 {offsets = [64, 0], sizes = [16, 16], strides = [1, 1]} : vector<128x16xf32> to vector<16x16xf32>
    %767 = vector.broadcast %736 : vector<1x16xf32> to vector<16x16xf32>
    %768 = arith.mulf %767, %766 : vector<16x16xf32>
    %769 = arith.addf %765, %768 : vector<16x16xf32>
    %770 = vector.extract_strided_slice %7 {offsets = [80, 0], sizes = [16, 16], strides = [1, 1]} : vector<128x16xf32> to vector<16x16xf32>
    %771 = vector.broadcast %738 : vector<1x16xf32> to vector<16x16xf32>
    %772 = arith.mulf %771, %770 : vector<16x16xf32>
    %773 = arith.addf %769, %772 : vector<16x16xf32>
    %774 = vector.extract_strided_slice %7 {offsets = [96, 0], sizes = [16, 16], strides = [1, 1]} : vector<128x16xf32> to vector<16x16xf32>
    %775 = vector.broadcast %740 : vector<1x16xf32> to vector<16x16xf32>
    %776 = arith.mulf %775, %774 : vector<16x16xf32>
    %777 = arith.addf %773, %776 : vector<16x16xf32>
    %778 = vector.extract_strided_slice %7 {offsets = [112, 0], sizes = [16, 16], strides = [1, 1]} : vector<128x16xf32> to vector<16x16xf32>
    %779 = vector.broadcast %742 : vector<1x16xf32> to vector<16x16xf32>
    %780 = arith.mulf %779, %778 : vector<16x16xf32>
    %781 = arith.addf %777, %780 : vector<16x16xf32>
    %782 = vector.broadcast %750 : vector<1x16xf32> to vector<16x16xf32>
    %783 = arith.mulf %781, %782 : vector<16x16xf32>
    %784 = tpu.concatenate %104, %201, %298, %395, %492, %589, %686, %783 in 0 : vector<16x16xf32>, vector<16x16xf32>, vector<16x16xf32>, vector<16x16xf32>, vector<16x16xf32>, vector<16x16xf32>, vector<16x16xf32>, vector<16x16xf32> -> vector<128x16xf32>
    %785 = tpu.transpose %784, [1, 0] : vector<128x16xf32> -> vector<16x128xf32>
    %c0_69 = arith.constant 0 : index
    %c0_70 = arith.constant 0 : index
    %786 = vector.load %arg4[%c0_69, %c0_70] : memref<16x128xf32, #tpu.memory_space<vmem>>, vector<16x128xf32>
    tpu.vector_store %arg4[%c0_69, %c0_70], %785 {strides = array<i32>} : memref<16x128xf32, #tpu.memory_space<vmem>>, vector<16x128xf32>,
    return
  }
  func.func @transform_0(%arg0: i32) -> (i32, i32) {
    %c0_i32 = arith.constant 0 : i32
    %c0_i32_0 = arith.constant 0 : i32
    return %arg0, %c0_i32 : i32, i32
  }
  func.func @transform_1(%arg0: i32) -> (i32, i32) {
    %c0_i32 = arith.constant 0 : i32
    %c0_i32_0 = arith.constant 0 : i32
    return %arg0, %c0_i32 : i32, i32
  }
  func.func @transform_2(%arg0: i32) -> (i32, i32) {
    %c0_i32 = arith.constant 0 : i32
    %c0_i32_0 = arith.constant 0 : i32
    return %arg0, %c0_i32 : i32, i32
  }
  func.func @transform_3(%arg0: i32) -> (i32, i32) {
    %c0_i32 = arith.constant 0 : i32
    %c0_i32_0 = arith.constant 0 : i32
    return %arg0, %c0_i32 : i32, i32
  }
}

module attributes {stable_mosaic.version = 11 : i64} {
  func.func @_mxu_kernel(%arg0: i32, %arg1: memref<16x8x16xf32, #tpu.memory_space<vmem>>, %arg2: memref<16x8x16xf32, #tpu.memory_space<vmem>>, %arg3: memref<16x8x16xf32, #tpu.memory_space<vmem>>, %arg4: memref<16x8x16xf32, #tpu.memory_space<vmem>>) attributes {dimension_semantics = [#tpu.dimension_semantics<parallel>], iteration_bounds = array<i64: 1>, scalar_prefetch = 0 : i64, scratch_operands = 0 : i64, tpu.core_type = #tpu.core_type<tc>, window_params = [{transform_indices = @transform_0, window_bounds = array<i64: 16, 8, 16>}, {transform_indices = @transform_1, window_bounds = array<i64: 16, 8, 16>}, {transform_indices = @transform_2, window_bounds = array<i64: 16, 8, 16>}, {transform_indices = @transform_3, window_bounds = array<i64: 16, 8, 16>}]} {
    %c0 = arith.constant 0 : index
    %c0_0 = arith.constant 0 : index
    %c0_1 = arith.constant 0 : index
    %0 = vector.load %arg1[%c0, %c0_0, %c0_1] : memref<16x8x16xf32, #tpu.memory_space<vmem>>, vector<16x8x16xf32>
    %c0_2 = arith.constant 0 : index
    %c0_3 = arith.constant 0 : index
    %c0_4 = arith.constant 0 : index
    %1 = vector.load %arg2[%c0_2, %c0_3, %c0_4] : memref<16x8x16xf32, #tpu.memory_space<vmem>>, vector<16x8x16xf32>
    %c0_5 = arith.constant 0 : index
    %c0_6 = arith.constant 0 : index
    %c0_7 = arith.constant 0 : index
    %2 = vector.load %arg3[%c0_5, %c0_6, %c0_7] : memref<16x8x16xf32, #tpu.memory_space<vmem>>, vector<16x8x16xf32>
    "tpu.trace_start"() <{level = 10 : i32, message = "gnd,gmd->gnm"}> : () -> ()
    %cst = arith.constant dense<0.000000e+00> : vector<16x8x8xf32>
    %3 = tpu.matmul %0, %1, %cst {dimension_numbers = #tpu.dot_dimension_numbers<[2], [2], [1], [1], [0, 0, 0, 1, 1, 1], [0], [0]>} : vector<16x8x16xf32>, vector<16x8x16xf32>, vector<16x8x8xf32> -> vector<16x8x8xf32>
    "tpu.trace_stop"() : () -> ()
    %cst_8 = arith.constant 2.500000e-01 : f32
    %4 = vector.broadcast %cst_8 : f32 to vector<16x8x8xf32>
    %5 = arith.mulf %3, %4 : vector<16x8x8xf32>
    %cst_9 = arith.constant dense<0xFF800000> : vector<16x8xf32>
    %6 = vector.multi_reduction <maximumf>, %5, %cst_9 [2] : vector<16x8x8xf32> to vector<16x8xf32>
    %7 = vector.shape_cast %6 : vector<16x8xf32> to vector<16x8x1xf32>
    %8 = vector.broadcast %7 : vector<16x8x1xf32> to vector<16x8x8xf32>
    %9 = arith.subf %5, %8 : vector<16x8x8xf32>
    %10 = math.exp %9 : vector<16x8x8xf32>
    %cst_10 = arith.constant dense<0.000000e+00> : vector<16x8xf32>
    %11 = vector.multi_reduction <add>, %10, %cst_10 [2] : vector<16x8x8xf32> to vector<16x8xf32>
    %12 = vector.shape_cast %11 : vector<16x8xf32> to vector<16x8x1xf32>
    "tpu.trace_start"() <{level = 10 : i32, message = "gnm,gmd->gnd"}> : () -> ()
    %cst_11 = arith.constant dense<0.000000e+00> : vector<16x8x16xf32>
    %13 = tpu.matmul %10, %2, %cst_11 {dimension_numbers = #tpu.dot_dimension_numbers<[2], [1], [1], [2], [0, 0, 0, 1, 1, 2], [0], [0]>} : vector<16x8x8xf32>, vector<16x8x16xf32>, vector<16x8x16xf32> -> vector<16x8x16xf32>
    "tpu.trace_stop"() : () -> ()
    %14 = tpu.reciprocal %12 {approx = true} : vector<16x8x1xf32> -> vector<16x8x1xf32>
    %15 = vector.broadcast %14 : vector<16x8x1xf32> to vector<16x8x16xf32>
    %16 = arith.mulf %13, %15 : vector<16x8x16xf32>
    %c0_12 = arith.constant 0 : index
    %c0_13 = arith.constant 0 : index
    %c0_14 = arith.constant 0 : index
    %17 = vector.load %arg4[%c0_12, %c0_13, %c0_14] : memref<16x8x16xf32, #tpu.memory_space<vmem>>, vector<16x8x16xf32>
    tpu.vector_store %arg4[%c0_12, %c0_13, %c0_14], %16 {strides = array<i32>} : memref<16x8x16xf32, #tpu.memory_space<vmem>>, vector<16x8x16xf32>,
    return
  }
  func.func @transform_0(%arg0: i32) -> (i32, i32, i32) {
    %c0_i32 = arith.constant 0 : i32
    %c0_i32_0 = arith.constant 0 : i32
    %c0_i32_1 = arith.constant 0 : i32
    return %arg0, %c0_i32, %c0_i32_0 : i32, i32, i32
  }
  func.func @transform_1(%arg0: i32) -> (i32, i32, i32) {
    %c0_i32 = arith.constant 0 : i32
    %c0_i32_0 = arith.constant 0 : i32
    %c0_i32_1 = arith.constant 0 : i32
    return %arg0, %c0_i32, %c0_i32_0 : i32, i32, i32
  }
  func.func @transform_2(%arg0: i32) -> (i32, i32, i32) {
    %c0_i32 = arith.constant 0 : i32
    %c0_i32_0 = arith.constant 0 : i32
    %c0_i32_1 = arith.constant 0 : i32
    return %arg0, %c0_i32, %c0_i32_0 : i32, i32, i32
  }
  func.func @transform_3(%arg0: i32) -> (i32, i32, i32) {
    %c0_i32 = arith.constant 0 : i32
    %c0_i32_0 = arith.constant 0 : i32
    %c0_i32_1 = arith.constant 0 : i32
    return %arg0, %c0_i32, %c0_i32_0 : i32, i32, i32
  }
}

</mosaic_0001>

<llo_original>
// kernel: tpu_custom_call.1
$region0: #{tpu_custom_call.1}
  #allocation0 [shape = 'u32[]', space=smem, size = 0x4, offset = 0x4, fixed_abs, tag = 'smem constant byte address 0x4 - core index']
  #allocation1 [shape = 'u32[144,128]{1,0:T(1,128)}', space=vmem, size = 0x12000, scoped, tag = 'internal scratch']
  %s0 = inlined_call_operand.hbm [shape: f32[16,128], index: 0, kind: input, shape index: {}]
  %s1 = inlined_call_operand.hbm [shape: f32[16,128], index: 1, kind: input, shape index: {}]
  %s2 = inlined_call_operand.hbm [shape: f32[16,128], index: 2, kind: input, shape index: {}]
  %s3 = inlined_call_operand.hbm [shape: f32[16,128], index: 3, kind: output, shape index: {}]
  %s4 = sld [smem:[#allocation0]]
  $region34: #{tpu_custom_call.1} parent=0
    _
  %s6 = ssub.s32 1, %s4
  %s7 = scalar_select 0, %s6, %s4
  $region1: #{tpu_custom_call.1} parent=0
    #allocation2 [shape = 'u8[8192]{0}', space=vmem, size = 0x2000, scoped, tag = 'input window, operand 0, single buffered']
    #allocation3 [shape = 's32[1]{0}', space=sflag, size = 0x4, scoped, tag = 'scoped memory for tpu_custom_call.1']
    #allocation4 [shape = 's32[1]{0}', space=sflag, size = 0x4, scoped, tag = 'scoped memory for tpu_custom_call.1']
    #allocation5 [shape = 'u8[8192]{0}', space=vmem, size = 0x2000, scoped, tag = 'input window, operand 1, single buffered']
    #allocation6 [shape = 's32[1]{0}', space=sflag, size = 0x4, scoped, tag = 'scoped memory for tpu_custom_call.1']
    #allocation7 [shape = 'u8[8192]{0}', space=vmem, size = 0x2000, scoped, tag = 'input window, operand 2, single buffered']
    #allocation8 [shape = 'u8[8192]{0}', space=vmem, size = 0x2000, scoped, tag = 'output window, operand 0, single buffered']
    %8 = vsyncpa [#allocation3], 0
    %9 = vsyncpa [#allocation6], 0
    %10 = vsyncpa [#allocation4], 0
    // Predicated region
    $region2: #{tpu_custom_call.1} parent=1 // pred_check
      _
    $region3: #{tpu_custom_call.1} parent=1 // pred_check_branch
      %12 = sbr.rel (0) target = $region5
    $region4: #{tpu_custom_call.1} parent=1 // pred_region
      %s14 = ssub.s32 256, 256
      %15 = vsyncadd [#allocation3], %s14
      %s16 = sshll.u32 [#allocation2], 4
      %s17 = int_to_ptr.vmem [resolvable:$true] %s16
      %22 = dma.hbm_to_vmem [thread:$0]  %s0, 256, %s17, [#allocation3], 128, 128, 8
    $region5: #{tpu_custom_call.1} parent=1 // pred_fallthru
      _
    // Predicated region
    $region6: #{tpu_custom_call.1} parent=1 // pred_check
      _
    $region7: #{tpu_custom_call.1} parent=1 // pred_check_branch
      %24 = sbr.rel (0) target = $region9
    $region8: #{tpu_custom_call.1} parent=1 // pred_region
      %s26 = ssub.s32 256, 256
      %27 = vsyncadd [#allocation6], %s26
      %s28 = sshll.u32 [#allocation5], 4
      %s29 = int_to_ptr.vmem [resolvable:$true] %s28
      %34 = dma.hbm_to_vmem [thread:$0]  %s1, 256, %s29, [#allocation6], 128, 128, 8
    $region9: #{tpu_custom_call.1} parent=1 // pred_fallthru
      _
    // Predicated region
    $region10: #{tpu_custom_call.1} parent=1 // pred_check
      _
    $region11: #{tpu_custom_call.1} parent=1 // pred_check_branch
      %36 = sbr.rel (0) target = $region13
    $region12: #{tpu_custom_call.1} parent=1 // pred_region
      %s38 = ssub.s32 256, 256
      %39 = vsyncadd [#allocation6], %s38
      %s40 = sshll.u32 [#allocation7], 4
      %s41 = int_to_ptr.vmem [resolvable:$true] %s40
      %46 = dma.hbm_to_vmem [thread:$0]  %s2, 256, %s41, [#allocation6], 128, 128, 8
    $region13: #{tpu_custom_call.1} parent=1 // pred_fallthru
      _
    // Predicated region
    $region14: #{tpu_custom_call.1} parent=1 // pred_check
      _
    $region15: #{tpu_custom_call.1} parent=1 // pred_check_branch
      %48 = sbr.rel (0) target = $region17
    $region16: #{tpu_custom_call.1} parent=1 // pred_region
      %49 = dma.done [#allocation3], 256
    $region17: #{tpu_custom_call.1} parent=1 // pred_fallthru
      _
    // Predicated region
    $region18: #{tpu_custom_call.1} parent=1 // pred_check
      _
    $region19: #{tpu_custom_call.1} parent=1 // pred_check_branch
      %51 = sbr.rel (0) target = $region21
    $region20: #{tpu_custom_call.1} parent=1 // pred_region
      %52 = dma.done [#allocation6], 256
    $region21: #{tpu_custom_call.1} parent=1 // pred_fallthru
      _
    // Predicated region
    $region22: #{tpu_custom_call.1} parent=1 // pred_check
      _
    $region23: #{tpu_custom_call.1} parent=1 // pred_check_branch
      %54 = sbr.rel (0) target = $region25
    $region24: #{tpu_custom_call.1} parent=1 // pred_region
      %55 = dma.done [#allocation6], 256
    $region25: #{tpu_custom_call.1} parent=1 // pred_fallthru
      _
    %v56 = vld [vmem:[#allocation2] sm:$0xff]
    %v57 = vld [vmem:[#allocation2 + $0x8] sm:$0xff]
    %58 = vxpose.xlu0.b32.start [1/16] %v56, 128
    %59 = vxpose.xlu0.b32.cont [2/16] %v57, 128
    %60 = vxpose.xlu0.b32.cont [3/16] 0.0, 128
    %61 = vxpose.xlu0.b32.cont [4/16] 0.0, 128
    %62 = vxpose.xlu0.b32.cont [5/16] 0.0, 128
    %63 = vxpose.xlu0.b32.cont [6/16] 0.0, 128
    %64 = vxpose.xlu0.b32.cont [7/16] 0.0, 128
    %65 = vxpose.xlu0.b32.cont [8/16] 0.0, 128
    %66 = vxpose.xlu0.b32.cont [9/16] 0.0, 128
    %67 = vxpose.xlu0.b32.cont [10/16] 0.0, 128
    %68 = vxpose.xlu0.b32.cont [11/16] 0.0, 128
    %69 = vxpose.xlu0.b32.cont [12/16] 0.0, 128
    %70 = vxpose.xlu0.b32.cont [13/16] 0.0, 128
    %71 = vxpose.xlu0.b32.cont [14/16] 0.0, 128
    %72 = vxpose.xlu0.b32.cont [15/16] 0.0, 128
    %73 = vxpose.xlu0.b32.end [16/16] 0.0, 128
    %v74 = vpop.trf.xlu0
    %v75 = vpop.trf.xlu0
    %v76 = vpop.trf.xlu0
    %v77 = vpop.trf.xlu0
    %v78 = vpop.trf.xlu0
    %v79 = vpop.trf.xlu0
    %v80 = vpop.trf.xlu0
    %v81 = vpop.trf.xlu0
    %v82 = vpop.trf.xlu0
    %v83 = vpop.trf.xlu0
    %v84 = vpop.trf.xlu0
    %v85 = vpop.trf.xlu0
    %v86 = vpop.trf.xlu0
    %v87 = vpop.trf.xlu0
    %v88 = vpop.trf.xlu0
    %v89 = vpop.trf.xlu0
    %v90 = vmul.f32 %v74, 0.25
    %v91 = vmul.f32 %v75, 0.25
    %v92 = vmul.f32 %v76, 0.25
    %v93 = vmul.f32 %v77, 0.25
    %v94 = vmul.f32 %v78, 0.25
    %v95 = vmul.f32 %v79, 0.25
    %v96 = vmul.f32 %v80, 0.25
    %v97 = vmul.f32 %v81, 0.25
    %v98 = vmul.f32 %v82, 0.25
    %v99 = vmul.f32 %v83, 0.25
    %v100 = vmul.f32 %v84, 0.25
    %v101 = vmul.f32 %v85, 0.25
    %v102 = vmul.f32 %v86, 0.25
    %v103 = vmul.f32 %v87, 0.25
    %v104 = vmul.f32 %v88, 0.25
    %v105 = vmul.f32 %v89, 0.25
    %v106 = vld [vmem:[#allocation5] sm:$0xff]
    %v107 = vld [vmem:[#allocation5 + $0x8] sm:$0xff]
    %108 = vxpose.xlu0.b32.start [1/16] %v106, 128
    %109 = vxpose.xlu0.b32.cont [2/16] %v107, 128
    %110 = vxpose.xlu0.b32.cont [3/16] 0.0, 128
    %111 = vxpose.xlu0.b32.cont [4/16] 0.0, 128
    %112 = vxpose.xlu0.b32.cont [5/16] 0.0, 128
    %113 = vxpose.xlu0.b32.cont [6/16] 0.0, 128
    %114 = vxpose.xlu0.b32.cont [7/16] 0.0, 128
    %115 = vxpose.xlu0.b32.cont [8/16] 0.0, 128
    %116 = vxpose.xlu0.b32.cont [9/16] 0.0, 128
    %117 = vxpose.xlu0.b32.cont [10/16] 0.0, 128
    %118 = vxpose.xlu0.b32.cont [11/16] 0.0, 128
    %119 = vxpose.xlu0.b32.cont [12/16] 0.0, 128
    %120 = vxpose.xlu0.b32.cont [13/16] 0.0, 128
    %121 = vxpose.xlu0.b32.cont [14/16] 0.0, 128
    %122 = vxpose.xlu0.b32.cont [15/16] 0.0, 128
    %123 = vxpose.xlu0.b32.end [16/16] 0.0, 128
    %v124 = vpop.trf.xlu0
    %v125 = vpop.trf.xlu0
    %v126 = vpop.trf.xlu0
    %v127 = vpop.trf.xlu0
    %v128 = vpop.trf.xlu0
    %v129 = vpop.trf.xlu0
    %v130 = vpop.trf.xlu0
    %v131 = vpop.trf.xlu0
    %v132 = vpop.trf.xlu0
    %v133 = vpop.trf.xlu0
    %v134 = vpop.trf.xlu0
    %v135 = vpop.trf.xlu0
    %v136 = vpop.trf.xlu0
    %v137 = vpop.trf.xlu0
    %v138 = vpop.trf.xlu0
    %v139 = vpop.trf.xlu0
    %v140 = vld [vmem:[#allocation7] sm:$0xff]
    %v141 = vld [vmem:[#allocation7 + $0x8] sm:$0xff]
    %142 = vxpose.xlu0.b32.start [1/16] %v140, 128
    %143 = vxpose.xlu0.b32.cont [2/16] %v141, 128
    %144 = vxpose.xlu0.b32.cont [3/16] 0.0, 128
    %145 = vxpose.xlu0.b32.cont [4/16] 0.0, 128
    %146 = vxpose.xlu0.b32.cont [5/16] 0.0, 128
    %147 = vxpose.xlu0.b32.cont [6/16] 0.0, 128
    %148 = vxpose.xlu0.b32.cont [7/16] 0.0, 128
    %149 = vxpose.xlu0.b32.cont [8/16] 0.0, 128
    %150 = vxpose.xlu0.b32.cont [9/16] 0.0, 128
    %151 = vxpose.xlu0.b32.cont [10/16] 0.0, 128
    %152 = vxpose.xlu0.b32.cont [11/16] 0.0, 128
    %153 = vxpose.xlu0.b32.cont [12/16] 0.0, 128
    %154 = vxpose.xlu0.b32.cont [13/16] 0.0, 128
    %155 = vxpose.xlu0.b32.cont [14/16] 0.0, 128
    %156 = vxpose.xlu0.b32.cont [15/16] 0.0, 128
    %157 = vxpose.xlu0.b32.end [16/16] 0.0, 128
    %v158 = vpop.trf.xlu0
    %v159 = vpop.trf.xlu0
    %v160 = vpop.trf.xlu0
    %v161 = vpop.trf.xlu0
    %v162 = vpop.trf.xlu0
    %v163 = vpop.trf.xlu0
    %v164 = vpop.trf.xlu0
    %v165 = vpop.trf.xlu0
    %v166 = vpop.trf.xlu0
    %v167 = vpop.trf.xlu0
    %v168 = vpop.trf.xlu0
    %v169 = vpop.trf.xlu0
    %v170 = vpop.trf.xlu0
    %v171 = vpop.trf.xlu0
    %v172 = vpop.trf.xlu0
    %v173 = vpop.trf.xlu0
    %v174 = vmul.f32 %v90, %v124
    %v175 = vmul.f32 %v91, %v125
    %vm176 = vcmask 130048
    %v177 = vsel %vm176, %v174, 0.0
    %v178 = vsel %vm176, %v175, 0.0
    %v179 = vadd.f32 %v177, %v178
    %v180 = vrot.slane %v179, 4
    %v181 = vadd.f32 %v179, %v180
    %v182 = vrot.slane %v181, 2
    %v183 = vadd.f32 %v181, %v182
    %v184 = vrot.slane %v183, 1
    %v185 = vadd.f32 %v183, %v184
    %v186 = vmul.f32 %v90, %v126
    %v187 = vmul.f32 %v91, %v127
    %v188 = vsel %vm176, %v186, 0.0
    %v189 = vsel %vm176, %v187, 0.0
    %v190 = vadd.f32 %v188, %v189
    %v191 = vrot.slane %v190, 4
    %v192 = vadd.f32 %v190, %v191
    %v193 = vrot.slane %v192, 2
    %v194 = vadd.f32 %v192, %v193
    %v195 = vrot.slane %v194, 1
    %v196 = vadd.f32 %v194, %v195
    %v197 = vmul.f32 %v90, %v128
    %v198 = vmul.f32 %v91, %v129
    %v199 = vsel %vm176, %v197, 0.0
    %v200 = vsel %vm176, %v198, 0.0
    %v201 = vadd.f32 %v199, %v200
    %v202 = vrot.slane %v201, 4
    %v203 = vadd.f32 %v201, %v202
    %v204 = vrot.slane %v203, 2
    %v205 = vadd.f32 %v203, %v204
    %v206 = vrot.slane %v205, 1
    %v207 = vadd.f32 %v205, %v206
    %v208 = vmul.f32 %v90, %v130
    %v209 = vmul.f32 %v91, %v131
    %v210 = vsel %vm176, %v208, 0.0
    %v211 = vsel %vm176, %v209, 0.0
    %v212 = vadd.f32 %v210, %v211
    %v213 = vrot.slane %v212, 4
    %v214 = vadd.f32 %v212, %v213
    %v215 = vrot.slane %v214, 2
    %v216 = vadd.f32 %v214, %v215
    %v217 = vrot.slane %v216, 1
    %v218 = vadd.f32 %v216, %v217
    %v219 = vmul.f32 %v90, %v132
    %v220 = vmul.f32 %v91, %v133
    %v221 = vsel %vm176, %v219, 0.0
    %v222 = vsel %vm176, %v220, 0.0
    %v223 = vadd.f32 %v221, %v222
    %v224 = vrot.slane %v223, 4
    %v225 = vadd.f32 %v223, %v224
    %v226 = vrot.slane %v225, 2
    %v227 = vadd.f32 %v225, %v226
    %v228 = vrot.slane %v227, 1
    %v229 = vadd.f32 %v227, %v228
    %v230 = vmul.f32 %v90, %v134
    %v231 = vmul.f32 %v91, %v135
    %v232 = vsel %vm176, %v230, 0.0
    %v233 = vsel %vm176, %v231, 0.0
    %v234 = vadd.f32 %v232, %v233
    %v235 = vrot.slane %v234, 4
    %v236 = vadd.f32 %v234, %v235
    %v237 = vrot.slane %v236, 2
    %v238 = vadd.f32 %v236, %v237
    %v239 = vrot.slane %v238, 1
    %v240 = vadd.f32 %v238, %v239
    %v241 = vmul.f32 %v90, %v136
    %v242 = vmul.f32 %v91, %v137
    %v243 = vsel %vm176, %v241, 0.0
    %v244 = vsel %vm176, %v242, 0.0
    %v245 = vadd.f32 %v243, %v244
    %v246 = vrot.slane %v245, 4
    %v247 = vadd.f32 %v245, %v246
    %v248 = vrot.slane %v247, 2
    %v249 = vadd.f32 %v247, %v248
    %v250 = vrot.slane %v249, 1
    %v251 = vadd.f32 %v249, %v250
    %v252 = vmul.f32 %v90, %v138
    %v253 = vmul.f32 %v91, %v139
    %v254 = vsel %vm176, %v252, 0.0
    %v255 = vsel %vm176, %v253, 0.0
    %v256 = vadd.f32 %v254, %v255
    %v257 = vrot.slane %v256, 4
    %v258 = vadd.f32 %v256, %v257
    %v259 = vrot.slane %v258, 2
    %v260 = vadd.f32 %v258, %v259
    %v261 = vrot.slane %v260, 1
    %v262 = vadd.f32 %v260, %v261
    %v263 = vmax.f32 %v185, %v196
    %v264 = vmax.f32 %v263, %v207
    %v265 = vmax.f32 %v264, %v218
    %v266 = vmax.f32 %v265, %v229
    %v267 = vmax.f32 %v266, %v240
    %v268 = vmax.f32 %v267, %v251
    %v269 = vmax.f32 %v268, %v262
    %v270 = vsub.f32 %v185, %v269
    %v271 = vmul.f32 %v270, 1.442695
    %v272 = vpow.pop %v271
    %v273 = vsub.f32 %v196, %v269
    %v274 = vmul.f32 %v273, 1.442695
    %v275 = vpow.pop %v274
    %v276 = vsub.f32 %v207, %v269
    %v277 = vmul.f32 %v276, 1.442695
    %v278 = vpow.pop %v277
    %v279 = vsub.f32 %v218, %v269
    %v280 = vmul.f32 %v279, 1.442695
    %v281 = vpow.pop %v280
    %v282 = vsub.f32 %v229, %v269
    %v283 = vmul.f32 %v282, 1.442695
    %v284 = vpow.pop %v283
    %v285 = vsub.f32 %v240, %v269
    %v286 = vmul.f32 %v285, 1.442695
    %v287 = vpow.pop %v286
    %v288 = vsub.f32 %v251, %v269
    %v289 = vmul.f32 %v288, 1.442695
    %v290 = vpow.pop %v289
    %v291 = vsub.f32 %v262, %v269
    %v292 = vmul.f32 %v291, 1.442695
    %v293 = vpow.pop %v292
    %v294 = vadd.f32 %v272, %v275
    %v295 = vadd.f32 %v294, %v278
    %v296 = vadd.f32 %v295, %v281
    %v297 = vadd.f32 %v296, %v284
    %v298 = vadd.f32 %v297, %v287
    %v299 = vadd.f32 %v298, %v290
    %v300 = vadd.f32 %v299, %v293
    %v301 = vrcp.pop %v300
    %v302 = vmul.f32 %v272, %v158
    %v303 = vmul.f32 %v272, %v159
    %v304 = vmul.f32 %v275, %v160
    %v305 = vmul.f32 %v275, %v161
    %v306 = vadd.f32 %v302, %v304
    %v307 = vadd.f32 %v303, %v305
    %v308 = vmul.f32 %v278, %v162
    %v309 = vmul.f32 %v278, %v163
    %v310 = vadd.f32 %v306, %v308
    %v311 = vadd.f32 %v307, %v309
    %v312 = vmul.f32 %v281, %v164
    %v313 = vmul.f32 %v281, %v165
    %v314 = vadd.f32 %v310, %v312
    %v315 = vadd.f32 %v311, %v313
    %v316 = vmul.f32 %v284, %v166
    %v317 = vmul.f32 %v284, %v167
    %v318 = vadd.f32 %v314, %v316
    %v319 = vadd.f32 %v315, %v317
    %v320 = vmul.f32 %v287, %v168
    %v321 = vmul.f32 %v287, %v169
    %v322 = vadd.f32 %v318, %v320
    %v323 = vadd.f32 %v319, %v321
    %v324 = vmul.f32 %v290, %v170
    %v325 = vmul.f32 %v290, %v171
    %v326 = vadd.f32 %v322, %v324
    %v327 = vadd.f32 %v323, %v325
    %v328 = vmul.f32 %v293, %v172
    %v329 = vmul.f32 %v293, %v173
    %v330 = vadd.f32 %v326, %v328
    %v331 = vadd.f32 %v327, %v329
    %v332 = vmul.f32 %v330, %v301
    %v333 = vmul.f32 %v331, %v301
    %v334 = vmul.f32 %v92, %v124
    %v335 = vmul.f32 %v93, %v125
    %v336 = vsel %vm176, %v334, 0.0
    %v337 = vsel %vm176, %v335, 0.0
    %v338 = vadd.f32 %v336, %v337
    %v339 = vrot.slane %v338, 4
    %v340 = vadd.f32 %v338, %v339
    %v341 = vrot.slane %v340, 2
    %v342 = vadd.f32 %v340, %v341
    %v343 = vrot.slane %v342, 1
    %v344 = vadd.f32 %v342, %v343
    %v345 = vmul.f32 %v92, %v126
    %v346 = vmul.f32 %v93, %v127
    %v347 = vsel %vm176, %v345, 0.0
    %v348 = vsel %vm176, %v346, 0.0
    %v349 = vadd.f32 %v347, %v348
    %v350 = vrot.slane %v349, 4
    %v351 = vadd.f32 %v349, %v350
    %v352 = vrot.slane %v351, 2
    %v353 = vadd.f32 %v351, %v352
    %v354 = vrot.slane %v353, 1
    %v355 = vadd.f32 %v353, %v354
    %v356 = vmul.f32 %v92, %v128
    %v357 = vmul.f32 %v93, %v129
    %v358 = vsel %vm176, %v356, 0.0
    %v359 = vsel %vm176, %v357, 0.0
    %v360 = vadd.f32 %v358, %v359
    %v361 = vrot.slane %v360, 4
    %v362 = vadd.f32 %v360, %v361
    %v363 = vrot.slane %v362, 2
    %v364 = vadd.f32 %v362, %v363
    %v365 = vrot.slane %v364, 1
    %v366 = vadd.f32 %v364, %v365
    %v367 = vmul.f32 %v92, %v130
    %v368 = vmul.f32 %v93, %v131
    %v369 = vsel %vm176, %v367, 0.0
    %v370 = vsel %vm176, %v368, 0.0
    %v371 = vadd.f32 %v369, %v370
    %v372 = vrot.slane %v371, 4
    %v373 = vadd.f32 %v371, %v372
    %v374 = vrot.slane %v373, 2
    %v375 = vadd.f32 %v373, %v374
    %v376 = vrot.slane %v375, 1
    %v377 = vadd.f32 %v375, %v376
    %v378 = vmul.f32 %v92, %v132
    %v379 = vmul.f32 %v93, %v133
    %v380 = vsel %vm176, %v378, 0.0
    %v381 = vsel %vm176, %v379, 0.0
    %v382 = vadd.f32 %v380, %v381
    %v383 = vrot.slane %v382, 4
    %v384 = vadd.f32 %v382, %v383
    %v385 = vrot.slane %v384, 2
    %v386 = vadd.f32 %v384, %v385
    %v387 = vrot.slane %v386, 1
    %v388 = vadd.f32 %v386, %v387
    %v389 = vmul.f32 %v92, %v134
    %v390 = vmul.f32 %v93, %v135
    %v391 = vsel %vm176, %v389, 0.0
    %v392 = vsel %vm176, %v390, 0.0
    %v393 = vadd.f32 %v391, %v392
    %v394 = vrot.slane %v393, 4
    %v395 = vadd.f32 %v393, %v394
    %v396 = vrot.slane %v395, 2
    %v397 = vadd.f32 %v395, %v396
    %v398 = vrot.slane %v397, 1
    %v399 = vadd.f32 %v397, %v398
    %v400 = vmul.f32 %v92, %v136
    %v401 = vmul.f32 %v93, %v137
    %v402 = vsel %vm176, %v400, 0.0
    %v403 = vsel %vm176, %v401, 0.0
    %v404 = vadd.f32 %v402, %v403
    %v405 = vrot.slane %v404, 4
    %v406 = vadd.f32 %v404, %v405
    %v407 = vrot.slane %v406, 2
    %v408 = vadd.f32 %v406, %v407
    %v409 = vrot.slane %v408, 1
    %v410 = vadd.f32 %v408, %v409
    %v411 = vmul.f32 %v92, %v138
    %v412 = vmul.f32 %v93, %v139
    %v413 = vsel %vm176, %v411, 0.0
    %v414 = vsel %vm176, %v412, 0.0
    %v415 = vadd.f32 %v413, %v414
    %v416 = vrot.slane %v415, 4
    %v417 = vadd.f32 %v415, %v416
    %v418 = vrot.slane %v417, 2
    %v419 = vadd.f32 %v417, %v418
    %v420 = vrot.slane %v419, 1
    %v421 = vadd.f32 %v419, %v420
    %v422 = vmax.f32 %v344, %v355
    %v423 = vmax.f32 %v422, %v366
    %v424 = vmax.f32 %v423, %v377
    %v425 = vmax.f32 %v424, %v388
    %v426 = vmax.f32 %v425, %v399
    %v427 = vmax.f32 %v426, %v410
    %v428 = vmax.f32 %v427, %v421
    %v429 = vsub.f32 %v344, %v428
    %v430 = vmul.f32 %v429, 1.442695
    %v431 = vpow.pop %v430
    %v432 = vsub.f32 %v355, %v428
    %v433 = vmul.f32 %v432, 1.442695
    %v434 = vpow.pop %v433
    %v435 = vsub.f32 %v366, %v428
    %v436 = vmul.f32 %v435, 1.442695
    %v437 = vpow.pop %v436
    %v438 = vsub.f32 %v377, %v428
    %v439 = vmul.f32 %v438, 1.442695
    %v440 = vpow.pop %v439
    %v441 = vsub.f32 %v388, %v428
    %v442 = vmul.f32 %v441, 1.442695
    %v443 = vpow.pop %v442
    %v444 = vsub.f32 %v399, %v428
    %v445 = vmul.f32 %v444, 1.442695
    %v446 = vpow.pop %v445
    %v447 = vsub.f32 %v410, %v428
    %v448 = vmul.f32 %v447, 1.442695
    %v449 = vpow.pop %v448
    %v450 = vsub.f32 %v421, %v428
    %v451 = vmul.f32 %v450, 1.442695
    %v452 = vpow.pop %v451
    %v453 = vadd.f32 %v431, %v434
    %v454 = vadd.f32 %v453, %v437
    %v455 = vadd.f32 %v454, %v440
    %v456 = vadd.f32 %v455, %v443
    %v457 = vadd.f32 %v456, %v446
    %v458 = vadd.f32 %v457, %v449
    %v459 = vadd.f32 %v458, %v452
    %v460 = vrcp.pop %v459
    %v461 = vmul.f32 %v431, %v158
    %v462 = vmul.f32 %v431, %v159
    %v463 = vmul.f32 %v434, %v160
    %v464 = vmul.f32 %v434, %v161
    %v465 = vadd.f32 %v461, %v463
    %v466 = vadd.f32 %v462, %v464
    %v467 = vmul.f32 %v437, %v162
    %v468 = vmul.f32 %v437, %v163
    %v469 = vadd.f32 %v465, %v467
    %v470 = vadd.f32 %v466, %v468
    %v471 = vmul.f32 %v440, %v164
    %v472 = vmul.f32 %v440, %v165
    %v473 = vadd.f32 %v469, %v471
    %v474 = vadd.f32 %v470, %v472
    %v475 = vmul.f32 %v443, %v166
    %v476 = vmul.f32 %v443, %v167
    %v477 = vadd.f32 %v473, %v475
    %v478 = vadd.f32 %v474, %v476
    %v479 = vmul.f32 %v446, %v168
    %v480 = vmul.f32 %v446, %v169
    %v481 = vadd.f32 %v477, %v479
    %v482 = vadd.f32 %v478, %v480
    %v483 = vmul.f32 %v449, %v170
    %v484 = vmul.f32 %v449, %v171
    %v485 = vadd.f32 %v481, %v483
    %v486 = vadd.f32 %v482, %v484
    %v487 = vmul.f32 %v452, %v172
    %v488 = vmul.f32 %v452, %v173
    %v489 = vadd.f32 %v485, %v487
    %v490 = vadd.f32 %v486, %v488
    %v491 = vmul.f32 %v489, %v460
    %v492 = vmul.f32 %v490, %v460
    %v493 = vmul.f32 %v94, %v124
    %v494 = vmul.f32 %v95, %v125
    %v495 = vsel %vm176, %v493, 0.0
    %v496 = vsel %vm176, %v494, 0.0
    %v497 = vadd.f32 %v495, %v496
    %v498 = vrot.slane %v497, 4
    %v499 = vadd.f32 %v497, %v498
    %v500 = vrot.slane %v499, 2
    %v501 = vadd.f32 %v499, %v500
    %v502 = vrot.slane %v501, 1
    %v503 = vadd.f32 %v501, %v502
    %v504 = vmul.f32 %v94, %v126
    %v505 = vmul.f32 %v95, %v127
    %v506 = vsel %vm176, %v504, 0.0
    %v507 = vsel %vm176, %v505, 0.0
    %v508 = vadd.f32 %v506, %v507
    %v509 = vrot.slane %v508, 4
    %v510 = vadd.f32 %v508, %v509
    %v511 = vrot.slane %v510, 2
    %v512 = vadd.f32 %v510, %v511
    %v513 = vrot.slane %v512, 1
    %v514 = vadd.f32 %v512, %v513
    %v515 = vmul.f32 %v94, %v128
    %v516 = vmul.f32 %v95, %v129
    %v517 = vsel %vm176, %v515, 0.0
    %v518 = vsel %vm176, %v516, 0.0
    %v519 = vadd.f32 %v517, %v518
    %v520 = vrot.slane %v519, 4
    %v521 = vadd.f32 %v519, %v520
    %v522 = vrot.slane %v521, 2
    %v523 = vadd.f32 %v521, %v522
    %v524 = vrot.slane %v523, 1
    %v525 = vadd.f32 %v523, %v524
    %v526 = vmul.f32 %v94, %v130
    %v527 = vmul.f32 %v95, %v131
    %v528 = vsel %vm176, %v526, 0.0
    %v529 = vsel %vm176, %v527, 0.0
    %v530 = vadd.f32 %v528, %v529
    %v531 = vrot.slane %v530, 4
    %v532 = vadd.f32 %v530, %v531
    %v533 = vrot.slane %v532, 2
    %v534 = vadd.f32 %v532, %v533
    %v535 = vrot.slane %v534, 1
    %v536 = vadd.f32 %v534, %v535
    %v537 = vmul.f32 %v94, %v132
    %v538 = vmul.f32 %v95, %v133
    %v539 = vsel %vm176, %v537, 0.0
    %v540 = vsel %vm176, %v538, 0.0
    %v541 = vadd.f32 %v539, %v540
    %v542 = vrot.slane %v541, 4
    %v543 = vadd.f32 %v541, %v542
    %v544 = vrot.slane %v543, 2
    %v545 = vadd.f32 %v543, %v544
    %v546 = vrot.slane %v545, 1
    %v547 = vadd.f32 %v545, %v546
    %v548 = vmul.f32 %v94, %v134
    %v549 = vmul.f32 %v95, %v135
    %v550 = vsel %vm176, %v548, 0.0
    %v551 = vsel %vm176, %v549, 0.0
    %v552 = vadd.f32 %v550, %v551
    %v553 = vrot.slane %v552, 4
    %v554 = vadd.f32 %v552, %v553
    %v555 = vrot.slane %v554, 2
    %v556 = vadd.f32 %v554, %v555
    %v557 = vrot.slane %v556, 1
    %v558 = vadd.f32 %v556, %v557
    %v559 = vmul.f32 %v94, %v136
    %v560 = vmul.f32 %v95, %v137
    %v561 = vsel %vm176, %v559, 0.0
    %v562 = vsel %vm176, %v560, 0.0
    %v563 = vadd.f32 %v561, %v562
    %v564 = vrot.slane %v563, 4
    %v565 = vadd.f32 %v563, %v564
    %v566 = vrot.slane %v565, 2
    %v567 = vadd.f32 %v565, %v566
    %v568 = vrot.slane %v567, 1
    %v569 = vadd.f32 %v567, %v568
    %v570 = vmul.f32 %v94, %v138
    %v571 = vmul.f32 %v95, %v139
    %v572 = vsel %vm176, %v570, 0.0
    %v573 = vsel %vm176, %v571, 0.0
    %v574 = vadd.f32 %v572, %v573
    %v575 = vrot.slane %v574, 4
    %v576 = vadd.f32 %v574, %v575
    %v577 = vrot.slane %v576, 2
    %v578 = vadd.f32 %v576, %v577
    %v579 = vrot.slane %v578, 1
    %v580 = vadd.f32 %v578, %v579
    %v581 = vmax.f32 %v503, %v514
    %v582 = vmax.f32 %v581, %v525
    %v583 = vmax.f32 %v582, %v536
    %v584 = vmax.f32 %v583, %v547
    %v585 = vmax.f32 %v584, %v558
    %v586 = vmax.f32 %v585, %v569
    %v587 = vmax.f32 %v586, %v580
    %v588 = vsub.f32 %v503, %v587
    %v589 = vmul.f32 %v588, 1.442695
    %v590 = vpow.pop %v589
    %v591 = vsub.f32 %v514, %v587
    %v592 = vmul.f32 %v591, 1.442695
    %v593 = vpow.pop %v592
    %v594 = vsub.f32 %v525, %v587
    %v595 = vmul.f32 %v594, 1.442695
    %v596 = vpow.pop %v595
    %v597 = vsub.f32 %v536, %v587
    %v598 = vmul.f32 %v597, 1.442695
    %v599 = vpow.pop %v598
    %v600 = vsub.f32 %v547, %v587
    %v601 = vmul.f32 %v600, 1.442695
    %v602 = vpow.pop %v601
    %v603 = vsub.f32 %v558, %v587
    %v604 = vmul.f32 %v603, 1.442695
    %v605 = vpow.pop %v604
    %v606 = vsub.f32 %v569, %v587
    %v607 = vmul.f32 %v606, 1.442695
    %v608 = vpow.pop %v607
    %v609 = vsub.f32 %v580, %v587
    %v610 = vmul.f32 %v609, 1.442695
    %v611 = vpow.pop %v610
    %v612 = vadd.f32 %v590, %v593
    %v613 = vadd.f32 %v612, %v596
    %v614 = vadd.f32 %v613, %v599
    %v615 = vadd.f32 %v614, %v602
    %v616 = vadd.f32 %v615, %v605
    %v617 = vadd.f32 %v616, %v608
    %v618 = vadd.f32 %v617, %v611
    %v619 = vrcp.pop %v618
    %v620 = vmul.f32 %v590, %v158
    %v621 = vmul.f32 %v590, %v159
    %v622 = vmul.f32 %v593, %v160
    %v623 = vmul.f32 %v593, %v161
    %v624 = vadd.f32 %v620, %v622
    %v625 = vadd.f32 %v621, %v623
    %v626 = vmul.f32 %v596, %v162
    %v627 = vmul.f32 %v596, %v163
    %v628 = vadd.f32 %v624, %v626
    %v629 = vadd.f32 %v625, %v627
    %v630 = vmul.f32 %v599, %v164
    %v631 = vmul.f32 %v599, %v165
    %v632 = vadd.f32 %v628, %v630
    %v633 = vadd.f32 %v629, %v631
    %v634 = vmul.f32 %v602, %v166
    %v635 = vmul.f32 %v602, %v167
    %v636 = vadd.f32 %v632, %v634
    %v637 = vadd.f32 %v633, %v635
    %v638 = vmul.f32 %v605, %v168
    %v639 = vmul.f32 %v605, %v169
    %v640 = vadd.f32 %v636, %v638
    %v641 = vadd.f32 %v637, %v639
    %v642 = vmul.f32 %v608, %v170
    %v643 = vmul.f32 %v608, %v171
    %v644 = vadd.f32 %v640, %v642
    %v645 = vadd.f32 %v641, %v643
    %v646 = vmul.f32 %v611, %v172
    %v647 = vmul.f32 %v611, %v173
    %v648 = vadd.f32 %v644, %v646
    %v649 = vadd.f32 %v645, %v647
    %v650 = vmul.f32 %v648, %v619
    %v651 = vmul.f32 %v649, %v619
    %v652 = vmul.f32 %v96, %v124
    %v653 = vmul.f32 %v97, %v125
    %v654 = vsel %vm176, %v652, 0.0
    %v655 = vsel %vm176, %v653, 0.0
    %v656 = vadd.f32 %v654, %v655
    %v657 = vrot.slane %v656, 4
    %v658 = vadd.f32 %v656, %v657
    %v659 = vrot.slane %v658, 2
    %v660 = vadd.f32 %v658, %v659
    %v661 = vrot.slane %v660, 1
    %v662 = vadd.f32 %v660, %v661
    %v663 = vmul.f32 %v96, %v126
    %v664 = vmul.f32 %v97, %v127
    %v665 = vsel %vm176, %v663, 0.0
    %v666 = vsel %vm176, %v664, 0.0
    %v667 = vadd.f32 %v665, %v666
    %v668 = vrot.slane %v667, 4
    %v669 = vadd.f32 %v667, %v668
    %v670 = vrot.slane %v669, 2
    %v671 = vadd.f32 %v669, %v670
    %v672 = vrot.slane %v671, 1
    %v673 = vadd.f32 %v671, %v672
    %v674 = vmul.f32 %v96, %v128
    %v675 = vmul.f32 %v97, %v129
    %v676 = vsel %vm176, %v674, 0.0
    %v677 = vsel %vm176, %v675, 0.0
    %v678 = vadd.f32 %v676, %v677
    %v679 = vrot.slane %v678, 4
    %v680 = vadd.f32 %v678, %v679
    %v681 = vrot.slane %v680, 2
    %v682 = vadd.f32 %v680, %v681
    %v683 = vrot.slane %v682, 1
    %v684 = vadd.f32 %v682, %v683
    %v685 = vmul.f32 %v96, %v130
    %v686 = vmul.f32 %v97, %v131
    %v687 = vsel %vm176, %v685, 0.0
    %v688 = vsel %vm176, %v686, 0.0
    %v689 = vadd.f32 %v687, %v688
    %v690 = vrot.slane %v689, 4
    %v691 = vadd.f32 %v689, %v690
    %v692 = vrot.slane %v691, 2
    %v693 = vadd.f32 %v691, %v692
    %v694 = vrot.slane %v693, 1
    %v695 = vadd.f32 %v693, %v694
    %v696 = vmul.f32 %v96, %v132
    %v697 = vmul.f32 %v97, %v133
    %v698 = vsel %vm176, %v696, 0.0
    %v699 = vsel %vm176, %v697, 0.0
    %v700 = vadd.f32 %v698, %v699
    %v701 = vrot.slane %v700, 4
    %v702 = vadd.f32 %v700, %v701
    %v703 = vrot.slane %v702, 2
    %v704 = vadd.f32 %v702, %v703
    %v705 = vrot.slane %v704, 1
    %v706 = vadd.f32 %v704, %v705
    %v707 = vmul.f32 %v96, %v134
    %v708 = vmul.f32 %v97, %v135
    %v709 = vsel %vm176, %v707, 0.0
    %v710 = vsel %vm176, %v708, 0.0
    %v711 = vadd.f32 %v709, %v710
    %v712 = vrot.slane %v711, 4
    %v713 = vadd.f32 %v711, %v712
    %v714 = vrot.slane %v713, 2
    %v715 = vadd.f32 %v713, %v714
    %v716 = vrot.slane %v715, 1
    %v717 = vadd.f32 %v715, %v716
    %v718 = vmul.f32 %v96, %v136
    %v719 = vmul.f32 %v97, %v137
    %v720 = vsel %vm176, %v718, 0.0
    %v721 = vsel %vm176, %v719, 0.0
    %v722 = vadd.f32 %v720, %v721
    %v723 = vrot.slane %v722, 4
    %v724 = vadd.f32 %v722, %v723
    %v725 = vrot.slane %v724, 2
    %v726 = vadd.f32 %v724, %v725
    %v727 = vrot.slane %v726, 1
    %v728 = vadd.f32 %v726, %v727
    %v729 = vmul.f32 %v96, %v138
    %v730 = vmul.f32 %v97, %v139
    %v731 = vsel %vm176, %v729, 0.0
    %v732 = vsel %vm176, %v730, 0.0
    %v733 = vadd.f32 %v731, %v732
    %v734 = vrot.slane %v733, 4
    %v735 = vadd.f32 %v733, %v734
    %v736 = vrot.slane %v735, 2
    %v737 = vadd.f32 %v735, %v736
    %v738 = vrot.slane %v737, 1
    %v739 = vadd.f32 %v737, %v738
    %v740 = vmax.f32 %v662, %v673
    %v741 = vmax.f32 %v740, %v684
    %v742 = vmax.f32 %v741, %v695
    %v743 = vmax.f32 %v742, %v706
    %v744 = vmax.f32 %v743, %v717
    %v745 = vmax.f32 %v744, %v728
    %v746 = vmax.f32 %v745, %v739
    %v747 = vsub.f32 %v662, %v746
    %v748 = vmul.f32 %v747, 1.442695
    %v749 = vpow.pop %v748
    %v750 = vsub.f32 %v673, %v746
    %v751 = vmul.f32 %v750, 1.442695
    %v752 = vpow.pop %v751
    %v753 = vsub.f32 %v684, %v746
    %v754 = vmul.f32 %v753, 1.442695
    %v755 = vpow.pop %v754
    %v756 = vsub.f32 %v695, %v746
    %v757 = vmul.f32 %v756, 1.442695
    %v758 = vpow.pop %v757
    %v759 = vsub.f32 %v706, %v746
    %v760 = vmul.f32 %v759, 1.442695
    %v761 = vpow.pop %v760
    %v762 = vsub.f32 %v717, %v746
    %v763 = vmul.f32 %v762, 1.442695
    %v764 = vpow.pop %v763
    %v765 = vsub.f32 %v728, %v746
    %v766 = vmul.f32 %v765, 1.442695
    %v767 = vpow.pop %v766
    %v768 = vsub.f32 %v739, %v746
    %v769 = vmul.f32 %v768, 1.442695
    %v770 = vpow.pop %v769
    %v771 = vadd.f32 %v749, %v752
    %v772 = vadd.f32 %v771, %v755
    %v773 = vadd.f32 %v772, %v758
    %v774 = vadd.f32 %v773, %v761
    %v775 = vadd.f32 %v774, %v764
    %v776 = vadd.f32 %v775, %v767
    %v777 = vadd.f32 %v776, %v770
    %v778 = vrcp.pop %v777
    %v779 = vmul.f32 %v749, %v158
    %v780 = vmul.f32 %v749, %v159
    %v781 = vmul.f32 %v752, %v160
    %v782 = vmul.f32 %v752, %v161
    %v783 = vadd.f32 %v779, %v781
    %v784 = vadd.f32 %v780, %v782
    %v785 = vmul.f32 %v755, %v162
    %v786 = vmul.f32 %v755, %v163
    %v787 = vadd.f32 %v783, %v785
    %v788 = vadd.f32 %v784, %v786
    %v789 = vmul.f32 %v758, %v164
    %v790 = vmul.f32 %v758, %v165
    %v791 = vadd.f32 %v787, %v789
    %v792 = vadd.f32 %v788, %v790
    %v793 = vmul.f32 %v761, %v166
    %v794 = vmul.f32 %v761, %v167
    %v795 = vadd.f32 %v791, %v793
    %v796 = vadd.f32 %v792, %v794
    %v797 = vmul.f32 %v764, %v168
    %v798 = vmul.f32 %v764, %v169
    %v799 = vadd.f32 %v795, %v797
    %v800 = vadd.f32 %v796, %v798
    %v801 = vmul.f32 %v767, %v170
    %v802 = vmul.f32 %v767, %v171
    %v803 = vadd.f32 %v799, %v801
    %v804 = vadd.f32 %v800, %v802
    %v805 = vmul.f32 %v770, %v172
    %v806 = vmul.f32 %v770, %v173
    %v807 = vadd.f32 %v803, %v805
    %v808 = vadd.f32 %v804, %v806
    %v809 = vmul.f32 %v807, %v778
    %v810 = vmul.f32 %v808, %v778
    %v811 = vmul.f32 %v98, %v124
    %v812 = vmul.f32 %v99, %v125
    %v813 = vsel %vm176, %v811, 0.0
    %v814 = vsel %vm176, %v812, 0.0
    %v815 = vadd.f32 %v813, %v814
    %v816 = vrot.slane %v815, 4
    %v817 = vadd.f32 %v815, %v816
    %v818 = vrot.slane %v817, 2
    %v819 = vadd.f32 %v817, %v818
    %v820 = vrot.slane %v819, 1
    %v821 = vadd.f32 %v819, %v820
    %v822 = vmul.f32 %v98, %v126
    %v823 = vmul.f32 %v99, %v127
    %v824 = vsel %vm176, %v822, 0.0
    %v825 = vsel %vm176, %v823, 0.0
    %v826 = vadd.f32 %v824, %v825
    %v827 = vrot.slane %v826, 4
    %v828 = vadd.f32 %v826, %v827
    %v829 = vrot.slane %v828, 2
    %v830 = vadd.f32 %v828, %v829
    %v831 = vrot.slane %v830, 1
    %v832 = vadd.f32 %v830, %v831
    %v833 = vmul.f32 %v98, %v128
    %v834 = vmul.f32 %v99, %v129
    %v835 = vsel %vm176, %v833, 0.0
    %v836 = vsel %vm176, %v834, 0.0
    %v837 = vadd.f32 %v835, %v836
    %v838 = vrot.slane %v837, 4
    %v839 = vadd.f32 %v837, %v838
    %v840 = vrot.slane %v839, 2
    %v841 = vadd.f32 %v839, %v840
    %v842 = vrot.slane %v841, 1
    %v843 = vadd.f32 %v841, %v842
    %v844 = vmul.f32 %v98, %v130
    %v845 = vmul.f32 %v99, %v131
    %v846 = vsel %vm176, %v844, 0.0
    %v847 = vsel %vm176, %v845, 0.0
    %v848 = vadd.f32 %v846, %v847
    %v849 = vrot.slane %v848, 4
    %v850 = vadd.f32 %v848, %v849
    %v851 = vrot.slane %v850, 2
    %v852 = vadd.f32 %v850, %v851
    %v853 = vrot.slane %v852, 1
    %v854 = vadd.f32 %v852, %v853
    %v855 = vmul.f32 %v98, %v132
    %v856 = vmul.f32 %v99, %v133
    %v857 = vsel %vm176, %v855, 0.0
    %v858 = vsel %vm176, %v856, 0.0
    %v859 = vadd.f32 %v857, %v858
    %v860 = vrot.slane %v859, 4
    %v861 = vadd.f32 %v859, %v860
    %v862 = vrot.slane %v861, 2
    %v863 = vadd.f32 %v861, %v862
    %v864 = vrot.slane %v863, 1
    %v865 = vadd.f32 %v863, %v864
    %v866 = vmul.f32 %v98, %v134
    %v867 = vmul.f32 %v99, %v135
    %v868 = vsel %vm176, %v866, 0.0
    %v869 = vsel %vm176, %v867, 0.0
    %v870 = vadd.f32 %v868, %v869
    %v871 = vrot.slane %v870, 4
    %v872 = vadd.f32 %v870, %v871
    %v873 = vrot.slane %v872, 2
    %v874 = vadd.f32 %v872, %v873
    %v875 = vrot.slane %v874, 1
    %v876 = vadd.f32 %v874, %v875
    %v877 = vmul.f32 %v98, %v136
    %v878 = vmul.f32 %v99, %v137
    %v879 = vsel %vm176, %v877, 0.0
    %v880 = vsel %vm176, %v878, 0.0
    %v881 = vadd.f32 %v879, %v880
    %v882 = vrot.slane %v881, 4
    %v883 = vadd.f32 %v881, %v882
    %v884 = vrot.slane %v883, 2
    %v885 = vadd.f32 %v883, %v884
    %v886 = vrot.slane %v885, 1
    %v887 = vadd.f32 %v885, %v886
    %v888 = vmul.f32 %v98, %v138
    %v889 = vmul.f32 %v99, %v139
    %v890 = vsel %vm176, %v888, 0.0
    %v891 = vsel %vm176, %v889, 0.0
    %v892 = vadd.f32 %v890, %v891
    %v893 = vrot.slane %v892, 4
    %v894 = vadd.f32 %v892, %v893
    %v895 = vrot.slane %v894, 2
    %v896 = vadd.f32 %v894, %v895
    %v897 = vrot.slane %v896, 1
    %v898 = vadd.f32 %v896, %v897
    %v899 = vmax.f32 %v821, %v832
    %v900 = vmax.f32 %v899, %v843
    %v901 = vmax.f32 %v900, %v854
    %v902 = vmax.f32 %v901, %v865
    %v903 = vmax.f32 %v902, %v876
    %v904 = vmax.f32 %v903, %v887
    %v905 = vmax.f32 %v904, %v898
    %v906 = vsub.f32 %v821, %v905
    %v907 = vmul.f32 %v906, 1.442695
    %v908 = vpow.pop %v907
    %v909 = vsub.f32 %v832, %v905
    %v910 = vmul.f32 %v909, 1.442695
    %v911 = vpow.pop %v910
    %v912 = vsub.f32 %v843, %v905
    %v913 = vmul.f32 %v912, 1.442695
    %v914 = vpow.pop %v913
    %v915 = vsub.f32 %v854, %v905
    %v916 = vmul.f32 %v915, 1.442695
    %v917 = vpow.pop %v916
    %v918 = vsub.f32 %v865, %v905
    %v919 = vmul.f32 %v918, 1.442695
    %v920 = vpow.pop %v919
    %v921 = vsub.f32 %v876, %v905
    %v922 = vmul.f32 %v921, 1.442695
    %v923 = vpow.pop %v922
    %v924 = vsub.f32 %v887, %v905
    %v925 = vmul.f32 %v924, 1.442695
    %v926 = vpow.pop %v925
    %v927 = vsub.f32 %v898, %v905
    %v928 = vmul.f32 %v927, 1.442695
    %v929 = vpow.pop %v928
    %v930 = vadd.f32 %v908, %v911
    %v931 = vadd.f32 %v930, %v914
    %v932 = vadd.f32 %v931, %v917
    %v933 = vadd.f32 %v932, %v920
    %v934 = vadd.f32 %v933, %v923
    %v935 = vadd.f32 %v934, %v926
    %v936 = vadd.f32 %v935, %v929
    %v937 = vrcp.pop %v936
    %v938 = vmul.f32 %v908, %v158
    %v939 = vmul.f32 %v908, %v159
    %v940 = vmul.f32 %v911, %v160
    %v941 = vmul.f32 %v911, %v161
    %v942 = vadd.f32 %v938, %v940
    %v943 = vadd.f32 %v939, %v941
    %v944 = vmul.f32 %v914, %v162
    %v945 = vmul.f32 %v914, %v163
    %v946 = vadd.f32 %v942, %v944
    %v947 = vadd.f32 %v943, %v945
    %v948 = vmul.f32 %v917, %v164
    %v949 = vmul.f32 %v917, %v165
    %v950 = vadd.f32 %v946, %v948
    %v951 = vadd.f32 %v947, %v949
    %v952 = vmul.f32 %v920, %v166
    %v953 = vmul.f32 %v920, %v167
    %v954 = vadd.f32 %v950, %v952
    %v955 = vadd.f32 %v951, %v953
    %v956 = vmul.f32 %v923, %v168
    %v957 = vmul.f32 %v923, %v169
    %v958 = vadd.f32 %v954, %v956
    %v959 = vadd.f32 %v955, %v957
    %v960 = vmul.f32 %v926, %v170
    %v961 = vmul.f32 %v926, %v171
    %v962 = vadd.f32 %v958, %v960
    %v963 = vadd.f32 %v959, %v961
    %v964 = vmul.f32 %v929, %v172
    %v965 = vmul.f32 %v929, %v173
    %v966 = vadd.f32 %v962, %v964
    %v967 = vadd.f32 %v963, %v965
    %v968 = vmul.f32 %v966, %v937
    %v969 = vmul.f32 %v967, %v937
    %v970 = vmul.f32 %v100, %v124
    %v971 = vmul.f32 %v101, %v125
    %v972 = vsel %vm176, %v970, 0.0
    %v973 = vsel %vm176, %v971, 0.0
    %v974 = vadd.f32 %v972, %v973
    %v975 = vrot.slane %v974, 4
    %v976 = vadd.f32 %v974, %v975
    %v977 = vrot.slane %v976, 2
    %v978 = vadd.f32 %v976, %v977
    %v979 = vrot.slane %v978, 1
    %v980 = vadd.f32 %v978, %v979
    %v981 = vmul.f32 %v100, %v126
    %v982 = vmul.f32 %v101, %v127
    %v983 = vsel %vm176, %v981, 0.0
    %v984 = vsel %vm176, %v982, 0.0
    %v985 = vadd.f32 %v983, %v984
    %v986 = vrot.slane %v985, 4
    %v987 = vadd.f32 %v985, %v986
    %v988 = vrot.slane %v987, 2
    %v989 = vadd.f32 %v987, %v988
    %v990 = vrot.slane %v989, 1
    %v991 = vadd.f32 %v989, %v990
    %v992 = vmul.f32 %v100, %v128
    %v993 = vmul.f32 %v101, %v129
    %v994 = vsel %vm176, %v992, 0.0
    %v995 = vsel %vm176, %v993, 0.0
    %v996 = vadd.f32 %v994, %v995
    %v997 = vrot.slane %v996, 4
    %v998 = vadd.f32 %v996, %v997
    %v999 = vrot.slane %v998, 2
    %v1000 = vadd.f32 %v998, %v999
    %v1001 = vrot.slane %v1000, 1
    %v1002 = vadd.f32 %v1000, %v1001
    %v1003 = vmul.f32 %v100, %v130
    %v1004 = vmul.f32 %v101, %v131
    %v1005 = vsel %vm176, %v1003, 0.0
    %v1006 = vsel %vm176, %v1004, 0.0
    %v1007 = vadd.f32 %v1005, %v1006
    %v1008 = vrot.slane %v1007, 4
    %v1009 = vadd.f32 %v1007, %v1008
    %v1010 = vrot.slane %v1009, 2
    %v1011 = vadd.f32 %v1009, %v1010
    %v1012 = vrot.slane %v1011, 1
    %v1013 = vadd.f32 %v1011, %v1012
    %v1014 = vmul.f32 %v100, %v132
    %v1015 = vmul.f32 %v101, %v133
    %v1016 = vsel %vm176, %v1014, 0.0
    %v1017 = vsel %vm176, %v1015, 0.0
    %v1018 = vadd.f32 %v1016, %v1017
    %v1019 = vrot.slane %v1018, 4
    %v1020 = vadd.f32 %v1018, %v1019
    %v1021 = vrot.slane %v1020, 2
    %v1022 = vadd.f32 %v1020, %v1021
    %v1023 = vrot.slane %v1022, 1
    %v1024 = vadd.f32 %v1022, %v1023
    %v1025 = vmul.f32 %v100, %v134
    %v1026 = vmul.f32 %v101, %v135
    %v1027 = vsel %vm176, %v1025, 0.0
    %v1028 = vsel %vm176, %v1026, 0.0
    %v1029 = vadd.f32 %v1027, %v1028
    %v1030 = vrot.slane %v1029, 4
    %v1031 = vadd.f32 %v1029, %v1030
    %v1032 = vrot.slane %v1031, 2
    %v1033 = vadd.f32 %v1031, %v1032
    %v1034 = vrot.slane %v1033, 1
    %v1035 = vadd.f32 %v1033, %v1034
    %v1036 = vmul.f32 %v100, %v136
    %v1037 = vmul.f32 %v101, %v137
    %v1038 = vsel %vm176, %v1036, 0.0
    %v1039 = vsel %vm176, %v1037, 0.0
    %v1040 = vadd.f32 %v1038, %v1039
    %v1041 = vrot.slane %v1040, 4
    %v1042 = vadd.f32 %v1040, %v1041
    %v1043 = vrot.slane %v1042, 2
    %v1044 = vadd.f32 %v1042, %v1043
    %v1045 = vrot.slane %v1044, 1
    %v1046 = vadd.f32 %v1044, %v1045
    %v1047 = vmul.f32 %v100, %v138
    %v1048 = vmul.f32 %v101, %v139
    %v1049 = vsel %vm176, %v1047, 0.0
    %v1050 = vsel %vm176, %v1048, 0.0
    %v1051 = vadd.f32 %v1049, %v1050
    %v1052 = vrot.slane %v1051, 4
    %v1053 = vadd.f32 %v1051, %v1052
    %v1054 = vrot.slane %v1053, 2
    %v1055 = vadd.f32 %v1053, %v1054
    %v1056 = vrot.slane %v1055, 1
    %v1057 = vadd.f32 %v1055, %v1056
    %v1058 = vmax.f32 %v980, %v991
    %v1059 = vmax.f32 %v1058, %v1002
    %v1060 = vmax.f32 %v1059, %v1013
    %v1061 = vmax.f32 %v1060, %v1024
    %v1062 = vmax.f32 %v1061, %v1035
    %v1063 = vmax.f32 %v1062, %v1046
    %v1064 = vmax.f32 %v1063, %v1057
    %v1065 = vsub.f32 %v980, %v1064
    %v1066 = vmul.f32 %v1065, 1.442695
    %v1067 = vpow.pop %v1066
    %v1068 = vsub.f32 %v991, %v1064
    %v1069 = vmul.f32 %v1068, 1.442695
    %v1070 = vpow.pop %v1069
    %v1071 = vsub.f32 %v1002, %v1064
    %v1072 = vmul.f32 %v1071, 1.442695
    %v1073 = vpow.pop %v1072
    %v1074 = vsub.f32 %v1013, %v1064
    %v1075 = vmul.f32 %v1074, 1.442695
    %v1076 = vpow.pop %v1075
    %v1077 = vsub.f32 %v1024, %v1064
    %v1078 = vmul.f32 %v1077, 1.442695
    %v1079 = vpow.pop %v1078
    %v1080 = vsub.f32 %v1035, %v1064
    %v1081 = vmul.f32 %v1080, 1.442695
    %v1082 = vpow.pop %v1081
    %v1083 = vsub.f32 %v1046, %v1064
    %v1084 = vmul.f32 %v1083, 1.442695
    %v1085 = vpow.pop %v1084
    %v1086 = vsub.f32 %v1057, %v1064
    %v1087 = vmul.f32 %v1086, 1.442695
    %v1088 = vpow.pop %v1087
    %v1089 = vadd.f32 %v1067, %v1070
    %v1090 = vadd.f32 %v1089, %v1073
    %v1091 = vadd.f32 %v1090, %v1076
    %v1092 = vadd.f32 %v1091, %v1079
    %v1093 = vadd.f32 %v1092, %v1082
    %v1094 = vadd.f32 %v1093, %v1085
    %v1095 = vadd.f32 %v1094, %v1088
    %v1096 = vrcp.pop %v1095
    %v1097 = vmul.f32 %v1067, %v158
    %v1098 = vmul.f32 %v1067, %v159
    %v1099 = vmul.f32 %v1070, %v160
    %v1100 = vmul.f32 %v1070, %v161
    %v1101 = vadd.f32 %v1097, %v1099
    %v1102 = vadd.f32 %v1098, %v1100
    %v1103 = vmul.f32 %v1073, %v162
    %v1104 = vmul.f32 %v1073, %v163
    %v1105 = vadd.f32 %v1101, %v1103
    %v1106 = vadd.f32 %v1102, %v1104
    %v1107 = vmul.f32 %v1076, %v164
    %v1108 = vmul.f32 %v1076, %v165
    %v1109 = vadd.f32 %v1105, %v1107
    %v1110 = vadd.f32 %v1106, %v1108
    %v1111 = vmul.f32 %v1079, %v166
    %v1112 = vmul.f32 %v1079, %v167
    %v1113 = vadd.f32 %v1109, %v1111
    %v1114 = vadd.f32 %v1110, %v1112
    %v1115 = vmul.f32 %v1082, %v168
    %v1116 = vmul.f32 %v1082, %v169
    %v1117 = vadd.f32 %v1113, %v1115
    %v1118 = vadd.f32 %v1114, %v1116
    %v1119 = vmul.f32 %v1085, %v170
    %v1120 = vmul.f32 %v1085, %v171
    %v1121 = vadd.f32 %v1117, %v1119
    %v1122 = vadd.f32 %v1118, %v1120
    %v1123 = vmul.f32 %v1088, %v172
    %v1124 = vmul.f32 %v1088, %v173
    %v1125 = vadd.f32 %v1121, %v1123
    %v1126 = vadd.f32 %v1122, %v1124
    %v1127 = vmul.f32 %v1125, %v1096
    %v1128 = vmul.f32 %v1126, %v1096
    %v1129 = vmul.f32 %v102, %v124
    %v1130 = vmul.f32 %v103, %v125
    %v1131 = vsel %vm176, %v1129, 0.0
    %v1132 = vsel %vm176, %v1130, 0.0
    %v1133 = vadd.f32 %v1131, %v1132
    %v1134 = vrot.slane %v1133, 4
    %v1135 = vadd.f32 %v1133, %v1134
    %v1136 = vrot.slane %v1135, 2
    %v1137 = vadd.f32 %v1135, %v1136
    %v1138 = vrot.slane %v1137, 1
    %v1139 = vadd.f32 %v1137, %v1138
    %v1140 = vmul.f32 %v102, %v126
    %v1141 = vmul.f32 %v103, %v127
    %v1142 = vsel %vm176, %v1140, 0.0
    %v1143 = vsel %vm176, %v1141, 0.0
    %v1144 = vadd.f32 %v1142, %v1143
    %v1145 = vrot.slane %v1144, 4
    %v1146 = vadd.f32 %v1144, %v1145
    %v1147 = vrot.slane %v1146, 2
    %v1148 = vadd.f32 %v1146, %v1147
    %v1149 = vrot.slane %v1148, 1
    %v1150 = vadd.f32 %v1148, %v1149
    %v1151 = vmul.f32 %v102, %v128
    %v1152 = vmul.f32 %v103, %v129
    %v1153 = vsel %vm176, %v1151, 0.0
    %v1154 = vsel %vm176, %v1152, 0.0
    %v1155 = vadd.f32 %v1153, %v1154
    %v1156 = vrot.slane %v1155, 4
    %v1157 = vadd.f32 %v1155, %v1156
    %v1158 = vrot.slane %v1157, 2
    %v1159 = vadd.f32 %v1157, %v1158
    %v1160 = vrot.slane %v1159, 1
    %v1161 = vadd.f32 %v1159, %v1160
    %v1162 = vmul.f32 %v102, %v130
    %v1163 = vmul.f32 %v103, %v131
    %v1164 = vsel %vm176, %v1162, 0.0
    %v1165 = vsel %vm176, %v1163, 0.0
    %v1166 = vadd.f32 %v1164, %v1165
    %v1167 = vrot.slane %v1166, 4
    %v1168 = vadd.f32 %v1166, %v1167
    %v1169 = vrot.slane %v1168, 2
    %v1170 = vadd.f32 %v1168, %v1169
    %v1171 = vrot.slane %v1170, 1
    %v1172 = vadd.f32 %v1170, %v1171
    %v1173 = vmul.f32 %v102, %v132
    %v1174 = vmul.f32 %v103, %v133
    %v1175 = vsel %vm176, %v1173, 0.0
    %v1176 = vsel %vm176, %v1174, 0.0
    %v1177 = vadd.f32 %v1175, %v1176
    %v1178 = vrot.slane %v1177, 4
    %v1179 = vadd.f32 %v1177, %v1178
    %v1180 = vrot.slane %v1179, 2
    %v1181 = vadd.f32 %v1179, %v1180
    %v1182 = vrot.slane %v1181, 1
    %v1183 = vadd.f32 %v1181, %v1182
    %v1184 = vmul.f32 %v102, %v134
    %v1185 = vmul.f32 %v103, %v135
    %v1186 = vsel %vm176, %v1184, 0.0
    %v1187 = vsel %vm176, %v1185, 0.0
    %v1188 = vadd.f32 %v1186, %v1187
    %v1189 = vrot.slane %v1188, 4
    %v1190 = vadd.f32 %v1188, %v1189
    %v1191 = vrot.slane %v1190, 2
    %v1192 = vadd.f32 %v1190, %v1191
    %v1193 = vrot.slane %v1192, 1
    %v1194 = vadd.f32 %v1192, %v1193
    %v1195 = vmul.f32 %v102, %v136
    %v1196 = vmul.f32 %v103, %v137
    %v1197 = vsel %vm176, %v1195, 0.0
    %v1198 = vsel %vm176, %v1196, 0.0
    %v1199 = vadd.f32 %v1197, %v1198
    %v1200 = vrot.slane %v1199, 4
    %v1201 = vadd.f32 %v1199, %v1200
    %v1202 = vrot.slane %v1201, 2
    %v1203 = vadd.f32 %v1201, %v1202
    %v1204 = vrot.slane %v1203, 1
    %v1205 = vadd.f32 %v1203, %v1204
    %v1206 = vmul.f32 %v102, %v138
    %v1207 = vmul.f32 %v103, %v139
    %v1208 = vsel %vm176, %v1206, 0.0
    %v1209 = vsel %vm176, %v1207, 0.0
    %v1210 = vadd.f32 %v1208, %v1209
    %v1211 = vrot.slane %v1210, 4
    %v1212 = vadd.f32 %v1210, %v1211
    %v1213 = vrot.slane %v1212, 2
    %v1214 = vadd.f32 %v1212, %v1213
    %v1215 = vrot.slane %v1214, 1
    %v1216 = vadd.f32 %v1214, %v1215
    %v1217 = vmax.f32 %v1139, %v1150
    %v1218 = vmax.f32 %v1217, %v1161
    %v1219 = vmax.f32 %v1218, %v1172
    %v1220 = vmax.f32 %v1219, %v1183
    %v1221 = vmax.f32 %v1220, %v1194
    %v1222 = vmax.f32 %v1221, %v1205
    %v1223 = vmax.f32 %v1222, %v1216
    %v1224 = vsub.f32 %v1139, %v1223
    %v1225 = vmul.f32 %v1224, 1.442695
    %v1226 = vpow.pop %v1225
    %v1227 = vsub.f32 %v1150, %v1223
    %v1228 = vmul.f32 %v1227, 1.442695
    %v1229 = vpow.pop %v1228
    %v1230 = vsub.f32 %v1161, %v1223
    %v1231 = vmul.f32 %v1230, 1.442695
    %v1232 = vpow.pop %v1231
    %v1233 = vsub.f32 %v1172, %v1223
    %v1234 = vmul.f32 %v1233, 1.442695
    %v1235 = vpow.pop %v1234
    %v1236 = vsub.f32 %v1183, %v1223
    %v1237 = vmul.f32 %v1236, 1.442695
    %v1238 = vpow.pop %v1237
    %v1239 = vsub.f32 %v1194, %v1223
    %v1240 = vmul.f32 %v1239, 1.442695
    %v1241 = vpow.pop %v1240
    %v1242 = vsub.f32 %v1205, %v1223
    %v1243 = vmul.f32 %v1242, 1.442695
    %v1244 = vpow.pop %v1243
    %v1245 = vsub.f32 %v1216, %v1223
    %v1246 = vmul.f32 %v1245, 1.442695
    %v1247 = vpow.pop %v1246
    %v1248 = vadd.f32 %v1226, %v1229
    %v1249 = vadd.f32 %v1248, %v1232
    %v1250 = vadd.f32 %v1249, %v1235
    %v1251 = vadd.f32 %v1250, %v1238
    %v1252 = vadd.f32 %v1251, %v1241
    %v1253 = vadd.f32 %v1252, %v1244
    %v1254 = vadd.f32 %v1253, %v1247
    %v1255 = vrcp.pop %v1254
    %v1256 = vmul.f32 %v1226, %v158
    %v1257 = vmul.f32 %v1226, %v159
    %v1258 = vmul.f32 %v1229, %v160
    %v1259 = vmul.f32 %v1229, %v161
    %v1260 = vadd.f32 %v1256, %v1258
    %v1261 = vadd.f32 %v1257, %v1259
    %v1262 = vmul.f32 %v1232, %v162
    %v1263 = vmul.f32 %v1232, %v163
    %v1264 = vadd.f32 %v1260, %v1262
    %v1265 = vadd.f32 %v1261, %v1263
    %v1266 = vmul.f32 %v1235, %v164
    %v1267 = vmul.f32 %v1235, %v165
    %v1268 = vadd.f32 %v1264, %v1266
    %v1269 = vadd.f32 %v1265, %v1267
    %v1270 = vmul.f32 %v1238, %v166
    %v1271 = vmul.f32 %v1238, %v167
    %v1272 = vadd.f32 %v1268, %v1270
    %v1273 = vadd.f32 %v1269, %v1271
    %v1274 = vmul.f32 %v1241, %v168
    %v1275 = vmul.f32 %v1241, %v169
    %v1276 = vadd.f32 %v1272, %v1274
    %v1277 = vadd.f32 %v1273, %v1275
    %v1278 = vmul.f32 %v1244, %v170
    %v1279 = vmul.f32 %v1244, %v171
    %v1280 = vadd.f32 %v1276, %v1278
    %v1281 = vadd.f32 %v1277, %v1279
    %v1282 = vmul.f32 %v1247, %v172
    %v1283 = vmul.f32 %v1247, %v173
    %v1284 = vadd.f32 %v1280, %v1282
    %v1285 = vadd.f32 %v1281, %v1283
    %v1286 = vmul.f32 %v1284, %v1255
    %v1287 = vmul.f32 %v1285, %v1255
    %v1288 = vmul.f32 %v104, %v124
    %v1289 = vmul.f32 %v105, %v125
    %v1290 = vsel %vm176, %v1288, 0.0
    %v1291 = vsel %vm176, %v1289, 0.0
    %v1292 = vadd.f32 %v1290, %v1291
    %v1293 = vrot.slane %v1292, 4
    %v1294 = vadd.f32 %v1292, %v1293
    %v1295 = vrot.slane %v1294, 2
    %v1296 = vadd.f32 %v1294, %v1295
    %v1297 = vrot.slane %v1296, 1
    %v1298 = vadd.f32 %v1296, %v1297
    %v1299 = vmul.f32 %v104, %v126
    %v1300 = vmul.f32 %v105, %v127
    %v1301 = vsel %vm176, %v1299, 0.0
    %v1302 = vsel %vm176, %v1300, 0.0
    %v1303 = vadd.f32 %v1301, %v1302
    %v1304 = vrot.slane %v1303, 4
    %v1305 = vadd.f32 %v1303, %v1304
    %v1306 = vrot.slane %v1305, 2
    %v1307 = vadd.f32 %v1305, %v1306
    %v1308 = vrot.slane %v1307, 1
    %v1309 = vadd.f32 %v1307, %v1308
    %v1310 = vmul.f32 %v104, %v128
    %v1311 = vmul.f32 %v105, %v129
    %v1312 = vsel %vm176, %v1310, 0.0
    %v1313 = vsel %vm176, %v1311, 0.0
    %v1314 = vadd.f32 %v1312, %v1313
    %v1315 = vrot.slane %v1314, 4
    %v1316 = vadd.f32 %v1314, %v1315
    %v1317 = vrot.slane %v1316, 2
    %v1318 = vadd.f32 %v1316, %v1317
    %v1319 = vrot.slane %v1318, 1
    %v1320 = vadd.f32 %v1318, %v1319
    %v1321 = vmul.f32 %v104, %v130
    %v1322 = vmul.f32 %v105, %v131
    %v1323 = vsel %vm176, %v1321, 0.0
    %v1324 = vsel %vm176, %v1322, 0.0
    %v1325 = vadd.f32 %v1323, %v1324
    %v1326 = vrot.slane %v1325, 4
    %v1327 = vadd.f32 %v1325, %v1326
    %v1328 = vrot.slane %v1327, 2
    %v1329 = vadd.f32 %v1327, %v1328
    %v1330 = vrot.slane %v1329, 1
    %v1331 = vadd.f32 %v1329, %v1330
    %v1332 = vmul.f32 %v104, %v132
    %v1333 = vmul.f32 %v105, %v133
    %v1334 = vsel %vm176, %v1332, 0.0
    %v1335 = vsel %vm176, %v1333, 0.0
    %v1336 = vadd.f32 %v1334, %v1335
    %v1337 = vrot.slane %v1336, 4
    %v1338 = vadd.f32 %v1336, %v1337
    %v1339 = vrot.slane %v1338, 2
    %v1340 = vadd.f32 %v1338, %v1339
    %v1341 = vrot.slane %v1340, 1
    %v1342 = vadd.f32 %v1340, %v1341
    %v1343 = vmul.f32 %v104, %v134
    %v1344 = vmul.f32 %v105, %v135
    %v1345 = vsel %vm176, %v1343, 0.0
    %v1346 = vsel %vm176, %v1344, 0.0
    %v1347 = vadd.f32 %v1345, %v1346
    %v1348 = vrot.slane %v1347, 4
    %v1349 = vadd.f32 %v1347, %v1348
    %v1350 = vrot.slane %v1349, 2
    %v1351 = vadd.f32 %v1349, %v1350
    %v1352 = vrot.slane %v1351, 1
    %v1353 = vadd.f32 %v1351, %v1352
    %v1354 = vmul.f32 %v104, %v136
    %v1355 = vmul.f32 %v105, %v137
    %v1356 = vsel %vm176, %v1354, 0.0
    %v1357 = vsel %vm176, %v1355, 0.0
    %v1358 = vadd.f32 %v1356, %v1357
    %v1359 = vrot.slane %v1358, 4
    %v1360 = vadd.f32 %v1358, %v1359
    %v1361 = vrot.slane %v1360, 2
    %v1362 = vadd.f32 %v1360, %v1361
    %v1363 = vrot.slane %v1362, 1
    %v1364 = vadd.f32 %v1362, %v1363
    %v1365 = vmul.f32 %v104, %v138
    %v1366 = vmul.f32 %v105, %v139
    %v1367 = vsel %vm176, %v1365, 0.0
    %v1368 = vsel %vm176, %v1366, 0.0
    %v1369 = vadd.f32 %v1367, %v1368
    %v1370 = vrot.slane %v1369, 4
    %v1371 = vadd.f32 %v1369, %v1370
    %v1372 = vrot.slane %v1371, 2
    %v1373 = vadd.f32 %v1371, %v1372
    %v1374 = vrot.slane %v1373, 1
    %v1375 = vadd.f32 %v1373, %v1374
    %v1376 = vmax.f32 %v1298, %v1309
    %v1377 = vmax.f32 %v1376, %v1320
    %v1378 = vmax.f32 %v1377, %v1331
    %v1379 = vmax.f32 %v1378, %v1342
    %v1380 = vmax.f32 %v1379, %v1353
    %v1381 = vmax.f32 %v1380, %v1364
    %v1382 = vmax.f32 %v1381, %v1375
    %v1383 = vsub.f32 %v1298, %v1382
    %v1384 = vmul.f32 %v1383, 1.442695
    %v1385 = vpow.pop %v1384
    %v1386 = vsub.f32 %v1309, %v1382
    %v1387 = vmul.f32 %v1386, 1.442695
    %v1388 = vpow.pop %v1387
    %v1389 = vsub.f32 %v1320, %v1382
    %v1390 = vmul.f32 %v1389, 1.442695
    %v1391 = vpow.pop %v1390
    %v1392 = vsub.f32 %v1331, %v1382
    %v1393 = vmul.f32 %v1392, 1.442695
    %v1394 = vpow.pop %v1393
    %v1395 = vsub.f32 %v1342, %v1382
    %v1396 = vmul.f32 %v1395, 1.442695
    %v1397 = vpow.pop %v1396
    %v1398 = vsub.f32 %v1353, %v1382
    %v1399 = vmul.f32 %v1398, 1.442695
    %v1400 = vpow.pop %v1399
    %v1401 = vsub.f32 %v1364, %v1382
    %v1402 = vmul.f32 %v1401, 1.442695
    %v1403 = vpow.pop %v1402
    %v1404 = vsub.f32 %v1375, %v1382
    %v1405 = vmul.f32 %v1404, 1.442695
    %v1406 = vpow.pop %v1405
    %v1407 = vadd.f32 %v1385, %v1388
    %v1408 = vadd.f32 %v1407, %v1391
    %v1409 = vadd.f32 %v1408, %v1394
    %v1410 = vadd.f32 %v1409, %v1397
    %v1411 = vadd.f32 %v1410, %v1400
    %v1412 = vadd.f32 %v1411, %v1403
    %v1413 = vadd.f32 %v1412, %v1406
    %v1414 = vrcp.pop %v1413
    %v1415 = vmul.f32 %v1385, %v158
    %v1416 = vmul.f32 %v1385, %v159
    %v1417 = vmul.f32 %v1388, %v160
    %v1418 = vmul.f32 %v1388, %v161
    %v1419 = vadd.f32 %v1415, %v1417
    %v1420 = vadd.f32 %v1416, %v1418
    %v1421 = vmul.f32 %v1391, %v162
    %v1422 = vmul.f32 %v1391, %v163
    %v1423 = vadd.f32 %v1419, %v1421
    %v1424 = vadd.f32 %v1420, %v1422
    %v1425 = vmul.f32 %v1394, %v164
    %v1426 = vmul.f32 %v1394, %v165
    %v1427 = vadd.f32 %v1423, %v1425
    %v1428 = vadd.f32 %v1424, %v1426
    %v1429 = vmul.f32 %v1397, %v166
    %v1430 = vmul.f32 %v1397, %v167
    %v1431 = vadd.f32 %v1427, %v1429
    %v1432 = vadd.f32 %v1428, %v1430
    %v1433 = vmul.f32 %v1400, %v168
    %v1434 = vmul.f32 %v1400, %v169
    %v1435 = vadd.f32 %v1431, %v1433
    %v1436 = vadd.f32 %v1432, %v1434
    %v1437 = vmul.f32 %v1403, %v170
    %v1438 = vmul.f32 %v1403, %v171
    %v1439 = vadd.f32 %v1435, %v1437
    %v1440 = vadd.f32 %v1436, %v1438
    %v1441 = vmul.f32 %v1406, %v172
    %v1442 = vmul.f32 %v1406, %v173
    %v1443 = vadd.f32 %v1439, %v1441
    %v1444 = vadd.f32 %v1440, %v1442
    %v1445 = vmul.f32 %v1443, %v1414
    %v1446 = vmul.f32 %v1444, %v1414
    %1447 = vxpose.xlu0.b32.start [1/16] %v332, 128
    %1448 = vxpose.xlu0.b32.cont [2/16] %v333, 128
    %1449 = vxpose.xlu0.b32.cont [3/16] %v491, 128
    %1450 = vxpose.xlu0.b32.cont [4/16] %v492, 128
    %1451 = vxpose.xlu0.b32.cont [5/16] %v650, 128
    %1452 = vxpose.xlu0.b32.cont [6/16] %v651, 128
    %1453 = vxpose.xlu0.b32.cont [7/16] %v809, 128
    %1454 = vxpose.xlu0.b32.cont [8/16] %v810, 128
    %1455 = vxpose.xlu0.b32.cont [9/16] %v968, 128
    %1456 = vxpose.xlu0.b32.cont [10/16] %v969, 128
    %1457 = vxpose.xlu0.b32.cont [11/16] %v1127, 128
    %1458 = vxpose.xlu0.b32.cont [12/16] %v1128, 128
    %1459 = vxpose.xlu0.b32.cont [13/16] %v1286, 128
    %1460 = vxpose.xlu0.b32.cont [14/16] %v1287, 128
    %1461 = vxpose.xlu0.b32.cont [15/16] %v1445, 128
    %1462 = vxpose.xlu0.b32.end [16/16] %v1446, 128
    %v1463 = vpop.trf.xlu0
    %v1464 = vpop.trf.xlu0
    %v1465 = vpop.trf.xlu0
    %v1466 = vpop.trf.xlu0
    %v1467 = vpop.trf.xlu0
    %v1468 = vpop.trf.xlu0
    %v1469 = vpop.trf.xlu0
    %v1470 = vpop.trf.xlu0
    %v1471 = vpop.trf.xlu0
    %v1472 = vpop.trf.xlu0
    %v1473 = vpop.trf.xlu0
    %v1474 = vpop.trf.xlu0
    %v1475 = vpop.trf.xlu0
    %v1476 = vpop.trf.xlu0
    %v1477 = vpop.trf.xlu0
    %v1478 = vpop.trf.xlu0
    %1479 = vst [vmem:[#allocation8] sm:$0xff] %v1463
    %1480 = vst [vmem:[#allocation8 + $0x8] sm:$0xff] %v1464
    // Predicated region
    $region26: #{tpu_custom_call.1} parent=1 // pred_check
      _
    $region27: #{tpu_custom_call.1} parent=1 // pred_check_branch
      %1482 = sbr.rel (0) target = $region29
    $region28: #{tpu_custom_call.1} parent=1 // pred_region
      %s1484 = ssub.s32 256, 256
      %1485 = vsyncadd [#allocation4], %s1484
      %s1486 = sshll.u32 [#allocation8], 4
      %s1487 = int_to_ptr.vmem [resolvable:$true] %s1486
      %1492 = dma.vmem_to_hbm [thread:$0]  %s1487, 256, %s3, [#allocation4], 128, 128, 8
    $region29: #{tpu_custom_call.1} parent=1 // pred_fallthru
      _
    // Predicated region
    $region30: #{tpu_custom_call.1} parent=1 // pred_check
      _
    $region31: #{tpu_custom_call.1} parent=1 // pred_check_branch
      %1494 = sbr.rel (0) target = $region33
    $region32: #{tpu_custom_call.1} parent=1 // pred_region
      %1495 = dma.done [#allocation4], 256
    $region33: #{tpu_custom_call.1} parent=1 // pred_fallthru
      _
    %1496 = vsyncpa [#allocation3], 1
    %1497 = vsyncpa [#allocation6], 1
    %1498 = vsyncpa [#allocation4], 1

// kernel: tpu_custom_call.1
$region0: #{tpu_custom_call.1}
  #allocation0 [shape = 'u32[]', space=smem, size = 0x4, offset = 0x4, fixed_abs, tag = 'smem constant byte address 0x4 - core index']
  #allocation1 [shape = 'u32[144,128]{1,0:T(1,128)}', space=vmem, size = 0x12000, scoped, tag = 'internal scratch']
  %s0 = inlined_call_operand.hbm [shape: f32[16,8,16], index: 0, kind: input, shape index: {}]
  %s1 = inlined_call_operand.hbm [shape: f32[16,8,16], index: 1, kind: input, shape index: {}]
  %s2 = inlined_call_operand.hbm [shape: f32[16,8,16], index: 2, kind: input, shape index: {}]
  %s3 = inlined_call_operand.hbm [shape: f32[16,8,16], index: 3, kind: output, shape index: {}]
  %s4 = sld [smem:[#allocation0]]
  $region34: #{tpu_custom_call.1} parent=0
    _
  %s6 = ssub.s32 1, %s4
  %s7 = scalar_select 0, %s6, %s4
  $region1: #{tpu_custom_call.1} parent=0
    #allocation2 [shape = 'u8[65536]{0}', space=vmem, size = 0x10000, scoped, tag = 'input window, operand 0, single buffered']
    #allocation3 [shape = 's32[1]{0}', space=sflag, size = 0x4, scoped, tag = 'scoped memory for tpu_custom_call.1']
    #allocation4 [shape = 's32[1]{0}', space=sflag, size = 0x4, scoped, tag = 'scoped memory for tpu_custom_call.1']
    #allocation5 [shape = 'u8[65536]{0}', space=vmem, size = 0x10000, scoped, tag = 'input window, operand 1, single buffered']
    #allocation6 [shape = 's32[1]{0}', space=sflag, size = 0x4, scoped, tag = 'scoped memory for tpu_custom_call.1']
    #allocation7 [shape = 'u8[65536]{0}', space=vmem, size = 0x10000, scoped, tag = 'input window, operand 2, single buffered']
    #allocation8 [shape = 'u8[65536]{0}', space=vmem, size = 0x10000, scoped, tag = 'output window, operand 0, single buffered']
    %8 = vsyncpa [#allocation3], 0
    %9 = vsyncpa [#allocation6], 0
    %10 = vsyncpa [#allocation4], 0
    // Predicated region
    $region2: #{tpu_custom_call.1} parent=1 // pred_check
      _
    $region3: #{tpu_custom_call.1} parent=1 // pred_check_branch
      %12 = sbr.rel (0) target = $region5
    $region4: #{tpu_custom_call.1} parent=1 // pred_region
      %s14 = ssub.s32 2048, 2048
      %15 = vsyncadd [#allocation3], %s14
      %s16 = sshll.u32 [#allocation2], 4
      %s17 = int_to_ptr.vmem [resolvable:$true] %s16
      %22 = dma.hbm_to_vmem [thread:$0]  %s0, 2048, %s17, [#allocation3], 128, 128, 8
    $region5: #{tpu_custom_call.1} parent=1 // pred_fallthru
      _
    // Predicated region
    $region6: #{tpu_custom_call.1} parent=1 // pred_check
      _
    $region7: #{tpu_custom_call.1} parent=1 // pred_check_branch
      %24 = sbr.rel (0) target = $region9
    $region8: #{tpu_custom_call.1} parent=1 // pred_region
      %s26 = ssub.s32 2048, 2048
      %27 = vsyncadd [#allocation6], %s26
      %s28 = sshll.u32 [#allocation5], 4
      %s29 = int_to_ptr.vmem [resolvable:$true] %s28
      %34 = dma.hbm_to_vmem [thread:$0]  %s1, 2048, %s29, [#allocation6], 128, 128, 8
    $region9: #{tpu_custom_call.1} parent=1 // pred_fallthru
      _
    // Predicated region
    $region10: #{tpu_custom_call.1} parent=1 // pred_check
      _
    $region11: #{tpu_custom_call.1} parent=1 // pred_check_branch
      %36 = sbr.rel (0) target = $region13
    $region12: #{tpu_custom_call.1} parent=1 // pred_region
      %s38 = ssub.s32 2048, 2048
      %39 = vsyncadd [#allocation6], %s38
      %s40 = sshll.u32 [#allocation7], 4
      %s41 = int_to_ptr.vmem [resolvable:$true] %s40
      %46 = dma.hbm_to_vmem [thread:$0]  %s2, 2048, %s41, [#allocation6], 128, 128, 8
    $region13: #{tpu_custom_call.1} parent=1 // pred_fallthru
      _
    // Predicated region
    $region14: #{tpu_custom_call.1} parent=1 // pred_check
      _
    $region15: #{tpu_custom_call.1} parent=1 // pred_check_branch
      %48 = sbr.rel (0) target = $region17
    $region16: #{tpu_custom_call.1} parent=1 // pred_region
      %49 = dma.done [#allocation3], 2048
    $region17: #{tpu_custom_call.1} parent=1 // pred_fallthru
      _
    // Predicated region
    $region18: #{tpu_custom_call.1} parent=1 // pred_check
      _
    $region19: #{tpu_custom_call.1} parent=1 // pred_check_branch
      %51 = sbr.rel (0) target = $region21
    $region20: #{tpu_custom_call.1} parent=1 // pred_region
      %52 = dma.done [#allocation6], 2048
    $region21: #{tpu_custom_call.1} parent=1 // pred_fallthru
      _
    // Predicated region
    $region22: #{tpu_custom_call.1} parent=1 // pred_check
      _
    $region23: #{tpu_custom_call.1} parent=1 // pred_check_branch
      %54 = sbr.rel (0) target = $region25
    $region24: #{tpu_custom_call.1} parent=1 // pred_region
      %55 = dma.done [#allocation6], 2048
    $region25: #{tpu_custom_call.1} parent=1 // pred_fallthru
      _
    %v56 = vld [vmem:[#allocation2] sm:$0xff]
    %v57 = vld [vmem:[#allocation2 + $0x8] sm:$0xff]
    %v58 = vld [vmem:[#allocation2 + $0x10] sm:$0xff]
    %v59 = vld [vmem:[#allocation2 + $0x18] sm:$0xff]
    %v60 = vld [vmem:[#allocation2 + $0x20] sm:$0xff]
    %v61 = vld [vmem:[#allocation2 + $0x28] sm:$0xff]
    %v62 = vld [vmem:[#allocation2 + $0x30] sm:$0xff]
    %v63 = vld [vmem:[#allocation2 + $0x38] sm:$0xff]
    %v64 = vld [vmem:[#allocation2 + $0x40] sm:$0xff]
    %v65 = vld [vmem:[#allocation2 + $0x48] sm:$0xff]
    %v66 = vld [vmem:[#allocation2 + $0x50] sm:$0xff]
    %v67 = vld [vmem:[#allocation2 + $0x58] sm:$0xff]
    %v68 = vld [vmem:[#allocation2 + $0x60] sm:$0xff]
    %v69 = vld [vmem:[#allocation2 + $0x68] sm:$0xff]
    %v70 = vld [vmem:[#allocation2 + $0x70] sm:$0xff]
    %v71 = vld [vmem:[#allocation2 + $0x78] sm:$0xff]
    %v72 = vld [vmem:[#allocation5] sm:$0xff]
    %v73 = vld [vmem:[#allocation5 + $0x8] sm:$0xff]
    %v74 = vld [vmem:[#allocation5 + $0x10] sm:$0xff]
    %v75 = vld [vmem:[#allocation5 + $0x18] sm:$0xff]
    %v76 = vld [vmem:[#allocation5 + $0x20] sm:$0xff]
    %v77 = vld [vmem:[#allocation5 + $0x28] sm:$0xff]
    %v78 = vld [vmem:[#allocation5 + $0x30] sm:$0xff]
    %v79 = vld [vmem:[#allocation5 + $0x38] sm:$0xff]
    %v80 = vld [vmem:[#allocation5 + $0x40] sm:$0xff]
    %v81 = vld [vmem:[#allocation5 + $0x48] sm:$0xff]
    %v82 = vld [vmem:[#allocation5 + $0x50] sm:$0xff]
    %v83 = vld [vmem:[#allocation5 + $0x58] sm:$0xff]
    %v84 = vld [vmem:[#allocation5 + $0x60] sm:$0xff]
    %v85 = vld [vmem:[#allocation5 + $0x68] sm:$0xff]
    %v86 = vld [vmem:[#allocation5 + $0x70] sm:$0xff]
    %v87 = vld [vmem:[#allocation5 + $0x78] sm:$0xff]
    %v88 = vld [vmem:[#allocation7] sm:$0xff]
    %v89 = vld [vmem:[#allocation7 + $0x8] sm:$0xff]
    %v90 = vld [vmem:[#allocation7 + $0x10] sm:$0xff]
    %v91 = vld [vmem:[#allocation7 + $0x18] sm:$0xff]
    %v92 = vld [vmem:[#allocation7 + $0x20] sm:$0xff]
    %v93 = vld [vmem:[#allocation7 + $0x28] sm:$0xff]
    %v94 = vld [vmem:[#allocation7 + $0x30] sm:$0xff]
    %v95 = vld [vmem:[#allocation7 + $0x38] sm:$0xff]
    %v96 = vld [vmem:[#allocation7 + $0x40] sm:$0xff]
    %v97 = vld [vmem:[#allocation7 + $0x48] sm:$0xff]
    %v98 = vld [vmem:[#allocation7 + $0x50] sm:$0xff]
    %v99 = vld [vmem:[#allocation7 + $0x58] sm:$0xff]
    %v100 = vld [vmem:[#allocation7 + $0x60] sm:$0xff]
    %v101 = vld [vmem:[#allocation7 + $0x68] sm:$0xff]
    %v102 = vld [vmem:[#allocation7 + $0x70] sm:$0xff]
    %v103 = vld [vmem:[#allocation7 + $0x78] sm:$0xff]
    %vm104 = vcmask 130048
    %v106 = vsel %vm104, %v56, 0
    %v109 = vsel %vm104, %v72, 0
    %111 = vmatprep.subr.mxu0 0.0
    %112 = vmatpush1.xpose.msra.mxu0 0.0
    %113 = vmatprep.subr.mxu0 0.0
    %114 = vmatpush1.xpose.msra.mxu0 0.0
    %115 = vmatprep.subr.mxu0 0.0
    %116 = vmatpush1.xpose.msra.mxu0 0.0
    %117 = vmatprep.subr.mxu0 0.0
    %118 = vmatpush1.xpose.msra.mxu0 0.0
    %119 = vmatprep.subr.mxu0 0.0
    %120 = vmatpush1.xpose.msra.mxu0 0.0
    %121 = vmatprep.subr.mxu0 0.0
    %122 = vmatpush1.xpose.msra.mxu0 0.0
    %123 = vmatprep.subr.mxu0 0.0
    %124 = vmatpush1.xpose.msra.mxu0 0.0
    %125 = vmatprep.subr.mxu0 0.0
    %126 = vmatpush1.xpose.msra.mxu0 0.0
    %127 = vmatprep.subr.mxu0 0.0
    %128 = vmatpush1.xpose.msra.mxu0 0.0
    %129 = vmatprep.subr.mxu0 0.0
    %130 = vmatpush1.xpose.msra.mxu0 0.0
    %131 = vmatprep.subr.mxu0 0.0
    %132 = vmatpush1.xpose.msra.mxu0 0.0
    %133 = vmatprep.subr.mxu0 0.0
    %134 = vmatpush1.xpose.msra.mxu0 0.0
    %135 = vmatprep.subr.mxu0 0.0
    %136 = vmatpush1.xpose.msra.mxu0 0.0
    %137 = vmatprep.subr.mxu0 0.0
    %138 = vmatpush1.xpose.msra.mxu0 0.0
    %139 = vmatprep.subr.mxu0 0.0
    %140 = vmatpush1.xpose.msra.mxu0 0.0
    %141 = vmatprep.subr.mxu0 0.0
    %142 = vmatpush1.xpose.msra.mxu0 %v109
    %143 = vmatprep.subr.mxu0 0.0
    %144 = vmatpush2.xpose.msra.mxu0 0.0
    %145 = vmatprep.subr.mxu0 0.0
    %146 = vmatpush2.xpose.msra.mxu0 0.0
    %147 = vmatprep.subr.mxu0 0.0
    %148 = vmatpush2.xpose.msra.mxu0 0.0
    %149 = vmatprep.subr.mxu0 0.0
    %150 = vmatpush2.xpose.msra.mxu0 0.0
    %151 = vmatprep.subr.mxu0 0.0
    %152 = vmatpush2.xpose.msra.mxu0 0.0
    %153 = vmatprep.subr.mxu0 0.0
    %154 = vmatpush2.xpose.msra.mxu0 0.0
    %155 = vmatprep.subr.mxu0 0.0
    %156 = vmatpush2.xpose.msra.mxu0 0.0
    %157 = vmatprep.subr.mxu0 0.0
    %158 = vmatpush2.xpose.msra.mxu0 0.0
    %159 = vmatprep.subr.mxu0 0.0
    %160 = vmatpush2.xpose.msra.mxu0 0.0
    %161 = vmatprep.subr.mxu0 0.0
    %162 = vmatpush2.xpose.msra.mxu0 0.0
    %163 = vmatprep.subr.mxu0 0.0
    %164 = vmatpush2.xpose.msra.mxu0 0.0
    %165 = vmatprep.subr.mxu0 0.0
    %166 = vmatpush2.xpose.msra.mxu0 0.0
    %167 = vmatprep.subr.mxu0 0.0
    %168 = vmatpush2.xpose.msra.mxu0 0.0
    %169 = vmatprep.subr.mxu0 0.0
    %170 = vmatpush2.xpose.msra.mxu0 0.0
    %171 = vmatprep.subr.mxu0 0.0
    %172 = vmatpush2.xpose.msra.mxu0 0.0
    %173 = vmatprep.subr.mxu0 0.0
    %174 = vmatpush2.xpose.msra.mxu0 0.0
    %175 = vmatprep.mubr.f32.mxu0 0.0
    %176 = vmatmul.mubr.f32.gmra.mxu0 %v106
    %v177 = vpop.f32.mrf.mxu0
    %v178 = vadd.f32 0.0, %v177
    %v179 = vpop.f32.mrf.mxu0
    %180 = vdwg.mxu0
    %v182 = vsel %vm104, %v57, 0
    %v185 = vsel %vm104, %v73, 0
    %187 = vmatprep.subr.mxu0 0.0
    %188 = vmatpush1.xpose.msra.mxu0 0.0
    %189 = vmatprep.subr.mxu0 0.0
    %190 = vmatpush1.xpose.msra.mxu0 0.0
    %191 = vmatprep.subr.mxu0 0.0
    %192 = vmatpush1.xpose.msra.mxu0 0.0
    %193 = vmatprep.subr.mxu0 0.0
    %194 = vmatpush1.xpose.msra.mxu0 0.0
    %195 = vmatprep.subr.mxu0 0.0
    %196 = vmatpush1.xpose.msra.mxu0 0.0
    %197 = vmatprep.subr.mxu0 0.0
    %198 = vmatpush1.xpose.msra.mxu0 0.0
    %199 = vmatprep.subr.mxu0 0.0
    %200 = vmatpush1.xpose.msra.mxu0 0.0
    %201 = vmatprep.subr.mxu0 0.0
    %202 = vmatpush1.xpose.msra.mxu0 0.0
    %203 = vmatprep.subr.mxu0 0.0
    %204 = vmatpush1.xpose.msra.mxu0 0.0
    %205 = vmatprep.subr.mxu0 0.0
    %206 = vmatpush1.xpose.msra.mxu0 0.0
    %207 = vmatprep.subr.mxu0 0.0
    %208 = vmatpush1.xpose.msra.mxu0 0.0
    %209 = vmatprep.subr.mxu0 0.0
    %210 = vmatpush1.xpose.msra.mxu0 0.0
    %211 = vmatprep.subr.mxu0 0.0
    %212 = vmatpush1.xpose.msra.mxu0 0.0
    %213 = vmatprep.subr.mxu0 0.0
    %214 = vmatpush1.xpose.msra.mxu0 0.0
    %215 = vmatprep.subr.mxu0 0.0
    %216 = vmatpush1.xpose.msra.mxu0 0.0
    %217 = vmatprep.subr.mxu0 0.0
    %218 = vmatpush1.xpose.msra.mxu0 %v185
    %219 = vmatprep.subr.mxu0 0.0
    %220 = vmatpush2.xpose.msra.mxu0 0.0
    %221 = vmatprep.subr.mxu0 0.0
    %222 = vmatpush2.xpose.msra.mxu0 0.0
    %223 = vmatprep.subr.mxu0 0.0
    %224 = vmatpush2.xpose.msra.mxu0 0.0
    %225 = vmatprep.subr.mxu0 0.0
    %226 = vmatpush2.xpose.msra.mxu0 0.0
    %227 = vmatprep.subr.mxu0 0.0
    %228 = vmatpush2.xpose.msra.mxu0 0.0
    %229 = vmatprep.subr.mxu0 0.0
    %230 = vmatpush2.xpose.msra.mxu0 0.0
    %231 = vmatprep.subr.mxu0 0.0
    %232 = vmatpush2.xpose.msra.mxu0 0.0
    %233 = vmatprep.subr.mxu0 0.0
    %234 = vmatpush2.xpose.msra.mxu0 0.0
    %235 = vmatprep.subr.mxu0 0.0
    %236 = vmatpush2.xpose.msra.mxu0 0.0
    %237 = vmatprep.subr.mxu0 0.0
    %238 = vmatpush2.xpose.msra.mxu0 0.0
    %239 = vmatprep.subr.mxu0 0.0
    %240 = vmatpush2.xpose.msra.mxu0 0.0
    %241 = vmatprep.subr.mxu0 0.0
    %242 = vmatpush2.xpose.msra.mxu0 0.0
    %243 = vmatprep.subr.mxu0 0.0
    %244 = vmatpush2.xpose.msra.mxu0 0.0
    %245 = vmatprep.subr.mxu0 0.0
    %246 = vmatpush2.xpose.msra.mxu0 0.0
    %247 = vmatprep.subr.mxu0 0.0
    %248 = vmatpush2.xpose.msra.mxu0 0.0
    %249 = vmatprep.subr.mxu0 0.0
    %250 = vmatpush2.xpose.msra.mxu0 0.0
    %251 = vmatprep.mubr.f32.mxu0 0.0
    %252 = vmatmul.mubr.f32.gmra.mxu0 %v182
    %v253 = vpop.f32.mrf.mxu0
    %v254 = vadd.f32 0.0, %v253
    %v255 = vpop.f32.mrf.mxu0
    %256 = vdwg.mxu0
    %v258 = vsel %vm104, %v58, 0
    %v261 = vsel %vm104, %v74, 0
    %263 = vmatprep.subr.mxu0 0.0
    %264 = vmatpush1.xpose.msra.mxu0 0.0
    %265 = vmatprep.subr.mxu0 0.0
    %266 = vmatpush1.xpose.msra.mxu0 0.0
    %267 = vmatprep.subr.mxu0 0.0
    %268 = vmatpush1.xpose.msra.mxu0 0.0
    %269 = vmatprep.subr.mxu0 0.0
    %270 = vmatpush1.xpose.msra.mxu0 0.0
    %271 = vmatprep.subr.mxu0 0.0
    %272 = vmatpush1.xpose.msra.mxu0 0.0
    %273 = vmatprep.subr.mxu0 0.0
    %274 = vmatpush1.xpose.msra.mxu0 0.0
    %275 = vmatprep.subr.mxu0 0.0
    %276 = vmatpush1.xpose.msra.mxu0 0.0
    %277 = vmatprep.subr.mxu0 0.0
    %278 = vmatpush1.xpose.msra.mxu0 0.0
    %279 = vmatprep.subr.mxu0 0.0
    %280 = vmatpush1.xpose.msra.mxu0 0.0
    %281 = vmatprep.subr.mxu0 0.0
    %282 = vmatpush1.xpose.msra.mxu0 0.0
    %283 = vmatprep.subr.mxu0 0.0
    %284 = vmatpush1.xpose.msra.mxu0 0.0
    %285 = vmatprep.subr.mxu0 0.0
    %286 = vmatpush1.xpose.msra.mxu0 0.0
    %287 = vmatprep.subr.mxu0 0.0
    %288 = vmatpush1.xpose.msra.mxu0 0.0
    %289 = vmatprep.subr.mxu0 0.0
    %290 = vmatpush1.xpose.msra.mxu0 0.0
    %291 = vmatprep.subr.mxu0 0.0
    %292 = vmatpush1.xpose.msra.mxu0 0.0
    %293 = vmatprep.subr.mxu0 0.0
    %294 = vmatpush1.xpose.msra.mxu0 %v261
    %295 = vmatprep.subr.mxu0 0.0
    %296 = vmatpush2.xpose.msra.mxu0 0.0
    %297 = vmatprep.subr.mxu0 0.0
    %298 = vmatpush2.xpose.msra.mxu0 0.0
    %299 = vmatprep.subr.mxu0 0.0
    %300 = vmatpush2.xpose.msra.mxu0 0.0
    %301 = vmatprep.subr.mxu0 0.0
    %302 = vmatpush2.xpose.msra.mxu0 0.0
    %303 = vmatprep.subr.mxu0 0.0
    %304 = vmatpush2.xpose.msra.mxu0 0.0
    %305 = vmatprep.subr.mxu0 0.0
    %306 = vmatpush2.xpose.msra.mxu0 0.0
    %307 = vmatprep.subr.mxu0 0.0
    %308 = vmatpush2.xpose.msra.mxu0 0.0
    %309 = vmatprep.subr.mxu0 0.0
    %310 = vmatpush2.xpose.msra.mxu0 0.0
    %311 = vmatprep.subr.mxu0 0.0
    %312 = vmatpush2.xpose.msra.mxu0 0.0
    %313 = vmatprep.subr.mxu0 0.0
    %314 = vmatpush2.xpose.msra.mxu0 0.0
    %315 = vmatprep.subr.mxu0 0.0
    %316 = vmatpush2.xpose.msra.mxu0 0.0
    %317 = vmatprep.subr.mxu0 0.0
    %318 = vmatpush2.xpose.msra.mxu0 0.0
    %319 = vmatprep.subr.mxu0 0.0
    %320 = vmatpush2.xpose.msra.mxu0 0.0
    %321 = vmatprep.subr.mxu0 0.0
    %322 = vmatpush2.xpose.msra.mxu0 0.0
    %323 = vmatprep.subr.mxu0 0.0
    %324 = vmatpush2.xpose.msra.mxu0 0.0
    %325 = vmatprep.subr.mxu0 0.0
    %326 = vmatpush2.xpose.msra.mxu0 0.0
    %327 = vmatprep.mubr.f32.mxu0 0.0
    %328 = vmatmul.mubr.f32.gmra.mxu0 %v258
    %v329 = vpop.f32.mrf.mxu0
    %v330 = vadd.f32 0.0, %v329
    %v331 = vpop.f32.mrf.mxu0
    %332 = vdwg.mxu0
    %v334 = vsel %vm104, %v59, 0
    %v337 = vsel %vm104, %v75, 0
    %339 = vmatprep.subr.mxu0 0.0
    %340 = vmatpush1.xpose.msra.mxu0 0.0
    %341 = vmatprep.subr.mxu0 0.0
    %342 = vmatpush1.xpose.msra.mxu0 0.0
    %343 = vmatprep.subr.mxu0 0.0
    %344 = vmatpush1.xpose.msra.mxu0 0.0
    %345 = vmatprep.subr.mxu0 0.0
    %346 = vmatpush1.xpose.msra.mxu0 0.0
    %347 = vmatprep.subr.mxu0 0.0
    %348 = vmatpush1.xpose.msra.mxu0 0.0
    %349 = vmatprep.subr.mxu0 0.0
    %350 = vmatpush1.xpose.msra.mxu0 0.0
    %351 = vmatprep.subr.mxu0 0.0
    %352 = vmatpush1.xpose.msra.mxu0 0.0
    %353 = vmatprep.subr.mxu0 0.0
    %354 = vmatpush1.xpose.msra.mxu0 0.0
    %355 = vmatprep.subr.mxu0 0.0
    %356 = vmatpush1.xpose.msra.mxu0 0.0
    %357 = vmatprep.subr.mxu0 0.0
    %358 = vmatpush1.xpose.msra.mxu0 0.0
    %359 = vmatprep.subr.mxu0 0.0
    %360 = vmatpush1.xpose.msra.mxu0 0.0
    %361 = vmatprep.subr.mxu0 0.0
    %362 = vmatpush1.xpose.msra.mxu0 0.0
    %363 = vmatprep.subr.mxu0 0.0
    %364 = vmatpush1.xpose.msra.mxu0 0.0
    %365 = vmatprep.subr.mxu0 0.0
    %366 = vmatpush1.xpose.msra.mxu0 0.0
    %367 = vmatprep.subr.mxu0 0.0
    %368 = vmatpush1.xpose.msra.mxu0 0.0
    %369 = vmatprep.subr.mxu0 0.0
    %370 = vmatpush1.xpose.msra.mxu0 %v337
    %371 = vmatprep.subr.mxu0 0.0
    %372 = vmatpush2.xpose.msra.mxu0 0.0
    %373 = vmatprep.subr.mxu0 0.0
    %374 = vmatpush2.xpose.msra.mxu0 0.0
    %375 = vmatprep.subr.mxu0 0.0
    %376 = vmatpush2.xpose.msra.mxu0 0.0
    %377 = vmatprep.subr.mxu0 0.0
    %378 = vmatpush2.xpose.msra.mxu0 0.0
    %379 = vmatprep.subr.mxu0 0.0
    %380 = vmatpush2.xpose.msra.mxu0 0.0
    %381 = vmatprep.subr.mxu0 0.0
    %382 = vmatpush2.xpose.msra.mxu0 0.0
    %383 = vmatprep.subr.mxu0 0.0
    %384 = vmatpush2.xpose.msra.mxu0 0.0
    %385 = vmatprep.subr.mxu0 0.0
    %386 = vmatpush2.xpose.msra.mxu0 0.0
    %387 = vmatprep.subr.mxu0 0.0
    %388 = vmatpush2.xpose.msra.mxu0 0.0
    %389 = vmatprep.subr.mxu0 0.0
    %390 = vmatpush2.xpose.msra.mxu0 0.0
    %391 = vmatprep.subr.mxu0 0.0
    %392 = vmatpush2.xpose.msra.mxu0 0.0
    %393 = vmatprep.subr.mxu0 0.0
    %394 = vmatpush2.xpose.msra.mxu0 0.0
    %395 = vmatprep.subr.mxu0 0.0
    %396 = vmatpush2.xpose.msra.mxu0 0.0
    %397 = vmatprep.subr.mxu0 0.0
    %398 = vmatpush2.xpose.msra.mxu0 0.0
    %399 = vmatprep.subr.mxu0 0.0
    %400 = vmatpush2.xpose.msra.mxu0 0.0
    %401 = vmatprep.subr.mxu0 0.0
    %402 = vmatpush2.xpose.msra.mxu0 0.0
    %403 = vmatprep.mubr.f32.mxu0 0.0
    %404 = vmatmul.mubr.f32.gmra.mxu0 %v334
    %v405 = vpop.f32.mrf.mxu0
    %v406 = vadd.f32 0.0, %v405
    %v407 = vpop.f32.mrf.mxu0
    %408 = vdwg.mxu0
    %v410 = vsel %vm104, %v60, 0
    %v413 = vsel %vm104, %v76, 0
    %415 = vmatprep.subr.mxu0 0.0
    %416 = vmatpush1.xpose.msra.mxu0 0.0
    %417 = vmatprep.subr.mxu0 0.0
    %418 = vmatpush1.xpose.msra.mxu0 0.0
    %419 = vmatprep.subr.mxu0 0.0
    %420 = vmatpush1.xpose.msra.mxu0 0.0
    %421 = vmatprep.subr.mxu0 0.0
    %422 = vmatpush1.xpose.msra.mxu0 0.0
    %423 = vmatprep.subr.mxu0 0.0
    %424 = vmatpush1.xpose.msra.mxu0 0.0
    %425 = vmatprep.subr.mxu0 0.0
    %426 = vmatpush1.xpose.msra.mxu0 0.0
    %427 = vmatprep.subr.mxu0 0.0
    %428 = vmatpush1.xpose.msra.mxu0 0.0
    %429 = vmatprep.subr.mxu0 0.0
    %430 = vmatpush1.xpose.msra.mxu0 0.0
    %431 = vmatprep.subr.mxu0 0.0
    %432 = vmatpush1.xpose.msra.mxu0 0.0
    %433 = vmatprep.subr.mxu0 0.0
    %434 = vmatpush1.xpose.msra.mxu0 0.0
    %435 = vmatprep.subr.mxu0 0.0
    %436 = vmatpush1.xpose.msra.mxu0 0.0
    %437 = vmatprep.subr.mxu0 0.0
    %438 = vmatpush1.xpose.msra.mxu0 0.0
    %439 = vmatprep.subr.mxu0 0.0
    %440 = vmatpush1.xpose.msra.mxu0 0.0
    %441 = vmatprep.subr.mxu0 0.0
    %442 = vmatpush1.xpose.msra.mxu0 0.0
    %443 = vmatprep.subr.mxu0 0.0
    %444 = vmatpush1.xpose.msra.mxu0 0.0
    %445 = vmatprep.subr.mxu0 0.0
    %446 = vmatpush1.xpose.msra.mxu0 %v413
    %447 = vmatprep.subr.mxu0 0.0
    %448 = vmatpush2.xpose.msra.mxu0 0.0
    %449 = vmatprep.subr.mxu0 0.0
    %450 = vmatpush2.xpose.msra.mxu0 0.0
    %451 = vmatprep.subr.mxu0 0.0
    %452 = vmatpush2.xpose.msra.mxu0 0.0
    %453 = vmatprep.subr.mxu0 0.0
    %454 = vmatpush2.xpose.msra.mxu0 0.0
    %455 = vmatprep.subr.mxu0 0.0
    %456 = vmatpush2.xpose.msra.mxu0 0.0
    %457 = vmatprep.subr.mxu0 0.0
    %458 = vmatpush2.xpose.msra.mxu0 0.0
    %459 = vmatprep.subr.mxu0 0.0
    %460 = vmatpush2.xpose.msra.mxu0 0.0
    %461 = vmatprep.subr.mxu0 0.0
    %462 = vmatpush2.xpose.msra.mxu0 0.0
    %463 = vmatprep.subr.mxu0 0.0
    %464 = vmatpush2.xpose.msra.mxu0 0.0
    %465 = vmatprep.subr.mxu0 0.0
    %466 = vmatpush2.xpose.msra.mxu0 0.0
    %467 = vmatprep.subr.mxu0 0.0
    %468 = vmatpush2.xpose.msra.mxu0 0.0
    %469 = vmatprep.subr.mxu0 0.0
    %470 = vmatpush2.xpose.msra.mxu0 0.0
    %471 = vmatprep.subr.mxu0 0.0
    %472 = vmatpush2.xpose.msra.mxu0 0.0
    %473 = vmatprep.subr.mxu0 0.0
    %474 = vmatpush2.xpose.msra.mxu0 0.0
    %475 = vmatprep.subr.mxu0 0.0
    %476 = vmatpush2.xpose.msra.mxu0 0.0
    %477 = vmatprep.subr.mxu0 0.0
    %478 = vmatpush2.xpose.msra.mxu0 0.0
    %479 = vmatprep.mubr.f32.mxu0 0.0
    %480 = vmatmul.mubr.f32.gmra.mxu0 %v410
    %v481 = vpop.f32.mrf.mxu0
    %v482 = vadd.f32 0.0, %v481
    %v483 = vpop.f32.mrf.mxu0
    %484 = vdwg.mxu0
    %v486 = vsel %vm104, %v61, 0
    %v489 = vsel %vm104, %v77, 0
    %491 = vmatprep.subr.mxu0 0.0
    %492 = vmatpush1.xpose.msra.mxu0 0.0
    %493 = vmatprep.subr.mxu0 0.0
    %494 = vmatpush1.xpose.msra.mxu0 0.0
    %495 = vmatprep.subr.mxu0 0.0
    %496 = vmatpush1.xpose.msra.mxu0 0.0
    %497 = vmatprep.subr.mxu0 0.0
    %498 = vmatpush1.xpose.msra.mxu0 0.0
    %499 = vmatprep.subr.mxu0 0.0
    %500 = vmatpush1.xpose.msra.mxu0 0.0
    %501 = vmatprep.subr.mxu0 0.0
    %502 = vmatpush1.xpose.msra.mxu0 0.0
    %503 = vmatprep.subr.mxu0 0.0
    %504 = vmatpush1.xpose.msra.mxu0 0.0
    %505 = vmatprep.subr.mxu0 0.0
    %506 = vmatpush1.xpose.msra.mxu0 0.0
    %507 = vmatprep.subr.mxu0 0.0
    %508 = vmatpush1.xpose.msra.mxu0 0.0
    %509 = vmatprep.subr.mxu0 0.0
    %510 = vmatpush1.xpose.msra.mxu0 0.0
    %511 = vmatprep.subr.mxu0 0.0
    %512 = vmatpush1.xpose.msra.mxu0 0.0
    %513 = vmatprep.subr.mxu0 0.0
    %514 = vmatpush1.xpose.msra.mxu0 0.0
    %515 = vmatprep.subr.mxu0 0.0
    %516 = vmatpush1.xpose.msra.mxu0 0.0
    %517 = vmatprep.subr.mxu0 0.0
    %518 = vmatpush1.xpose.msra.mxu0 0.0
    %519 = vmatprep.subr.mxu0 0.0
    %520 = vmatpush1.xpose.msra.mxu0 0.0
    %521 = vmatprep.subr.mxu0 0.0
    %522 = vmatpush1.xpose.msra.mxu0 %v489
    %523 = vmatprep.subr.mxu0 0.0
    %524 = vmatpush2.xpose.msra.mxu0 0.0
    %525 = vmatprep.subr.mxu0 0.0
    %526 = vmatpush2.xpose.msra.mxu0 0.0
    %527 = vmatprep.subr.mxu0 0.0
    %528 = vmatpush2.xpose.msra.mxu0 0.0
    %529 = vmatprep.subr.mxu0 0.0
    %530 = vmatpush2.xpose.msra.mxu0 0.0
    %531 = vmatprep.subr.mxu0 0.0
    %532 = vmatpush2.xpose.msra.mxu0 0.0
    %533 = vmatprep.subr.mxu0 0.0
    %534 = vmatpush2.xpose.msra.mxu0 0.0
    %535 = vmatprep.subr.mxu0 0.0
    %536 = vmatpush2.xpose.msra.mxu0 0.0
    %537 = vmatprep.subr.mxu0 0.0
    %538 = vmatpush2.xpose.msra.mxu0 0.0
    %539 = vmatprep.subr.mxu0 0.0
    %540 = vmatpush2.xpose.msra.mxu0 0.0
    %541 = vmatprep.subr.mxu0 0.0
    %542 = vmatpush2.xpose.msra.mxu0 0.0
    %543 = vmatprep.subr.mxu0 0.0
    %544 = vmatpush2.xpose.msra.mxu0 0.0
    %545 = vmatprep.subr.mxu0 0.0
    %546 = vmatpush2.xpose.msra.mxu0 0.0
    %547 = vmatprep.subr.mxu0 0.0
    %548 = vmatpush2.xpose.msra.mxu0 0.0
    %549 = vmatprep.subr.mxu0 0.0
    %550 = vmatpush2.xpose.msra.mxu0 0.0
    %551 = vmatprep.subr.mxu0 0.0
    %552 = vmatpush2.xpose.msra.mxu0 0.0
    %553 = vmatprep.subr.mxu0 0.0
    %554 = vmatpush2.xpose.msra.mxu0 0.0
    %555 = vmatprep.mubr.f32.mxu0 0.0
    %556 = vmatmul.mubr.f32.gmra.mxu0 %v486
    %v557 = vpop.f32.mrf.mxu0
    %v558 = vadd.f32 0.0, %v557
    %v559 = vpop.f32.mrf.mxu0
    %560 = vdwg.mxu0
    %v562 = vsel %vm104, %v62, 0
    %v565 = vsel %vm104, %v78, 0
    %567 = vmatprep.subr.mxu0 0.0
    %568 = vmatpush1.xpose.msra.mxu0 0.0
    %569 = vmatprep.subr.mxu0 0.0
    %570 = vmatpush1.xpose.msra.mxu0 0.0
    %571 = vmatprep.subr.mxu0 0.0
    %572 = vmatpush1.xpose.msra.mxu0 0.0
    %573 = vmatprep.subr.mxu0 0.0
    %574 = vmatpush1.xpose.msra.mxu0 0.0
    %575 = vmatprep.subr.mxu0 0.0
    %576 = vmatpush1.xpose.msra.mxu0 0.0
    %577 = vmatprep.subr.mxu0 0.0
    %578 = vmatpush1.xpose.msra.mxu0 0.0
    %579 = vmatprep.subr.mxu0 0.0
    %580 = vmatpush1.xpose.msra.mxu0 0.0
    %581 = vmatprep.subr.mxu0 0.0
    %582 = vmatpush1.xpose.msra.mxu0 0.0
    %583 = vmatprep.subr.mxu0 0.0
    %584 = vmatpush1.xpose.msra.mxu0 0.0
    %585 = vmatprep.subr.mxu0 0.0
    %586 = vmatpush1.xpose.msra.mxu0 0.0
    %587 = vmatprep.subr.mxu0 0.0
    %588 = vmatpush1.xpose.msra.mxu0 0.0
    %589 = vmatprep.subr.mxu0 0.0
    %590 = vmatpush1.xpose.msra.mxu0 0.0
    %591 = vmatprep.subr.mxu0 0.0
    %592 = vmatpush1.xpose.msra.mxu0 0.0
    %593 = vmatprep.subr.mxu0 0.0
    %594 = vmatpush1.xpose.msra.mxu0 0.0
    %595 = vmatprep.subr.mxu0 0.0
    %596 = vmatpush1.xpose.msra.mxu0 0.0
    %597 = vmatprep.subr.mxu0 0.0
    %598 = vmatpush1.xpose.msra.mxu0 %v565
    %599 = vmatprep.subr.mxu0 0.0
    %600 = vmatpush2.xpose.msra.mxu0 0.0
    %601 = vmatprep.subr.mxu0 0.0
    %602 = vmatpush2.xpose.msra.mxu0 0.0
    %603 = vmatprep.subr.mxu0 0.0
    %604 = vmatpush2.xpose.msra.mxu0 0.0
    %605 = vmatprep.subr.mxu0 0.0
    %606 = vmatpush2.xpose.msra.mxu0 0.0
    %607 = vmatprep.subr.mxu0 0.0
    %608 = vmatpush2.xpose.msra.mxu0 0.0
    %609 = vmatprep.subr.mxu0 0.0
    %610 = vmatpush2.xpose.msra.mxu0 0.0
    %611 = vmatprep.subr.mxu0 0.0
    %612 = vmatpush2.xpose.msra.mxu0 0.0
    %613 = vmatprep.subr.mxu0 0.0
    %614 = vmatpush2.xpose.msra.mxu0 0.0
    %615 = vmatprep.subr.mxu0 0.0
    %616 = vmatpush2.xpose.msra.mxu0 0.0
    %617 = vmatprep.subr.mxu0 0.0
    %618 = vmatpush2.xpose.msra.mxu0 0.0
    %619 = vmatprep.subr.mxu0 0.0
    %620 = vmatpush2.xpose.msra.mxu0 0.0
    %621 = vmatprep.subr.mxu0 0.0
    %622 = vmatpush2.xpose.msra.mxu0 0.0
    %623 = vmatprep.subr.mxu0 0.0
    %624 = vmatpush2.xpose.msra.mxu0 0.0
    %625 = vmatprep.subr.mxu0 0.0
    %626 = vmatpush2.xpose.msra.mxu0 0.0
    %627 = vmatprep.subr.mxu0 0.0
    %628 = vmatpush2.xpose.msra.mxu0 0.0
    %629 = vmatprep.subr.mxu0 0.0
    %630 = vmatpush2.xpose.msra.mxu0 0.0
    %631 = vmatprep.mubr.f32.mxu0 0.0
    %632 = vmatmul.mubr.f32.gmra.mxu0 %v562
    %v633 = vpop.f32.mrf.mxu0
    %v634 = vadd.f32 0.0, %v633
    %v635 = vpop.f32.mrf.mxu0
    %636 = vdwg.mxu0
    %v638 = vsel %vm104, %v63, 0
    %v641 = vsel %vm104, %v79, 0
    %643 = vmatprep.subr.mxu0 0.0
    %644 = vmatpush1.xpose.msra.mxu0 0.0
    %645 = vmatprep.subr.mxu0 0.0
    %646 = vmatpush1.xpose.msra.mxu0 0.0
    %647 = vmatprep.subr.mxu0 0.0
    %648 = vmatpush1.xpose.msra.mxu0 0.0
    %649 = vmatprep.subr.mxu0 0.0
    %650 = vmatpush1.xpose.msra.mxu0 0.0
    %651 = vmatprep.subr.mxu0 0.0
    %652 = vmatpush1.xpose.msra.mxu0 0.0
    %653 = vmatprep.subr.mxu0 0.0
    %654 = vmatpush1.xpose.msra.mxu0 0.0
    %655 = vmatprep.subr.mxu0 0.0
    %656 = vmatpush1.xpose.msra.mxu0 0.0
    %657 = vmatprep.subr.mxu0 0.0
    %658 = vmatpush1.xpose.msra.mxu0 0.0
    %659 = vmatprep.subr.mxu0 0.0
    %660 = vmatpush1.xpose.msra.mxu0 0.0
    %661 = vmatprep.subr.mxu0 0.0
    %662 = vmatpush1.xpose.msra.mxu0 0.0
    %663 = vmatprep.subr.mxu0 0.0
    %664 = vmatpush1.xpose.msra.mxu0 0.0
    %665 = vmatprep.subr.mxu0 0.0
    %666 = vmatpush1.xpose.msra.mxu0 0.0
    %667 = vmatprep.subr.mxu0 0.0
    %668 = vmatpush1.xpose.msra.mxu0 0.0
    %669 = vmatprep.subr.mxu0 0.0
    %670 = vmatpush1.xpose.msra.mxu0 0.0
    %671 = vmatprep.subr.mxu0 0.0
    %672 = vmatpush1.xpose.msra.mxu0 0.0
    %673 = vmatprep.subr.mxu0 0.0
    %674 = vmatpush1.xpose.msra.mxu0 %v641
    %675 = vmatprep.subr.mxu0 0.0
    %676 = vmatpush2.xpose.msra.mxu0 0.0
    %677 = vmatprep.subr.mxu0 0.0
    %678 = vmatpush2.xpose.msra.mxu0 0.0
    %679 = vmatprep.subr.mxu0 0.0
    %680 = vmatpush2.xpose.msra.mxu0 0.0
    %681 = vmatprep.subr.mxu0 0.0
    %682 = vmatpush2.xpose.msra.mxu0 0.0
    %683 = vmatprep.subr.mxu0 0.0
    %684 = vmatpush2.xpose.msra.mxu0 0.0
    %685 = vmatprep.subr.mxu0 0.0
    %686 = vmatpush2.xpose.msra.mxu0 0.0
    %687 = vmatprep.subr.mxu0 0.0
    %688 = vmatpush2.xpose.msra.mxu0 0.0
    %689 = vmatprep.subr.mxu0 0.0
    %690 = vmatpush2.xpose.msra.mxu0 0.0
    %691 = vmatprep.subr.mxu0 0.0
    %692 = vmatpush2.xpose.msra.mxu0 0.0
    %693 = vmatprep.subr.mxu0 0.0
    %694 = vmatpush2.xpose.msra.mxu0 0.0
    %695 = vmatprep.subr.mxu0 0.0
    %696 = vmatpush2.xpose.msra.mxu0 0.0
    %697 = vmatprep.subr.mxu0 0.0
    %698 = vmatpush2.xpose.msra.mxu0 0.0
    %699 = vmatprep.subr.mxu0 0.0
    %700 = vmatpush2.xpose.msra.mxu0 0.0
    %701 = vmatprep.subr.mxu0 0.0
    %702 = vmatpush2.xpose.msra.mxu0 0.0
    %703 = vmatprep.subr.mxu0 0.0
    %704 = vmatpush2.xpose.msra.mxu0 0.0
    %705 = vmatprep.subr.mxu0 0.0
    %706 = vmatpush2.xpose.msra.mxu0 0.0
    %707 = vmatprep.mubr.f32.mxu0 0.0
    %708 = vmatmul.mubr.f32.gmra.mxu0 %v638
    %v709 = vpop.f32.mrf.mxu0
    %v710 = vadd.f32 0.0, %v709
    %v711 = vpop.f32.mrf.mxu0
    %712 = vdwg.mxu0
    %v714 = vsel %vm104, %v64, 0
    %v717 = vsel %vm104, %v80, 0
    %719 = vmatprep.subr.mxu0 0.0
    %720 = vmatpush1.xpose.msra.mxu0 0.0
    %721 = vmatprep.subr.mxu0 0.0
    %722 = vmatpush1.xpose.msra.mxu0 0.0
    %723 = vmatprep.subr.mxu0 0.0
    %724 = vmatpush1.xpose.msra.mxu0 0.0
    %725 = vmatprep.subr.mxu0 0.0
    %726 = vmatpush1.xpose.msra.mxu0 0.0
    %727 = vmatprep.subr.mxu0 0.0
    %728 = vmatpush1.xpose.msra.mxu0 0.0
    %729 = vmatprep.subr.mxu0 0.0
    %730 = vmatpush1.xpose.msra.mxu0 0.0
    %731 = vmatprep.subr.mxu0 0.0
    %732 = vmatpush1.xpose.msra.mxu0 0.0
    %733 = vmatprep.subr.mxu0 0.0
    %734 = vmatpush1.xpose.msra.mxu0 0.0
    %735 = vmatprep.subr.mxu0 0.0
    %736 = vmatpush1.xpose.msra.mxu0 0.0
    %737 = vmatprep.subr.mxu0 0.0
    %738 = vmatpush1.xpose.msra.mxu0 0.0
    %739 = vmatprep.subr.mxu0 0.0
    %740 = vmatpush1.xpose.msra.mxu0 0.0
    %741 = vmatprep.subr.mxu0 0.0
    %742 = vmatpush1.xpose.msra.mxu0 0.0
    %743 = vmatprep.subr.mxu0 0.0
    %744 = vmatpush1.xpose.msra.mxu0 0.0
    %745 = vmatprep.subr.mxu0 0.0
    %746 = vmatpush1.xpose.msra.mxu0 0.0
    %747 = vmatprep.subr.mxu0 0.0
    %748 = vmatpush1.xpose.msra.mxu0 0.0
    %749 = vmatprep.subr.mxu0 0.0
    %750 = vmatpush1.xpose.msra.mxu0 %v717
    %751 = vmatprep.subr.mxu0 0.0
    %752 = vmatpush2.xpose.msra.mxu0 0.0
    %753 = vmatprep.subr.mxu0 0.0
    %754 = vmatpush2.xpose.msra.mxu0 0.0
    %755 = vmatprep.subr.mxu0 0.0
    %756 = vmatpush2.xpose.msra.mxu0 0.0
    %757 = vmatprep.subr.mxu0 0.0
    %758 = vmatpush2.xpose.msra.mxu0 0.0
    %759 = vmatprep.subr.mxu0 0.0
    %760 = vmatpush2.xpose.msra.mxu0 0.0
    %761 = vmatprep.subr.mxu0 0.0
    %762 = vmatpush2.xpose.msra.mxu0 0.0
    %763 = vmatprep.subr.mxu0 0.0
    %764 = vmatpush2.xpose.msra.mxu0 0.0
    %765 = vmatprep.subr.mxu0 0.0
    %766 = vmatpush2.xpose.msra.mxu0 0.0
    %767 = vmatprep.subr.mxu0 0.0
    %768 = vmatpush2.xpose.msra.mxu0 0.0
    %769 = vmatprep.subr.mxu0 0.0
    %770 = vmatpush2.xpose.msra.mxu0 0.0
    %771 = vmatprep.subr.mxu0 0.0
    %772 = vmatpush2.xpose.msra.mxu0 0.0
    %773 = vmatprep.subr.mxu0 0.0
    %774 = vmatpush2.xpose.msra.mxu0 0.0
    %775 = vmatprep.subr.mxu0 0.0
    %776 = vmatpush2.xpose.msra.mxu0 0.0
    %777 = vmatprep.subr.mxu0 0.0
    %778 = vmatpush2.xpose.msra.mxu0 0.0
    %779 = vmatprep.subr.mxu0 0.0
    %780 = vmatpush2.xpose.msra.mxu0 0.0
    %781 = vmatprep.subr.mxu0 0.0
    %782 = vmatpush2.xpose.msra.mxu0 0.0
    %783 = vmatprep.mubr.f32.mxu0 0.0
    %784 = vmatmul.mubr.f32.gmra.mxu0 %v714
    %v785 = vpop.f32.mrf.mxu0
    %v786 = vadd.f32 0.0, %v785
    %v787 = vpop.f32.mrf.mxu0
    %788 = vdwg.mxu0
    %v790 = vsel %vm104, %v65, 0
    %v793 = vsel %vm104, %v81, 0
    %795 = vmatprep.subr.mxu0 0.0
    %796 = vmatpush1.xpose.msra.mxu0 0.0
    %797 = vmatprep.subr.mxu0 0.0
    %798 = vmatpush1.xpose.msra.mxu0 0.0
    %799 = vmatprep.subr.mxu0 0.0
    %800 = vmatpush1.xpose.msra.mxu0 0.0
    %801 = vmatprep.subr.mxu0 0.0
    %802 = vmatpush1.xpose.msra.mxu0 0.0
    %803 = vmatprep.subr.mxu0 0.0
    %804 = vmatpush1.xpose.msra.mxu0 0.0
    %805 = vmatprep.subr.mxu0 0.0
    %806 = vmatpush1.xpose.msra.mxu0 0.0
    %807 = vmatprep.subr.mxu0 0.0
    %808 = vmatpush1.xpose.msra.mxu0 0.0
    %809 = vmatprep.subr.mxu0 0.0
    %810 = vmatpush1.xpose.msra.mxu0 0.0
    %811 = vmatprep.subr.mxu0 0.0
    %812 = vmatpush1.xpose.msra.mxu0 0.0
    %813 = vmatprep.subr.mxu0 0.0
    %814 = vmatpush1.xpose.msra.mxu0 0.0
    %815 = vmatprep.subr.mxu0 0.0
    %816 = vmatpush1.xpose.msra.mxu0 0.0
    %817 = vmatprep.subr.mxu0 0.0
    %818 = vmatpush1.xpose.msra.mxu0 0.0
    %819 = vmatprep.subr.mxu0 0.0
    %820 = vmatpush1.xpose.msra.mxu0 0.0
    %821 = vmatprep.subr.mxu0 0.0
    %822 = vmatpush1.xpose.msra.mxu0 0.0
    %823 = vmatprep.subr.mxu0 0.0
    %824 = vmatpush1.xpose.msra.mxu0 0.0
    %825 = vmatprep.subr.mxu0 0.0
    %826 = vmatpush1.xpose.msra.mxu0 %v793
    %827 = vmatprep.subr.mxu0 0.0
    %828 = vmatpush2.xpose.msra.mxu0 0.0
    %829 = vmatprep.subr.mxu0 0.0
    %830 = vmatpush2.xpose.msra.mxu0 0.0
    %831 = vmatprep.subr.mxu0 0.0
    %832 = vmatpush2.xpose.msra.mxu0 0.0
    %833 = vmatprep.subr.mxu0 0.0
    %834 = vmatpush2.xpose.msra.mxu0 0.0
    %835 = vmatprep.subr.mxu0 0.0
    %836 = vmatpush2.xpose.msra.mxu0 0.0
    %837 = vmatprep.subr.mxu0 0.0
    %838 = vmatpush2.xpose.msra.mxu0 0.0
    %839 = vmatprep.subr.mxu0 0.0
    %840 = vmatpush2.xpose.msra.mxu0 0.0
    %841 = vmatprep.subr.mxu0 0.0
    %842 = vmatpush2.xpose.msra.mxu0 0.0
    %843 = vmatprep.subr.mxu0 0.0
    %844 = vmatpush2.xpose.msra.mxu0 0.0
    %845 = vmatprep.subr.mxu0 0.0
    %846 = vmatpush2.xpose.msra.mxu0 0.0
    %847 = vmatprep.subr.mxu0 0.0
    %848 = vmatpush2.xpose.msra.mxu0 0.0
    %849 = vmatprep.subr.mxu0 0.0
    %850 = vmatpush2.xpose.msra.mxu0 0.0
    %851 = vmatprep.subr.mxu0 0.0
    %852 = vmatpush2.xpose.msra.mxu0 0.0
    %853 = vmatprep.subr.mxu0 0.0
    %854 = vmatpush2.xpose.msra.mxu0 0.0
    %855 = vmatprep.subr.mxu0 0.0
    %856 = vmatpush2.xpose.msra.mxu0 0.0
    %857 = vmatprep.subr.mxu0 0.0
    %858 = vmatpush2.xpose.msra.mxu0 0.0
    %859 = vmatprep.mubr.f32.mxu0 0.0
    %860 = vmatmul.mubr.f32.gmra.mxu0 %v790
    %v861 = vpop.f32.mrf.mxu0
    %v862 = vadd.f32 0.0, %v861
    %v863 = vpop.f32.mrf.mxu0
    %864 = vdwg.mxu0
    %v866 = vsel %vm104, %v66, 0
    %v869 = vsel %vm104, %v82, 0
    %871 = vmatprep.subr.mxu0 0.0
    %872 = vmatpush1.xpose.msra.mxu0 0.0
    %873 = vmatprep.subr.mxu0 0.0
    %874 = vmatpush1.xpose.msra.mxu0 0.0
    %875 = vmatprep.subr.mxu0 0.0
    %876 = vmatpush1.xpose.msra.mxu0 0.0
    %877 = vmatprep.subr.mxu0 0.0
    %878 = vmatpush1.xpose.msra.mxu0 0.0
    %879 = vmatprep.subr.mxu0 0.0
    %880 = vmatpush1.xpose.msra.mxu0 0.0
    %881 = vmatprep.subr.mxu0 0.0
    %882 = vmatpush1.xpose.msra.mxu0 0.0
    %883 = vmatprep.subr.mxu0 0.0
    %884 = vmatpush1.xpose.msra.mxu0 0.0
    %885 = vmatprep.subr.mxu0 0.0
    %886 = vmatpush1.xpose.msra.mxu0 0.0
    %887 = vmatprep.subr.mxu0 0.0
    %888 = vmatpush1.xpose.msra.mxu0 0.0
    %889 = vmatprep.subr.mxu0 0.0
    %890 = vmatpush1.xpose.msra.mxu0 0.0
    %891 = vmatprep.subr.mxu0 0.0
    %892 = vmatpush1.xpose.msra.mxu0 0.0
    %893 = vmatprep.subr.mxu0 0.0
    %894 = vmatpush1.xpose.msra.mxu0 0.0
    %895 = vmatprep.subr.mxu0 0.0
    %896 = vmatpush1.xpose.msra.mxu0 0.0
    %897 = vmatprep.subr.mxu0 0.0
    %898 = vmatpush1.xpose.msra.mxu0 0.0
    %899 = vmatprep.subr.mxu0 0.0
    %900 = vmatpush1.xpose.msra.mxu0 0.0
    %901 = vmatprep.subr.mxu0 0.0
    %902 = vmatpush1.xpose.msra.mxu0 %v869
    %903 = vmatprep.subr.mxu0 0.0
    %904 = vmatpush2.xpose.msra.mxu0 0.0
    %905 = vmatprep.subr.mxu0 0.0
    %906 = vmatpush2.xpose.msra.mxu0 0.0
    %907 = vmatprep.subr.mxu0 0.0
    %908 = vmatpush2.xpose.msra.mxu0 0.0
    %909 = vmatprep.subr.mxu0 0.0
    %910 = vmatpush2.xpose.msra.mxu0 0.0
    %911 = vmatprep.subr.mxu0 0.0
    %912 = vmatpush2.xpose.msra.mxu0 0.0
    %913 = vmatprep.subr.mxu0 0.0
    %914 = vmatpush2.xpose.msra.mxu0 0.0
    %915 = vmatprep.subr.mxu0 0.0
    %916 = vmatpush2.xpose.msra.mxu0 0.0
    %917 = vmatprep.subr.mxu0 0.0
    %918 = vmatpush2.xpose.msra.mxu0 0.0
    %919 = vmatprep.subr.mxu0 0.0
    %920 = vmatpush2.xpose.msra.mxu0 0.0
    %921 = vmatprep.subr.mxu0 0.0
    %922 = vmatpush2.xpose.msra.mxu0 0.0
    %923 = vmatprep.subr.mxu0 0.0
    %924 = vmatpush2.xpose.msra.mxu0 0.0
    %925 = vmatprep.subr.mxu0 0.0
    %926 = vmatpush2.xpose.msra.mxu0 0.0
    %927 = vmatprep.subr.mxu0 0.0
    %928 = vmatpush2.xpose.msra.mxu0 0.0
    %929 = vmatprep.subr.mxu0 0.0
    %930 = vmatpush2.xpose.msra.mxu0 0.0
    %931 = vmatprep.subr.mxu0 0.0
    %932 = vmatpush2.xpose.msra.mxu0 0.0
    %933 = vmatprep.subr.mxu0 0.0
    %934 = vmatpush2.xpose.msra.mxu0 0.0
    %935 = vmatprep.mubr.f32.mxu0 0.0
    %936 = vmatmul.mubr.f32.gmra.mxu0 %v866
    %v937 = vpop.f32.mrf.mxu0
    %v938 = vadd.f32 0.0, %v937
    %v939 = vpop.f32.mrf.mxu0
    %940 = vdwg.mxu0
    %v942 = vsel %vm104, %v67, 0
    %v945 = vsel %vm104, %v83, 0
    %947 = vmatprep.subr.mxu0 0.0
    %948 = vmatpush1.xpose.msra.mxu0 0.0
    %949 = vmatprep.subr.mxu0 0.0
    %950 = vmatpush1.xpose.msra.mxu0 0.0
    %951 = vmatprep.subr.mxu0 0.0
    %952 = vmatpush1.xpose.msra.mxu0 0.0
    %953 = vmatprep.subr.mxu0 0.0
    %954 = vmatpush1.xpose.msra.mxu0 0.0
    %955 = vmatprep.subr.mxu0 0.0
    %956 = vmatpush1.xpose.msra.mxu0 0.0
    %957 = vmatprep.subr.mxu0 0.0
    %958 = vmatpush1.xpose.msra.mxu0 0.0
    %959 = vmatprep.subr.mxu0 0.0
    %960 = vmatpush1.xpose.msra.mxu0 0.0
    %961 = vmatprep.subr.mxu0 0.0
    %962 = vmatpush1.xpose.msra.mxu0 0.0
    %963 = vmatprep.subr.mxu0 0.0
    %964 = vmatpush1.xpose.msra.mxu0 0.0
    %965 = vmatprep.subr.mxu0 0.0
    %966 = vmatpush1.xpose.msra.mxu0 0.0
    %967 = vmatprep.subr.mxu0 0.0
    %968 = vmatpush1.xpose.msra.mxu0 0.0
    %969 = vmatprep.subr.mxu0 0.0
    %970 = vmatpush1.xpose.msra.mxu0 0.0
    %971 = vmatprep.subr.mxu0 0.0
    %972 = vmatpush1.xpose.msra.mxu0 0.0
    %973 = vmatprep.subr.mxu0 0.0
    %974 = vmatpush1.xpose.msra.mxu0 0.0
    %975 = vmatprep.subr.mxu0 0.0
    %976 = vmatpush1.xpose.msra.mxu0 0.0
    %977 = vmatprep.subr.mxu0 0.0
    %978 = vmatpush1.xpose.msra.mxu0 %v945
    %979 = vmatprep.subr.mxu0 0.0
    %980 = vmatpush2.xpose.msra.mxu0 0.0
    %981 = vmatprep.subr.mxu0 0.0
    %982 = vmatpush2.xpose.msra.mxu0 0.0
    %983 = vmatprep.subr.mxu0 0.0
    %984 = vmatpush2.xpose.msra.mxu0 0.0
    %985 = vmatprep.subr.mxu0 0.0
    %986 = vmatpush2.xpose.msra.mxu0 0.0
    %987 = vmatprep.subr.mxu0 0.0
    %988 = vmatpush2.xpose.msra.mxu0 0.0
    %989 = vmatprep.subr.mxu0 0.0
    %990 = vmatpush2.xpose.msra.mxu0 0.0
    %991 = vmatprep.subr.mxu0 0.0
    %992 = vmatpush2.xpose.msra.mxu0 0.0
    %993 = vmatprep.subr.mxu0 0.0
    %994 = vmatpush2.xpose.msra.mxu0 0.0
    %995 = vmatprep.subr.mxu0 0.0
    %996 = vmatpush2.xpose.msra.mxu0 0.0
    %997 = vmatprep.subr.mxu0 0.0
    %998 = vmatpush2.xpose.msra.mxu0 0.0
    %999 = vmatprep.subr.mxu0 0.0
    %1000 = vmatpush2.xpose.msra.mxu0 0.0
    %1001 = vmatprep.subr.mxu0 0.0
    %1002 = vmatpush2.xpose.msra.mxu0 0.0
    %1003 = vmatprep.subr.mxu0 0.0
    %1004 = vmatpush2.xpose.msra.mxu0 0.0
    %1005 = vmatprep.subr.mxu0 0.0
    %1006 = vmatpush2.xpose.msra.mxu0 0.0
    %1007 = vmatprep.subr.mxu0 0.0
    %1008 = vmatpush2.xpose.msra.mxu0 0.0
    %1009 = vmatprep.subr.mxu0 0.0
    %1010 = vmatpush2.xpose.msra.mxu0 0.0
    %1011 = vmatprep.mubr.f32.mxu0 0.0
    %1012 = vmatmul.mubr.f32.gmra.mxu0 %v942
    %v1013 = vpop.f32.mrf.mxu0
    %v1014 = vadd.f32 0.0, %v1013
    %v1015 = vpop.f32.mrf.mxu0
    %1016 = vdwg.mxu0
    %v1018 = vsel %vm104, %v68, 0
    %v1021 = vsel %vm104, %v84, 0
    %1023 = vmatprep.subr.mxu0 0.0
    %1024 = vmatpush1.xpose.msra.mxu0 0.0
    %1025 = vmatprep.subr.mxu0 0.0
    %1026 = vmatpush1.xpose.msra.mxu0 0.0
    %1027 = vmatprep.subr.mxu0 0.0
    %1028 = vmatpush1.xpose.msra.mxu0 0.0
    %1029 = vmatprep.subr.mxu0 0.0
    %1030 = vmatpush1.xpose.msra.mxu0 0.0
    %1031 = vmatprep.subr.mxu0 0.0
    %1032 = vmatpush1.xpose.msra.mxu0 0.0
    %1033 = vmatprep.subr.mxu0 0.0
    %1034 = vmatpush1.xpose.msra.mxu0 0.0
    %1035 = vmatprep.subr.mxu0 0.0
    %1036 = vmatpush1.xpose.msra.mxu0 0.0
    %1037 = vmatprep.subr.mxu0 0.0
    %1038 = vmatpush1.xpose.msra.mxu0 0.0
    %1039 = vmatprep.subr.mxu0 0.0
    %1040 = vmatpush1.xpose.msra.mxu0 0.0
    %1041 = vmatprep.subr.mxu0 0.0
    %1042 = vmatpush1.xpose.msra.mxu0 0.0
    %1043 = vmatprep.subr.mxu0 0.0
    %1044 = vmatpush1.xpose.msra.mxu0 0.0
    %1045 = vmatprep.subr.mxu0 0.0
    %1046 = vmatpush1.xpose.msra.mxu0 0.0
    %1047 = vmatprep.subr.mxu0 0.0
    %1048 = vmatpush1.xpose.msra.mxu0 0.0
    %1049 = vmatprep.subr.mxu0 0.0
    %1050 = vmatpush1.xpose.msra.mxu0 0.0
    %1051 = vmatprep.subr.mxu0 0.0
    %1052 = vmatpush1.xpose.msra.mxu0 0.0
    %1053 = vmatprep.subr.mxu0 0.0
    %1054 = vmatpush1.xpose.msra.mxu0 %v1021
    %1055 = vmatprep.subr.mxu0 0.0
    %1056 = vmatpush2.xpose.msra.mxu0 0.0
    %1057 = vmatprep.subr.mxu0 0.0
    %1058 = vmatpush2.xpose.msra.mxu0 0.0
    %1059 = vmatprep.subr.mxu0 0.0
    %1060 = vmatpush2.xpose.msra.mxu0 0.0
    %1061 = vmatprep.subr.mxu0 0.0
    %1062 = vmatpush2.xpose.msra.mxu0 0.0
    %1063 = vmatprep.subr.mxu0 0.0
    %1064 = vmatpush2.xpose.msra.mxu0 0.0
    %1065 = vmatprep.subr.mxu0 0.0
    %1066 = vmatpush2.xpose.msra.mxu0 0.0
    %1067 = vmatprep.subr.mxu0 0.0
    %1068 = vmatpush2.xpose.msra.mxu0 0.0
    %1069 = vmatprep.subr.mxu0 0.0
    %1070 = vmatpush2.xpose.msra.mxu0 0.0
    %1071 = vmatprep.subr.mxu0 0.0
    %1072 = vmatpush2.xpose.msra.mxu0 0.0
    %1073 = vmatprep.subr.mxu0 0.0
    %1074 = vmatpush2.xpose.msra.mxu0 0.0
    %1075 = vmatprep.subr.mxu0 0.0
    %1076 = vmatpush2.xpose.msra.mxu0 0.0
    %1077 = vmatprep.subr.mxu0 0.0
    %1078 = vmatpush2.xpose.msra.mxu0 0.0
    %1079 = vmatprep.subr.mxu0 0.0
    %1080 = vmatpush2.xpose.msra.mxu0 0.0
    %1081 = vmatprep.subr.mxu0 0.0
    %1082 = vmatpush2.xpose.msra.mxu0 0.0
    %1083 = vmatprep.subr.mxu0 0.0
    %1084 = vmatpush2.xpose.msra.mxu0 0.0
    %1085 = vmatprep.subr.mxu0 0.0
    %1086 = vmatpush2.xpose.msra.mxu0 0.0
    %1087 = vmatprep.mubr.f32.mxu0 0.0
    %1088 = vmatmul.mubr.f32.gmra.mxu0 %v1018
    %v1089 = vpop.f32.mrf.mxu0
    %v1090 = vadd.f32 0.0, %v1089
    %v1091 = vpop.f32.mrf.mxu0
    %1092 = vdwg.mxu0
    %v1094 = vsel %vm104, %v69, 0
    %v1097 = vsel %vm104, %v85, 0
    %1099 = vmatprep.subr.mxu0 0.0
    %1100 = vmatpush1.xpose.msra.mxu0 0.0
    %1101 = vmatprep.subr.mxu0 0.0
    %1102 = vmatpush1.xpose.msra.mxu0 0.0
    %1103 = vmatprep.subr.mxu0 0.0
    %1104 = vmatpush1.xpose.msra.mxu0 0.0
    %1105 = vmatprep.subr.mxu0 0.0
    %1106 = vmatpush1.xpose.msra.mxu0 0.0
    %1107 = vmatprep.subr.mxu0 0.0
    %1108 = vmatpush1.xpose.msra.mxu0 0.0
    %1109 = vmatprep.subr.mxu0 0.0
    %1110 = vmatpush1.xpose.msra.mxu0 0.0
    %1111 = vmatprep.subr.mxu0 0.0
    %1112 = vmatpush1.xpose.msra.mxu0 0.0
    %1113 = vmatprep.subr.mxu0 0.0
    %1114 = vmatpush1.xpose.msra.mxu0 0.0
    %1115 = vmatprep.subr.mxu0 0.0
    %1116 = vmatpush1.xpose.msra.mxu0 0.0
    %1117 = vmatprep.subr.mxu0 0.0
    %1118 = vmatpush1.xpose.msra.mxu0 0.0
    %1119 = vmatprep.subr.mxu0 0.0
    %1120 = vmatpush1.xpose.msra.mxu0 0.0
    %1121 = vmatprep.subr.mxu0 0.0
    %1122 = vmatpush1.xpose.msra.mxu0 0.0
    %1123 = vmatprep.subr.mxu0 0.0
    %1124 = vmatpush1.xpose.msra.mxu0 0.0
    %1125 = vmatprep.subr.mxu0 0.0
    %1126 = vmatpush1.xpose.msra.mxu0 0.0
    %1127 = vmatprep.subr.mxu0 0.0
    %1128 = vmatpush1.xpose.msra.mxu0 0.0
    %1129 = vmatprep.subr.mxu0 0.0
    %1130 = vmatpush1.xpose.msra.mxu0 %v1097
    %1131 = vmatprep.subr.mxu0 0.0
    %1132 = vmatpush2.xpose.msra.mxu0 0.0
    %1133 = vmatprep.subr.mxu0 0.0
    %1134 = vmatpush2.xpose.msra.mxu0 0.0
    %1135 = vmatprep.subr.mxu0 0.0
    %1136 = vmatpush2.xpose.msra.mxu0 0.0
    %1137 = vmatprep.subr.mxu0 0.0
    %1138 = vmatpush2.xpose.msra.mxu0 0.0
    %1139 = vmatprep.subr.mxu0 0.0
    %1140 = vmatpush2.xpose.msra.mxu0 0.0
    %1141 = vmatprep.subr.mxu0 0.0
    %1142 = vmatpush2.xpose.msra.mxu0 0.0
    %1143 = vmatprep.subr.mxu0 0.0
    %1144 = vmatpush2.xpose.msra.mxu0 0.0
    %1145 = vmatprep.subr.mxu0 0.0
    %1146 = vmatpush2.xpose.msra.mxu0 0.0
    %1147 = vmatprep.subr.mxu0 0.0
    %1148 = vmatpush2.xpose.msra.mxu0 0.0
    %1149 = vmatprep.subr.mxu0 0.0
    %1150 = vmatpush2.xpose.msra.mxu0 0.0
    %1151 = vmatprep.subr.mxu0 0.0
    %1152 = vmatpush2.xpose.msra.mxu0 0.0
    %1153 = vmatprep.subr.mxu0 0.0
    %1154 = vmatpush2.xpose.msra.mxu0 0.0
    %1155 = vmatprep.subr.mxu0 0.0
    %1156 = vmatpush2.xpose.msra.mxu0 0.0
    %1157 = vmatprep.subr.mxu0 0.0
    %1158 = vmatpush2.xpose.msra.mxu0 0.0
    %1159 = vmatprep.subr.mxu0 0.0
    %1160 = vmatpush2.xpose.msra.mxu0 0.0
    %1161 = vmatprep.subr.mxu0 0.0
    %1162 = vmatpush2.xpose.msra.mxu0 0.0
    %1163 = vmatprep.mubr.f32.mxu0 0.0
    %1164 = vmatmul.mubr.f32.gmra.mxu0 %v1094
    %v1165 = vpop.f32.mrf.mxu0
    %v1166 = vadd.f32 0.0, %v1165
    %v1167 = vpop.f32.mrf.mxu0
    %1168 = vdwg.mxu0
    %v1170 = vsel %vm104, %v70, 0
    %v1173 = vsel %vm104, %v86, 0
    %1175 = vmatprep.subr.mxu0 0.0
    %1176 = vmatpush1.xpose.msra.mxu0 0.0
    %1177 = vmatprep.subr.mxu0 0.0
    %1178 = vmatpush1.xpose.msra.mxu0 0.0
    %1179 = vmatprep.subr.mxu0 0.0
    %1180 = vmatpush1.xpose.msra.mxu0 0.0
    %1181 = vmatprep.subr.mxu0 0.0
    %1182 = vmatpush1.xpose.msra.mxu0 0.0
    %1183 = vmatprep.subr.mxu0 0.0
    %1184 = vmatpush1.xpose.msra.mxu0 0.0
    %1185 = vmatprep.subr.mxu0 0.0
    %1186 = vmatpush1.xpose.msra.mxu0 0.0
    %1187 = vmatprep.subr.mxu0 0.0
    %1188 = vmatpush1.xpose.msra.mxu0 0.0
    %1189 = vmatprep.subr.mxu0 0.0
    %1190 = vmatpush1.xpose.msra.mxu0 0.0
    %1191 = vmatprep.subr.mxu0 0.0
    %1192 = vmatpush1.xpose.msra.mxu0 0.0
    %1193 = vmatprep.subr.mxu0 0.0
    %1194 = vmatpush1.xpose.msra.mxu0 0.0
    %1195 = vmatprep.subr.mxu0 0.0
    %1196 = vmatpush1.xpose.msra.mxu0 0.0
    %1197 = vmatprep.subr.mxu0 0.0
    %1198 = vmatpush1.xpose.msra.mxu0 0.0
    %1199 = vmatprep.subr.mxu0 0.0
    %1200 = vmatpush1.xpose.msra.mxu0 0.0
    %1201 = vmatprep.subr.mxu0 0.0
    %1202 = vmatpush1.xpose.msra.mxu0 0.0
    %1203 = vmatprep.subr.mxu0 0.0
    %1204 = vmatpush1.xpose.msra.mxu0 0.0
    %1205 = vmatprep.subr.mxu0 0.0
    %1206 = vmatpush1.xpose.msra.mxu0 %v1173
    %1207 = vmatprep.subr.mxu0 0.0
    %1208 = vmatpush2.xpose.msra.mxu0 0.0
    %1209 = vmatprep.subr.mxu0 0.0
    %1210 = vmatpush2.xpose.msra.mxu0 0.0
    %1211 = vmatprep.subr.mxu0 0.0
    %1212 = vmatpush2.xpose.msra.mxu0 0.0
    %1213 = vmatprep.subr.mxu0 0.0
    %1214 = vmatpush2.xpose.msra.mxu0 0.0
    %1215 = vmatprep.subr.mxu0 0.0
    %1216 = vmatpush2.xpose.msra.mxu0 0.0
    %1217 = vmatprep.subr.mxu0 0.0
    %1218 = vmatpush2.xpose.msra.mxu0 0.0
    %1219 = vmatprep.subr.mxu0 0.0
    %1220 = vmatpush2.xpose.msra.mxu0 0.0
    %1221 = vmatprep.subr.mxu0 0.0
    %1222 = vmatpush2.xpose.msra.mxu0 0.0
    %1223 = vmatprep.subr.mxu0 0.0
    %1224 = vmatpush2.xpose.msra.mxu0 0.0
    %1225 = vmatprep.subr.mxu0 0.0
    %1226 = vmatpush2.xpose.msra.mxu0 0.0
    %1227 = vmatprep.subr.mxu0 0.0
    %1228 = vmatpush2.xpose.msra.mxu0 0.0
    %1229 = vmatprep.subr.mxu0 0.0
    %1230 = vmatpush2.xpose.msra.mxu0 0.0
    %1231 = vmatprep.subr.mxu0 0.0
    %1232 = vmatpush2.xpose.msra.mxu0 0.0
    %1233 = vmatprep.subr.mxu0 0.0
    %1234 = vmatpush2.xpose.msra.mxu0 0.0
    %1235 = vmatprep.subr.mxu0 0.0
    %1236 = vmatpush2.xpose.msra.mxu0 0.0
    %1237 = vmatprep.subr.mxu0 0.0
    %1238 = vmatpush2.xpose.msra.mxu0 0.0
    %1239 = vmatprep.mubr.f32.mxu0 0.0
    %1240 = vmatmul.mubr.f32.gmra.mxu0 %v1170
    %v1241 = vpop.f32.mrf.mxu0
    %v1242 = vadd.f32 0.0, %v1241
    %v1243 = vpop.f32.mrf.mxu0
    %1244 = vdwg.mxu0
    %v1246 = vsel %vm104, %v71, 0
    %v1249 = vsel %vm104, %v87, 0
    %1251 = vmatprep.subr.mxu0 0.0
    %1252 = vmatpush1.xpose.msra.mxu0 0.0
    %1253 = vmatprep.subr.mxu0 0.0
    %1254 = vmatpush1.xpose.msra.mxu0 0.0
    %1255 = vmatprep.subr.mxu0 0.0
    %1256 = vmatpush1.xpose.msra.mxu0 0.0
    %1257 = vmatprep.subr.mxu0 0.0
    %1258 = vmatpush1.xpose.msra.mxu0 0.0
    %1259 = vmatprep.subr.mxu0 0.0
    %1260 = vmatpush1.xpose.msra.mxu0 0.0
    %1261 = vmatprep.subr.mxu0 0.0
    %1262 = vmatpush1.xpose.msra.mxu0 0.0
    %1263 = vmatprep.subr.mxu0 0.0
    %1264 = vmatpush1.xpose.msra.mxu0 0.0
    %1265 = vmatprep.subr.mxu0 0.0
    %1266 = vmatpush1.xpose.msra.mxu0 0.0
    %1267 = vmatprep.subr.mxu0 0.0
    %1268 = vmatpush1.xpose.msra.mxu0 0.0
    %1269 = vmatprep.subr.mxu0 0.0
    %1270 = vmatpush1.xpose.msra.mxu0 0.0
    %1271 = vmatprep.subr.mxu0 0.0
    %1272 = vmatpush1.xpose.msra.mxu0 0.0
    %1273 = vmatprep.subr.mxu0 0.0
    %1274 = vmatpush1.xpose.msra.mxu0 0.0
    %1275 = vmatprep.subr.mxu0 0.0
    %1276 = vmatpush1.xpose.msra.mxu0 0.0
    %1277 = vmatprep.subr.mxu0 0.0
    %1278 = vmatpush1.xpose.msra.mxu0 0.0
    %1279 = vmatprep.subr.mxu0 0.0
    %1280 = vmatpush1.xpose.msra.mxu0 0.0
    %1281 = vmatprep.subr.mxu0 0.0
    %1282 = vmatpush1.xpose.msra.mxu0 %v1249
    %1283 = vmatprep.subr.mxu0 0.0
    %1284 = vmatpush2.xpose.msra.mxu0 0.0
    %1285 = vmatprep.subr.mxu0 0.0
    %1286 = vmatpush2.xpose.msra.mxu0 0.0
    %1287 = vmatprep.subr.mxu0 0.0
    %1288 = vmatpush2.xpose.msra.mxu0 0.0
    %1289 = vmatprep.subr.mxu0 0.0
    %1290 = vmatpush2.xpose.msra.mxu0 0.0
    %1291 = vmatprep.subr.mxu0 0.0
    %1292 = vmatpush2.xpose.msra.mxu0 0.0
    %1293 = vmatprep.subr.mxu0 0.0
    %1294 = vmatpush2.xpose.msra.mxu0 0.0
    %1295 = vmatprep.subr.mxu0 0.0
    %1296 = vmatpush2.xpose.msra.mxu0 0.0
    %1297 = vmatprep.subr.mxu0 0.0
    %1298 = vmatpush2.xpose.msra.mxu0 0.0
    %1299 = vmatprep.subr.mxu0 0.0
    %1300 = vmatpush2.xpose.msra.mxu0 0.0
    %1301 = vmatprep.subr.mxu0 0.0
    %1302 = vmatpush2.xpose.msra.mxu0 0.0
    %1303 = vmatprep.subr.mxu0 0.0
    %1304 = vmatpush2.xpose.msra.mxu0 0.0
    %1305 = vmatprep.subr.mxu0 0.0
    %1306 = vmatpush2.xpose.msra.mxu0 0.0
    %1307 = vmatprep.subr.mxu0 0.0
    %1308 = vmatpush2.xpose.msra.mxu0 0.0
    %1309 = vmatprep.subr.mxu0 0.0
    %1310 = vmatpush2.xpose.msra.mxu0 0.0
    %1311 = vmatprep.subr.mxu0 0.0
    %1312 = vmatpush2.xpose.msra.mxu0 0.0
    %1313 = vmatprep.subr.mxu0 0.0
    %1314 = vmatpush2.xpose.msra.mxu0 0.0
    %1315 = vmatprep.mubr.f32.mxu0 0.0
    %1316 = vmatmul.mubr.f32.gmra.mxu0 %v1246
    %v1317 = vpop.f32.mrf.mxu0
    %v1318 = vadd.f32 0.0, %v1317
    %v1319 = vpop.f32.mrf.mxu0
    %1320 = vdwg.mxu0
    %v1321 = vmul.f32 %v178, 0.25
    %v1322 = vmul.f32 %v254, 0.25
    %v1323 = vmul.f32 %v330, 0.25
    %v1324 = vmul.f32 %v406, 0.25
    %v1325 = vmul.f32 %v482, 0.25
    %v1326 = vmul.f32 %v558, 0.25
    %v1327 = vmul.f32 %v634, 0.25
    %v1328 = vmul.f32 %v710, 0.25
    %v1329 = vmul.f32 %v786, 0.25
    %v1330 = vmul.f32 %v862, 0.25
    %v1331 = vmul.f32 %v938, 0.25
    %v1332 = vmul.f32 %v1014, 0.25
    %v1333 = vmul.f32 %v1090, 0.25
    %v1334 = vmul.f32 %v1166, 0.25
    %v1335 = vmul.f32 %v1242, 0.25
    %v1336 = vmul.f32 %v1318, 0.25
    %vm1337 = vcmask 64512
    %v1338 = vsel %vm1337, %v1321, -inf
    %1339 = vmax.xlane.f32.xlu0 %v1338
    %v1340 = vpop.xlane.xlu0 %1339
    %v1341 = vsel %vm1337, %v1322, -inf
    %1342 = vmax.xlane.f32.xlu0 %v1341
    %v1343 = vpop.xlane.xlu0 %1342
    %v1344 = vsel %vm1337, %v1323, -inf
    %1345 = vmax.xlane.f32.xlu0 %v1344
    %v1346 = vpop.xlane.xlu0 %1345
    %v1347 = vsel %vm1337, %v1324, -inf
    %1348 = vmax.xlane.f32.xlu0 %v1347
    %v1349 = vpop.xlane.xlu0 %1348
    %v1350 = vsel %vm1337, %v1325, -inf
    %1351 = vmax.xlane.f32.xlu0 %v1350
    %v1352 = vpop.xlane.xlu0 %1351
    %v1353 = vsel %vm1337, %v1326, -inf
    %1354 = vmax.xlane.f32.xlu0 %v1353
    %v1355 = vpop.xlane.xlu0 %1354
    %v1356 = vsel %vm1337, %v1327, -inf
    %1357 = vmax.xlane.f32.xlu0 %v1356
    %v1358 = vpop.xlane.xlu0 %1357
    %v1359 = vsel %vm1337, %v1328, -inf
    %1360 = vmax.xlane.f32.xlu0 %v1359
    %v1361 = vpop.xlane.xlu0 %1360
    %v1362 = vsel %vm1337, %v1329, -inf
    %1363 = vmax.xlane.f32.xlu0 %v1362
    %v1364 = vpop.xlane.xlu0 %1363
    %v1365 = vsel %vm1337, %v1330, -inf
    %1366 = vmax.xlane.f32.xlu0 %v1365
    %v1367 = vpop.xlane.xlu0 %1366
    %v1368 = vsel %vm1337, %v1331, -inf
    %1369 = vmax.xlane.f32.xlu0 %v1368
    %v1370 = vpop.xlane.xlu0 %1369
    %v1371 = vsel %vm1337, %v1332, -inf
    %1372 = vmax.xlane.f32.xlu0 %v1371
    %v1373 = vpop.xlane.xlu0 %1372
    %v1374 = vsel %vm1337, %v1333, -inf
    %1375 = vmax.xlane.f32.xlu0 %v1374
    %v1376 = vpop.xlane.xlu0 %1375
    %v1377 = vsel %vm1337, %v1334, -inf
    %1378 = vmax.xlane.f32.xlu0 %v1377
    %v1379 = vpop.xlane.xlu0 %1378
    %v1380 = vsel %vm1337, %v1335, -inf
    %1381 = vmax.xlane.f32.xlu0 %v1380
    %v1382 = vpop.xlane.xlu0 %1381
    %v1383 = vsel %vm1337, %v1336, -inf
    %1384 = vmax.xlane.f32.xlu0 %v1383
    %v1385 = vpop.xlane.xlu0 %1384
    %v1386 = vsub.f32 %v1321, %v1340
    %v1387 = vsub.f32 %v1322, %v1343
    %v1388 = vsub.f32 %v1323, %v1346
    %v1389 = vsub.f32 %v1324, %v1349
    %v1390 = vsub.f32 %v1325, %v1352
    %v1391 = vsub.f32 %v1326, %v1355
    %v1392 = vsub.f32 %v1327, %v1358
    %v1393 = vsub.f32 %v1328, %v1361
    %v1394 = vsub.f32 %v1329, %v1364
    %v1395 = vsub.f32 %v1330, %v1367
    %v1396 = vsub.f32 %v1331, %v1370
    %v1397 = vsub.f32 %v1332, %v1373
    %v1398 = vsub.f32 %v1333, %v1376
    %v1399 = vsub.f32 %v1334, %v1379
    %v1400 = vsub.f32 %v1335, %v1382
    %v1401 = vsub.f32 %v1336, %v1385
    %v1402 = vmul.f32 %v1386, 1.442695
    %v1403 = vpow.pop %v1402
    %v1404 = vmul.f32 %v1387, 1.442695
    %v1405 = vpow.pop %v1404
    %v1406 = vmul.f32 %v1388, 1.442695
    %v1407 = vpow.pop %v1406
    %v1408 = vmul.f32 %v1389, 1.442695
    %v1409 = vpow.pop %v1408
    %v1410 = vmul.f32 %v1390, 1.442695
    %v1411 = vpow.pop %v1410
    %v1412 = vmul.f32 %v1391, 1.442695
    %v1413 = vpow.pop %v1412
    %v1414 = vmul.f32 %v1392, 1.442695
    %v1415 = vpow.pop %v1414
    %v1416 = vmul.f32 %v1393, 1.442695
    %v1417 = vpow.pop %v1416
    %v1418 = vmul.f32 %v1394, 1.442695
    %v1419 = vpow.pop %v1418
    %v1420 = vmul.f32 %v1395, 1.442695
    %v1421 = vpow.pop %v1420
    %v1422 = vmul.f32 %v1396, 1.442695
    %v1423 = vpow.pop %v1422
    %v1424 = vmul.f32 %v1397, 1.442695
    %v1425 = vpow.pop %v1424
    %v1426 = vmul.f32 %v1398, 1.442695
    %v1427 = vpow.pop %v1426
    %v1428 = vmul.f32 %v1399, 1.442695
    %v1429 = vpow.pop %v1428
    %v1430 = vmul.f32 %v1400, 1.442695
    %v1431 = vpow.pop %v1430
    %v1432 = vmul.f32 %v1401, 1.442695
    %v1433 = vpow.pop %v1432
    %v1434 = vsel %vm1337, %v1403, 0.0
    %1435 = vadd.xlane.f32.xlu0 %v1434
    %v1436 = vpop.xlane.xlu0 %1435
    %v1437 = vsel %vm1337, %v1405, 0.0
    %1438 = vadd.xlane.f32.xlu0 %v1437
    %v1439 = vpop.xlane.xlu0 %1438
    %v1440 = vsel %vm1337, %v1407, 0.0
    %1441 = vadd.xlane.f32.xlu0 %v1440
    %v1442 = vpop.xlane.xlu0 %1441
    %v1443 = vsel %vm1337, %v1409, 0.0
    %1444 = vadd.xlane.f32.xlu0 %v1443
    %v1445 = vpop.xlane.xlu0 %1444
    %v1446 = vsel %vm1337, %v1411, 0.0
    %1447 = vadd.xlane.f32.xlu0 %v1446
    %v1448 = vpop.xlane.xlu0 %1447
    %v1449 = vsel %vm1337, %v1413, 0.0
    %1450 = vadd.xlane.f32.xlu0 %v1449
    %v1451 = vpop.xlane.xlu0 %1450
    %v1452 = vsel %vm1337, %v1415, 0.0
    %1453 = vadd.xlane.f32.xlu0 %v1452
    %v1454 = vpop.xlane.xlu0 %1453
    %v1455 = vsel %vm1337, %v1417, 0.0
    %1456 = vadd.xlane.f32.xlu0 %v1455
    %v1457 = vpop.xlane.xlu0 %1456
    %v1458 = vsel %vm1337, %v1419, 0.0
    %1459 = vadd.xlane.f32.xlu0 %v1458
    %v1460 = vpop.xlane.xlu0 %1459
    %v1461 = vsel %vm1337, %v1421, 0.0
    %1462 = vadd.xlane.f32.xlu0 %v1461
    %v1463 = vpop.xlane.xlu0 %1462
    %v1464 = vsel %vm1337, %v1423, 0.0
    %1465 = vadd.xlane.f32.xlu0 %v1464
    %v1466 = vpop.xlane.xlu0 %1465
    %v1467 = vsel %vm1337, %v1425, 0.0
    %1468 = vadd.xlane.f32.xlu0 %v1467
    %v1469 = vpop.xlane.xlu0 %1468
    %v1470 = vsel %vm1337, %v1427, 0.0
    %1471 = vadd.xlane.f32.xlu0 %v1470
    %v1472 = vpop.xlane.xlu0 %1471
    %v1473 = vsel %vm1337, %v1429, 0.0
    %1474 = vadd.xlane.f32.xlu0 %v1473
    %v1475 = vpop.xlane.xlu0 %1474
    %v1476 = vsel %vm1337, %v1431, 0.0
    %1477 = vadd.xlane.f32.xlu0 %v1476
    %v1478 = vpop.xlane.xlu0 %1477
    %v1479 = vsel %vm1337, %v1433, 0.0
    %1480 = vadd.xlane.f32.xlu0 %v1479
    %v1481 = vpop.xlane.xlu0 %1480
    %v1483 = vsel %vm1337, %v1403, 0
    %1485 = vmatprep.subr.mxu0 0.0
    %1486 = vmatpush1.msra.mxu0 0.0
    %1487 = vmatprep.subr.mxu0 0.0
    %1488 = vmatpush1.msra.mxu0 0.0
    %1489 = vmatprep.subr.mxu0 0.0
    %1490 = vmatpush1.msra.mxu0 0.0
    %1491 = vmatprep.subr.mxu0 0.0
    %1492 = vmatpush1.msra.mxu0 0.0
    %1493 = vmatprep.subr.mxu0 0.0
    %1494 = vmatpush1.msra.mxu0 0.0
    %1495 = vmatprep.subr.mxu0 0.0
    %1496 = vmatpush1.msra.mxu0 0.0
    %1497 = vmatprep.subr.mxu0 0.0
    %1498 = vmatpush1.msra.mxu0 0.0
    %1499 = vmatprep.subr.mxu0 0.0
    %1500 = vmatpush1.msra.mxu0 0.0
    %1501 = vmatprep.subr.mxu0 0.0
    %1502 = vmatpush1.msra.mxu0 0.0
    %1503 = vmatprep.subr.mxu0 0.0
    %1504 = vmatpush1.msra.mxu0 0.0
    %1505 = vmatprep.subr.mxu0 0.0
    %1506 = vmatpush1.msra.mxu0 0.0
    %1507 = vmatprep.subr.mxu0 0.0
    %1508 = vmatpush1.msra.mxu0 0.0
    %1509 = vmatprep.subr.mxu0 0.0
    %1510 = vmatpush1.msra.mxu0 0.0
    %1511 = vmatprep.subr.mxu0 0.0
    %1512 = vmatpush1.msra.mxu0 0.0
    %1513 = vmatprep.subr.mxu0 0.0
    %1514 = vmatpush1.msra.mxu0 0.0
    %1515 = vmatprep.subr.mxu0 0.0
    %1516 = vmatpush1.msra.mxu0 %v88
    %1517 = vmatprep.subr.mxu0 0.0
    %1518 = vmatpush2.msra.mxu0 0.0
    %1519 = vmatprep.subr.mxu0 0.0
    %1520 = vmatpush2.msra.mxu0 0.0
    %1521 = vmatprep.subr.mxu0 0.0
    %1522 = vmatpush2.msra.mxu0 0.0
    %1523 = vmatprep.subr.mxu0 0.0
    %1524 = vmatpush2.msra.mxu0 0.0
    %1525 = vmatprep.subr.mxu0 0.0
    %1526 = vmatpush2.msra.mxu0 0.0
    %1527 = vmatprep.subr.mxu0 0.0
    %1528 = vmatpush2.msra.mxu0 0.0
    %1529 = vmatprep.subr.mxu0 0.0
    %1530 = vmatpush2.msra.mxu0 0.0
    %1531 = vmatprep.subr.mxu0 0.0
    %1532 = vmatpush2.msra.mxu0 0.0
    %1533 = vmatprep.subr.mxu0 0.0
    %1534 = vmatpush2.msra.mxu0 0.0
    %1535 = vmatprep.subr.mxu0 0.0
    %1536 = vmatpush2.msra.mxu0 0.0
    %1537 = vmatprep.subr.mxu0 0.0
    %1538 = vmatpush2.msra.mxu0 0.0
    %1539 = vmatprep.subr.mxu0 0.0
    %1540 = vmatpush2.msra.mxu0 0.0
    %1541 = vmatprep.subr.mxu0 0.0
    %1542 = vmatpush2.msra.mxu0 0.0
    %1543 = vmatprep.subr.mxu0 0.0
    %1544 = vmatpush2.msra.mxu0 0.0
    %1545 = vmatprep.subr.mxu0 0.0
    %1546 = vmatpush2.msra.mxu0 0.0
    %1547 = vmatprep.subr.mxu0 0.0
    %1548 = vmatpush2.msra.mxu0 0.0
    %1549 = vmatprep.mubr.f32.mxu0 0.0
    %1550 = vmatmul.mubr.f32.gmra.mxu0 %v1483
    %v1551 = vpop.f32.mrf.mxu0
    %v1552 = vadd.f32 0.0, %v1551
    %v1553 = vpop.f32.mrf.mxu0
    %1554 = vdwg.mxu0
    %v1556 = vsel %vm1337, %v1405, 0
    %1558 = vmatprep.subr.mxu0 0.0
    %1559 = vmatpush1.msra.mxu0 0.0
    %1560 = vmatprep.subr.mxu0 0.0
    %1561 = vmatpush1.msra.mxu0 0.0
    %1562 = vmatprep.subr.mxu0 0.0
    %1563 = vmatpush1.msra.mxu0 0.0
    %1564 = vmatprep.subr.mxu0 0.0
    %1565 = vmatpush1.msra.mxu0 0.0
    %1566 = vmatprep.subr.mxu0 0.0
    %1567 = vmatpush1.msra.mxu0 0.0
    %1568 = vmatprep.subr.mxu0 0.0
    %1569 = vmatpush1.msra.mxu0 0.0
    %1570 = vmatprep.subr.mxu0 0.0
    %1571 = vmatpush1.msra.mxu0 0.0
    %1572 = vmatprep.subr.mxu0 0.0
    %1573 = vmatpush1.msra.mxu0 0.0
    %1574 = vmatprep.subr.mxu0 0.0
    %1575 = vmatpush1.msra.mxu0 0.0
    %1576 = vmatprep.subr.mxu0 0.0
    %1577 = vmatpush1.msra.mxu0 0.0
    %1578 = vmatprep.subr.mxu0 0.0
    %1579 = vmatpush1.msra.mxu0 0.0
    %1580 = vmatprep.subr.mxu0 0.0
    %1581 = vmatpush1.msra.mxu0 0.0
    %1582 = vmatprep.subr.mxu0 0.0
    %1583 = vmatpush1.msra.mxu0 0.0
    %1584 = vmatprep.subr.mxu0 0.0
    %1585 = vmatpush1.msra.mxu0 0.0
    %1586 = vmatprep.subr.mxu0 0.0
    %1587 = vmatpush1.msra.mxu0 0.0
    %1588 = vmatprep.subr.mxu0 0.0
    %1589 = vmatpush1.msra.mxu0 %v89
    %1590 = vmatprep.subr.mxu0 0.0
    %1591 = vmatpush2.msra.mxu0 0.0
    %1592 = vmatprep.subr.mxu0 0.0
    %1593 = vmatpush2.msra.mxu0 0.0
    %1594 = vmatprep.subr.mxu0 0.0
    %1595 = vmatpush2.msra.mxu0 0.0
    %1596 = vmatprep.subr.mxu0 0.0
    %1597 = vmatpush2.msra.mxu0 0.0
    %1598 = vmatprep.subr.mxu0 0.0
    %1599 = vmatpush2.msra.mxu0 0.0
    %1600 = vmatprep.subr.mxu0 0.0
    %1601 = vmatpush2.msra.mxu0 0.0
    %1602 = vmatprep.subr.mxu0 0.0
    %1603 = vmatpush2.msra.mxu0 0.0
    %1604 = vmatprep.subr.mxu0 0.0
    %1605 = vmatpush2.msra.mxu0 0.0
    %1606 = vmatprep.subr.mxu0 0.0
    %1607 = vmatpush2.msra.mxu0 0.0
    %1608 = vmatprep.subr.mxu0 0.0
    %1609 = vmatpush2.msra.mxu0 0.0
    %1610 = vmatprep.subr.mxu0 0.0
    %1611 = vmatpush2.msra.mxu0 0.0
    %1612 = vmatprep.subr.mxu0 0.0
    %1613 = vmatpush2.msra.mxu0 0.0
    %1614 = vmatprep.subr.mxu0 0.0
    %1615 = vmatpush2.msra.mxu0 0.0
    %1616 = vmatprep.subr.mxu0 0.0
    %1617 = vmatpush2.msra.mxu0 0.0
    %1618 = vmatprep.subr.mxu0 0.0
    %1619 = vmatpush2.msra.mxu0 0.0
    %1620 = vmatprep.subr.mxu0 0.0
    %1621 = vmatpush2.msra.mxu0 0.0
    %1622 = vmatprep.mubr.f32.mxu0 0.0
    %1623 = vmatmul.mubr.f32.gmra.mxu0 %v1556
    %v1624 = vpop.f32.mrf.mxu0
    %v1625 = vadd.f32 0.0, %v1624
    %v1626 = vpop.f32.mrf.mxu0
    %1627 = vdwg.mxu0
    %v1629 = vsel %vm1337, %v1407, 0
    %1631 = vmatprep.subr.mxu0 0.0
    %1632 = vmatpush1.msra.mxu0 0.0
    %1633 = vmatprep.subr.mxu0 0.0
    %1634 = vmatpush1.msra.mxu0 0.0
    %1635 = vmatprep.subr.mxu0 0.0
    %1636 = vmatpush1.msra.mxu0 0.0
    %1637 = vmatprep.subr.mxu0 0.0
    %1638 = vmatpush1.msra.mxu0 0.0
    %1639 = vmatprep.subr.mxu0 0.0
    %1640 = vmatpush1.msra.mxu0 0.0
    %1641 = vmatprep.subr.mxu0 0.0
    %1642 = vmatpush1.msra.mxu0 0.0
    %1643 = vmatprep.subr.mxu0 0.0
    %1644 = vmatpush1.msra.mxu0 0.0
    %1645 = vmatprep.subr.mxu0 0.0
    %1646 = vmatpush1.msra.mxu0 0.0
    %1647 = vmatprep.subr.mxu0 0.0
    %1648 = vmatpush1.msra.mxu0 0.0
    %1649 = vmatprep.subr.mxu0 0.0
    %1650 = vmatpush1.msra.mxu0 0.0
    %1651 = vmatprep.subr.mxu0 0.0
    %1652 = vmatpush1.msra.mxu0 0.0
    %1653 = vmatprep.subr.mxu0 0.0
    %1654 = vmatpush1.msra.mxu0 0.0
    %1655 = vmatprep.subr.mxu0 0.0
    %1656 = vmatpush1.msra.mxu0 0.0
    %1657 = vmatprep.subr.mxu0 0.0
    %1658 = vmatpush1.msra.mxu0 0.0
    %1659 = vmatprep.subr.mxu0 0.0
    %1660 = vmatpush1.msra.mxu0 0.0
    %1661 = vmatprep.subr.mxu0 0.0
    %1662 = vmatpush1.msra.mxu0 %v90
    %1663 = vmatprep.subr.mxu0 0.0
    %1664 = vmatpush2.msra.mxu0 0.0
    %1665 = vmatprep.subr.mxu0 0.0
    %1666 = vmatpush2.msra.mxu0 0.0
    %1667 = vmatprep.subr.mxu0 0.0
    %1668 = vmatpush2.msra.mxu0 0.0
    %1669 = vmatprep.subr.mxu0 0.0
    %1670 = vmatpush2.msra.mxu0 0.0
    %1671 = vmatprep.subr.mxu0 0.0
    %1672 = vmatpush2.msra.mxu0 0.0
    %1673 = vmatprep.subr.mxu0 0.0
    %1674 = vmatpush2.msra.mxu0 0.0
    %1675 = vmatprep.subr.mxu0 0.0
    %1676 = vmatpush2.msra.mxu0 0.0
    %1677 = vmatprep.subr.mxu0 0.0
    %1678 = vmatpush2.msra.mxu0 0.0
    %1679 = vmatprep.subr.mxu0 0.0
    %1680 = vmatpush2.msra.mxu0 0.0
    %1681 = vmatprep.subr.mxu0 0.0
    %1682 = vmatpush2.msra.mxu0 0.0
    %1683 = vmatprep.subr.mxu0 0.0
    %1684 = vmatpush2.msra.mxu0 0.0
    %1685 = vmatprep.subr.mxu0 0.0
    %1686 = vmatpush2.msra.mxu0 0.0
    %1687 = vmatprep.subr.mxu0 0.0
    %1688 = vmatpush2.msra.mxu0 0.0
    %1689 = vmatprep.subr.mxu0 0.0
    %1690 = vmatpush2.msra.mxu0 0.0
    %1691 = vmatprep.subr.mxu0 0.0
    %1692 = vmatpush2.msra.mxu0 0.0
    %1693 = vmatprep.subr.mxu0 0.0
    %1694 = vmatpush2.msra.mxu0 0.0
    %1695 = vmatprep.mubr.f32.mxu0 0.0
    %1696 = vmatmul.mubr.f32.gmra.mxu0 %v1629
    %v1697 = vpop.f32.mrf.mxu0
    %v1698 = vadd.f32 0.0, %v1697
    %v1699 = vpop.f32.mrf.mxu0
    %1700 = vdwg.mxu0
    %v1702 = vsel %vm1337, %v1409, 0
    %1704 = vmatprep.subr.mxu0 0.0
    %1705 = vmatpush1.msra.mxu0 0.0
    %1706 = vmatprep.subr.mxu0 0.0
    %1707 = vmatpush1.msra.mxu0 0.0
    %1708 = vmatprep.subr.mxu0 0.0
    %1709 = vmatpush1.msra.mxu0 0.0
    %1710 = vmatprep.subr.mxu0 0.0
    %1711 = vmatpush1.msra.mxu0 0.0
    %1712 = vmatprep.subr.mxu0 0.0
    %1713 = vmatpush1.msra.mxu0 0.0
    %1714 = vmatprep.subr.mxu0 0.0
    %1715 = vmatpush1.msra.mxu0 0.0
    %1716 = vmatprep.subr.mxu0 0.0
    %1717 = vmatpush1.msra.mxu0 0.0
    %1718 = vmatprep.subr.mxu0 0.0
    %1719 = vmatpush1.msra.mxu0 0.0
    %1720 = vmatprep.subr.mxu0 0.0
    %1721 = vmatpush1.msra.mxu0 0.0
    %1722 = vmatprep.subr.mxu0 0.0
    %1723 = vmatpush1.msra.mxu0 0.0
    %1724 = vmatprep.subr.mxu0 0.0
    %1725 = vmatpush1.msra.mxu0 0.0
    %1726 = vmatprep.subr.mxu0 0.0
    %1727 = vmatpush1.msra.mxu0 0.0
    %1728 = vmatprep.subr.mxu0 0.0
    %1729 = vmatpush1.msra.mxu0 0.0
    %1730 = vmatprep.subr.mxu0 0.0
    %1731 = vmatpush1.msra.mxu0 0.0
    %1732 = vmatprep.subr.mxu0 0.0
    %1733 = vmatpush1.msra.mxu0 0.0
    %1734 = vmatprep.subr.mxu0 0.0
    %1735 = vmatpush1.msra.mxu0 %v91
    %1736 = vmatprep.subr.mxu0 0.0
    %1737 = vmatpush2.msra.mxu0 0.0
    %1738 = vmatprep.subr.mxu0 0.0
    %1739 = vmatpush2.msra.mxu0 0.0
    %1740 = vmatprep.subr.mxu0 0.0
    %1741 = vmatpush2.msra.mxu0 0.0
    %1742 = vmatprep.subr.mxu0 0.0
    %1743 = vmatpush2.msra.mxu0 0.0
    %1744 = vmatprep.subr.mxu0 0.0
    %1745 = vmatpush2.msra.mxu0 0.0
    %1746 = vmatprep.subr.mxu0 0.0
    %1747 = vmatpush2.msra.mxu0 0.0
    %1748 = vmatprep.subr.mxu0 0.0
    %1749 = vmatpush2.msra.mxu0 0.0
    %1750 = vmatprep.subr.mxu0 0.0
    %1751 = vmatpush2.msra.mxu0 0.0
    %1752 = vmatprep.subr.mxu0 0.0
    %1753 = vmatpush2.msra.mxu0 0.0
    %1754 = vmatprep.subr.mxu0 0.0
    %1755 = vmatpush2.msra.mxu0 0.0
    %1756 = vmatprep.subr.mxu0 0.0
    %1757 = vmatpush2.msra.mxu0 0.0
    %1758 = vmatprep.subr.mxu0 0.0
    %1759 = vmatpush2.msra.mxu0 0.0
    %1760 = vmatprep.subr.mxu0 0.0
    %1761 = vmatpush2.msra.mxu0 0.0
    %1762 = vmatprep.subr.mxu0 0.0
    %1763 = vmatpush2.msra.mxu0 0.0
    %1764 = vmatprep.subr.mxu0 0.0
    %1765 = vmatpush2.msra.mxu0 0.0
    %1766 = vmatprep.subr.mxu0 0.0
    %1767 = vmatpush2.msra.mxu0 0.0
    %1768 = vmatprep.mubr.f32.mxu0 0.0
    %1769 = vmatmul.mubr.f32.gmra.mxu0 %v1702
    %v1770 = vpop.f32.mrf.mxu0
    %v1771 = vadd.f32 0.0, %v1770
    %v1772 = vpop.f32.mrf.mxu0
    %1773 = vdwg.mxu0
    %v1775 = vsel %vm1337, %v1411, 0
    %1777 = vmatprep.subr.mxu0 0.0
    %1778 = vmatpush1.msra.mxu0 0.0
    %1779 = vmatprep.subr.mxu0 0.0
    %1780 = vmatpush1.msra.mxu0 0.0
    %1781 = vmatprep.subr.mxu0 0.0
    %1782 = vmatpush1.msra.mxu0 0.0
    %1783 = vmatprep.subr.mxu0 0.0
    %1784 = vmatpush1.msra.mxu0 0.0
    %1785 = vmatprep.subr.mxu0 0.0
    %1786 = vmatpush1.msra.mxu0 0.0
    %1787 = vmatprep.subr.mxu0 0.0
    %1788 = vmatpush1.msra.mxu0 0.0
    %1789 = vmatprep.subr.mxu0 0.0
    %1790 = vmatpush1.msra.mxu0 0.0
    %1791 = vmatprep.subr.mxu0 0.0
    %1792 = vmatpush1.msra.mxu0 0.0
    %1793 = vmatprep.subr.mxu0 0.0
    %1794 = vmatpush1.msra.mxu0 0.0
    %1795 = vmatprep.subr.mxu0 0.0
    %1796 = vmatpush1.msra.mxu0 0.0
    %1797 = vmatprep.subr.mxu0 0.0
    %1798 = vmatpush1.msra.mxu0 0.0
    %1799 = vmatprep.subr.mxu0 0.0
    %1800 = vmatpush1.msra.mxu0 0.0
    %1801 = vmatprep.subr.mxu0 0.0
    %1802 = vmatpush1.msra.mxu0 0.0
    %1803 = vmatprep.subr.mxu0 0.0
    %1804 = vmatpush1.msra.mxu0 0.0
    %1805 = vmatprep.subr.mxu0 0.0
    %1806 = vmatpush1.msra.mxu0 0.0
    %1807 = vmatprep.subr.mxu0 0.0
    %1808 = vmatpush1.msra.mxu0 %v92
    %1809 = vmatprep.subr.mxu0 0.0
    %1810 = vmatpush2.msra.mxu0 0.0
    %1811 = vmatprep.subr.mxu0 0.0
    %1812 = vmatpush2.msra.mxu0 0.0
    %1813 = vmatprep.subr.mxu0 0.0
    %1814 = vmatpush2.msra.mxu0 0.0
    %1815 = vmatprep.subr.mxu0 0.0
    %1816 = vmatpush2.msra.mxu0 0.0
    %1817 = vmatprep.subr.mxu0 0.0
    %1818 = vmatpush2.msra.mxu0 0.0
    %1819 = vmatprep.subr.mxu0 0.0
    %1820 = vmatpush2.msra.mxu0 0.0
    %1821 = vmatprep.subr.mxu0 0.0
    %1822 = vmatpush2.msra.mxu0 0.0
    %1823 = vmatprep.subr.mxu0 0.0
    %1824 = vmatpush2.msra.mxu0 0.0
    %1825 = vmatprep.subr.mxu0 0.0
    %1826 = vmatpush2.msra.mxu0 0.0
    %1827 = vmatprep.subr.mxu0 0.0
    %1828 = vmatpush2.msra.mxu0 0.0
    %1829 = vmatprep.subr.mxu0 0.0
    %1830 = vmatpush2.msra.mxu0 0.0
    %1831 = vmatprep.subr.mxu0 0.0
    %1832 = vmatpush2.msra.mxu0 0.0
    %1833 = vmatprep.subr.mxu0 0.0
    %1834 = vmatpush2.msra.mxu0 0.0
    %1835 = vmatprep.subr.mxu0 0.0
    %1836 = vmatpush2.msra.mxu0 0.0
    %1837 = vmatprep.subr.mxu0 0.0
    %1838 = vmatpush2.msra.mxu0 0.0
    %1839 = vmatprep.subr.mxu0 0.0
    %1840 = vmatpush2.msra.mxu0 0.0
    %1841 = vmatprep.mubr.f32.mxu0 0.0
    %1842 = vmatmul.mubr.f32.gmra.mxu0 %v1775
    %v1843 = vpop.f32.mrf.mxu0
    %v1844 = vadd.f32 0.0, %v1843
    %v1845 = vpop.f32.mrf.mxu0
    %1846 = vdwg.mxu0
    %v1848 = vsel %vm1337, %v1413, 0
    %1850 = vmatprep.subr.mxu0 0.0
    %1851 = vmatpush1.msra.mxu0 0.0
    %1852 = vmatprep.subr.mxu0 0.0
    %1853 = vmatpush1.msra.mxu0 0.0
    %1854 = vmatprep.subr.mxu0 0.0
    %1855 = vmatpush1.msra.mxu0 0.0
    %1856 = vmatprep.subr.mxu0 0.0
    %1857 = vmatpush1.msra.mxu0 0.0
    %1858 = vmatprep.subr.mxu0 0.0
    %1859 = vmatpush1.msra.mxu0 0.0
    %1860 = vmatprep.subr.mxu0 0.0
    %1861 = vmatpush1.msra.mxu0 0.0
    %1862 = vmatprep.subr.mxu0 0.0
    %1863 = vmatpush1.msra.mxu0 0.0
    %1864 = vmatprep.subr.mxu0 0.0
    %1865 = vmatpush1.msra.mxu0 0.0
    %1866 = vmatprep.subr.mxu0 0.0
    %1867 = vmatpush1.msra.mxu0 0.0
    %1868 = vmatprep.subr.mxu0 0.0
    %1869 = vmatpush1.msra.mxu0 0.0
    %1870 = vmatprep.subr.mxu0 0.0
    %1871 = vmatpush1.msra.mxu0 0.0
    %1872 = vmatprep.subr.mxu0 0.0
    %1873 = vmatpush1.msra.mxu0 0.0
    %1874 = vmatprep.subr.mxu0 0.0
    %1875 = vmatpush1.msra.mxu0 0.0
    %1876 = vmatprep.subr.mxu0 0.0
    %1877 = vmatpush1.msra.mxu0 0.0
    %1878 = vmatprep.subr.mxu0 0.0
    %1879 = vmatpush1.msra.mxu0 0.0
    %1880 = vmatprep.subr.mxu0 0.0
    %1881 = vmatpush1.msra.mxu0 %v93
    %1882 = vmatprep.subr.mxu0 0.0
    %1883 = vmatpush2.msra.mxu0 0.0
    %1884 = vmatprep.subr.mxu0 0.0
    %1885 = vmatpush2.msra.mxu0 0.0
    %1886 = vmatprep.subr.mxu0 0.0
    %1887 = vmatpush2.msra.mxu0 0.0
    %1888 = vmatprep.subr.mxu0 0.0
    %1889 = vmatpush2.msra.mxu0 0.0
    %1890 = vmatprep.subr.mxu0 0.0
    %1891 = vmatpush2.msra.mxu0 0.0
    %1892 = vmatprep.subr.mxu0 0.0
    %1893 = vmatpush2.msra.mxu0 0.0
    %1894 = vmatprep.subr.mxu0 0.0
    %1895 = vmatpush2.msra.mxu0 0.0
    %1896 = vmatprep.subr.mxu0 0.0
    %1897 = vmatpush2.msra.mxu0 0.0
    %1898 = vmatprep.subr.mxu0 0.0
    %1899 = vmatpush2.msra.mxu0 0.0
    %1900 = vmatprep.subr.mxu0 0.0
    %1901 = vmatpush2.msra.mxu0 0.0
    %1902 = vmatprep.subr.mxu0 0.0
    %1903 = vmatpush2.msra.mxu0 0.0
    %1904 = vmatprep.subr.mxu0 0.0
    %1905 = vmatpush2.msra.mxu0 0.0
    %1906 = vmatprep.subr.mxu0 0.0
    %1907 = vmatpush2.msra.mxu0 0.0
    %1908 = vmatprep.subr.mxu0 0.0
    %1909 = vmatpush2.msra.mxu0 0.0
    %1910 = vmatprep.subr.mxu0 0.0
    %1911 = vmatpush2.msra.mxu0 0.0
    %1912 = vmatprep.subr.mxu0 0.0
    %1913 = vmatpush2.msra.mxu0 0.0
    %1914 = vmatprep.mubr.f32.mxu0 0.0
    %1915 = vmatmul.mubr.f32.gmra.mxu0 %v1848
    %v1916 = vpop.f32.mrf.mxu0
    %v1917 = vadd.f32 0.0, %v1916
    %v1918 = vpop.f32.mrf.mxu0
    %1919 = vdwg.mxu0
    %v1921 = vsel %vm1337, %v1415, 0
    %1923 = vmatprep.subr.mxu0 0.0
    %1924 = vmatpush1.msra.mxu0 0.0
    %1925 = vmatprep.subr.mxu0 0.0
    %1926 = vmatpush1.msra.mxu0 0.0
    %1927 = vmatprep.subr.mxu0 0.0
    %1928 = vmatpush1.msra.mxu0 0.0
    %1929 = vmatprep.subr.mxu0 0.0
    %1930 = vmatpush1.msra.mxu0 0.0
    %1931 = vmatprep.subr.mxu0 0.0
    %1932 = vmatpush1.msra.mxu0 0.0
    %1933 = vmatprep.subr.mxu0 0.0
    %1934 = vmatpush1.msra.mxu0 0.0
    %1935 = vmatprep.subr.mxu0 0.0
    %1936 = vmatpush1.msra.mxu0 0.0
    %1937 = vmatprep.subr.mxu0 0.0
    %1938 = vmatpush1.msra.mxu0 0.0
    %1939 = vmatprep.subr.mxu0 0.0
    %1940 = vmatpush1.msra.mxu0 0.0
    %1941 = vmatprep.subr.mxu0 0.0
    %1942 = vmatpush1.msra.mxu0 0.0
    %1943 = vmatprep.subr.mxu0 0.0
    %1944 = vmatpush1.msra.mxu0 0.0
    %1945 = vmatprep.subr.mxu0 0.0
    %1946 = vmatpush1.msra.mxu0 0.0
    %1947 = vmatprep.subr.mxu0 0.0
    %1948 = vmatpush1.msra.mxu0 0.0
    %1949 = vmatprep.subr.mxu0 0.0
    %1950 = vmatpush1.msra.mxu0 0.0
    %1951 = vmatprep.subr.mxu0 0.0
    %1952 = vmatpush1.msra.mxu0 0.0
    %1953 = vmatprep.subr.mxu0 0.0
    %1954 = vmatpush1.msra.mxu0 %v94
    %1955 = vmatprep.subr.mxu0 0.0
    %1956 = vmatpush2.msra.mxu0 0.0
    %1957 = vmatprep.subr.mxu0 0.0
    %1958 = vmatpush2.msra.mxu0 0.0
    %1959 = vmatprep.subr.mxu0 0.0
    %1960 = vmatpush2.msra.mxu0 0.0
    %1961 = vmatprep.subr.mxu0 0.0
    %1962 = vmatpush2.msra.mxu0 0.0
    %1963 = vmatprep.subr.mxu0 0.0
    %1964 = vmatpush2.msra.mxu0 0.0
    %1965 = vmatprep.subr.mxu0 0.0
    %1966 = vmatpush2.msra.mxu0 0.0
    %1967 = vmatprep.subr.mxu0 0.0
    %1968 = vmatpush2.msra.mxu0 0.0
    %1969 = vmatprep.subr.mxu0 0.0
    %1970 = vmatpush2.msra.mxu0 0.0
    %1971 = vmatprep.subr.mxu0 0.0
    %1972 = vmatpush2.msra.mxu0 0.0
    %1973 = vmatprep.subr.mxu0 0.0
    %1974 = vmatpush2.msra.mxu0 0.0
    %1975 = vmatprep.subr.mxu0 0.0
    %1976 = vmatpush2.msra.mxu0 0.0
    %1977 = vmatprep.subr.mxu0 0.0
    %1978 = vmatpush2.msra.mxu0 0.0
    %1979 = vmatprep.subr.mxu0 0.0
    %1980 = vmatpush2.msra.mxu0 0.0
    %1981 = vmatprep.subr.mxu0 0.0
    %1982 = vmatpush2.msra.mxu0 0.0
    %1983 = vmatprep.subr.mxu0 0.0
    %1984 = vmatpush2.msra.mxu0 0.0
    %1985 = vmatprep.subr.mxu0 0.0
    %1986 = vmatpush2.msra.mxu0 0.0
    %1987 = vmatprep.mubr.f32.mxu0 0.0
    %1988 = vmatmul.mubr.f32.gmra.mxu0 %v1921
    %v1989 = vpop.f32.mrf.mxu0
    %v1990 = vadd.f32 0.0, %v1989
    %v1991 = vpop.f32.mrf.mxu0
    %1992 = vdwg.mxu0
    %v1994 = vsel %vm1337, %v1417, 0
    %1996 = vmatprep.subr.mxu0 0.0
    %1997 = vmatpush1.msra.mxu0 0.0
    %1998 = vmatprep.subr.mxu0 0.0
    %1999 = vmatpush1.msra.mxu0 0.0
    %2000 = vmatprep.subr.mxu0 0.0
    %2001 = vmatpush1.msra.mxu0 0.0
    %2002 = vmatprep.subr.mxu0 0.0
    %2003 = vmatpush1.msra.mxu0 0.0
    %2004 = vmatprep.subr.mxu0 0.0
    %2005 = vmatpush1.msra.mxu0 0.0
    %2006 = vmatprep.subr.mxu0 0.0
    %2007 = vmatpush1.msra.mxu0 0.0
    %2008 = vmatprep.subr.mxu0 0.0
    %2009 = vmatpush1.msra.mxu0 0.0
    %2010 = vmatprep.subr.mxu0 0.0
    %2011 = vmatpush1.msra.mxu0 0.0
    %2012 = vmatprep.subr.mxu0 0.0
    %2013 = vmatpush1.msra.mxu0 0.0
    %2014 = vmatprep.subr.mxu0 0.0
    %2015 = vmatpush1.msra.mxu0 0.0
    %2016 = vmatprep.subr.mxu0 0.0
    %2017 = vmatpush1.msra.mxu0 0.0
    %2018 = vmatprep.subr.mxu0 0.0
    %2019 = vmatpush1.msra.mxu0 0.0
    %2020 = vmatprep.subr.mxu0 0.0
    %2021 = vmatpush1.msra.mxu0 0.0
    %2022 = vmatprep.subr.mxu0 0.0
    %2023 = vmatpush1.msra.mxu0 0.0
    %2024 = vmatprep.subr.mxu0 0.0
    %2025 = vmatpush1.msra.mxu0 0.0
    %2026 = vmatprep.subr.mxu0 0.0
    %2027 = vmatpush1.msra.mxu0 %v95
    %2028 = vmatprep.subr.mxu0 0.0
    %2029 = vmatpush2.msra.mxu0 0.0
    %2030 = vmatprep.subr.mxu0 0.0
    %2031 = vmatpush2.msra.mxu0 0.0
    %2032 = vmatprep.subr.mxu0 0.0
    %2033 = vmatpush2.msra.mxu0 0.0
    %2034 = vmatprep.subr.mxu0 0.0
    %2035 = vmatpush2.msra.mxu0 0.0
    %2036 = vmatprep.subr.mxu0 0.0
    %2037 = vmatpush2.msra.mxu0 0.0
    %2038 = vmatprep.subr.mxu0 0.0
    %2039 = vmatpush2.msra.mxu0 0.0
    %2040 = vmatprep.subr.mxu0 0.0
    %2041 = vmatpush2.msra.mxu0 0.0
    %2042 = vmatprep.subr.mxu0 0.0
    %2043 = vmatpush2.msra.mxu0 0.0
    %2044 = vmatprep.subr.mxu0 0.0
    %2045 = vmatpush2.msra.mxu0 0.0
    %2046 = vmatprep.subr.mxu0 0.0
    %2047 = vmatpush2.msra.mxu0 0.0
    %2048 = vmatprep.subr.mxu0 0.0
    %2049 = vmatpush2.msra.mxu0 0.0
    %2050 = vmatprep.subr.mxu0 0.0
    %2051 = vmatpush2.msra.mxu0 0.0
    %2052 = vmatprep.subr.mxu0 0.0
    %2053 = vmatpush2.msra.mxu0 0.0
    %2054 = vmatprep.subr.mxu0 0.0
    %2055 = vmatpush2.msra.mxu0 0.0
    %2056 = vmatprep.subr.mxu0 0.0
    %2057 = vmatpush2.msra.mxu0 0.0
    %2058 = vmatprep.subr.mxu0 0.0
    %2059 = vmatpush2.msra.mxu0 0.0
    %2060 = vmatprep.mubr.f32.mxu0 0.0
    %2061 = vmatmul.mubr.f32.gmra.mxu0 %v1994
    %v2062 = vpop.f32.mrf.mxu0
    %v2063 = vadd.f32 0.0, %v2062
    %v2064 = vpop.f32.mrf.mxu0
    %2065 = vdwg.mxu0
    %v2067 = vsel %vm1337, %v1419, 0
    %2069 = vmatprep.subr.mxu0 0.0
    %2070 = vmatpush1.msra.mxu0 0.0
    %2071 = vmatprep.subr.mxu0 0.0
    %2072 = vmatpush1.msra.mxu0 0.0
    %2073 = vmatprep.subr.mxu0 0.0
    %2074 = vmatpush1.msra.mxu0 0.0
    %2075 = vmatprep.subr.mxu0 0.0
    %2076 = vmatpush1.msra.mxu0 0.0
    %2077 = vmatprep.subr.mxu0 0.0
    %2078 = vmatpush1.msra.mxu0 0.0
    %2079 = vmatprep.subr.mxu0 0.0
    %2080 = vmatpush1.msra.mxu0 0.0
    %2081 = vmatprep.subr.mxu0 0.0
    %2082 = vmatpush1.msra.mxu0 0.0
    %2083 = vmatprep.subr.mxu0 0.0
    %2084 = vmatpush1.msra.mxu0 0.0
    %2085 = vmatprep.subr.mxu0 0.0
    %2086 = vmatpush1.msra.mxu0 0.0
    %2087 = vmatprep.subr.mxu0 0.0
    %2088 = vmatpush1.msra.mxu0 0.0
    %2089 = vmatprep.subr.mxu0 0.0
    %2090 = vmatpush1.msra.mxu0 0.0
    %2091 = vmatprep.subr.mxu0 0.0
    %2092 = vmatpush1.msra.mxu0 0.0
    %2093 = vmatprep.subr.mxu0 0.0
    %2094 = vmatpush1.msra.mxu0 0.0
    %2095 = vmatprep.subr.mxu0 0.0
    %2096 = vmatpush1.msra.mxu0 0.0
    %2097 = vmatprep.subr.mxu0 0.0
    %2098 = vmatpush1.msra.mxu0 0.0
    %2099 = vmatprep.subr.mxu0 0.0
    %2100 = vmatpush1.msra.mxu0 %v96
    %2101 = vmatprep.subr.mxu0 0.0
    %2102 = vmatpush2.msra.mxu0 0.0
    %2103 = vmatprep.subr.mxu0 0.0
    %2104 = vmatpush2.msra.mxu0 0.0
    %2105 = vmatprep.subr.mxu0 0.0
    %2106 = vmatpush2.msra.mxu0 0.0
    %2107 = vmatprep.subr.mxu0 0.0
    %2108 = vmatpush2.msra.mxu0 0.0
    %2109 = vmatprep.subr.mxu0 0.0
    %2110 = vmatpush2.msra.mxu0 0.0
    %2111 = vmatprep.subr.mxu0 0.0
    %2112 = vmatpush2.msra.mxu0 0.0
    %2113 = vmatprep.subr.mxu0 0.0
    %2114 = vmatpush2.msra.mxu0 0.0
    %2115 = vmatprep.subr.mxu0 0.0
    %2116 = vmatpush2.msra.mxu0 0.0
    %2117 = vmatprep.subr.mxu0 0.0
    %2118 = vmatpush2.msra.mxu0 0.0
    %2119 = vmatprep.subr.mxu0 0.0
    %2120 = vmatpush2.msra.mxu0 0.0
    %2121 = vmatprep.subr.mxu0 0.0
    %2122 = vmatpush2.msra.mxu0 0.0
    %2123 = vmatprep.subr.mxu0 0.0
    %2124 = vmatpush2.msra.mxu0 0.0
    %2125 = vmatprep.subr.mxu0 0.0
    %2126 = vmatpush2.msra.mxu0 0.0
    %2127 = vmatprep.subr.mxu0 0.0
    %2128 = vmatpush2.msra.mxu0 0.0
    %2129 = vmatprep.subr.mxu0 0.0
    %2130 = vmatpush2.msra.mxu0 0.0
    %2131 = vmatprep.subr.mxu0 0.0
    %2132 = vmatpush2.msra.mxu0 0.0
    %2133 = vmatprep.mubr.f32.mxu0 0.0
    %2134 = vmatmul.mubr.f32.gmra.mxu0 %v2067
    %v2135 = vpop.f32.mrf.mxu0
    %v2136 = vadd.f32 0.0, %v2135
    %v2137 = vpop.f32.mrf.mxu0
    %2138 = vdwg.mxu0
    %v2140 = vsel %vm1337, %v1421, 0
    %2142 = vmatprep.subr.mxu0 0.0
    %2143 = vmatpush1.msra.mxu0 0.0
    %2144 = vmatprep.subr.mxu0 0.0
    %2145 = vmatpush1.msra.mxu0 0.0
    %2146 = vmatprep.subr.mxu0 0.0
    %2147 = vmatpush1.msra.mxu0 0.0
    %2148 = vmatprep.subr.mxu0 0.0
    %2149 = vmatpush1.msra.mxu0 0.0
    %2150 = vmatprep.subr.mxu0 0.0
    %2151 = vmatpush1.msra.mxu0 0.0
    %2152 = vmatprep.subr.mxu0 0.0
    %2153 = vmatpush1.msra.mxu0 0.0
    %2154 = vmatprep.subr.mxu0 0.0
    %2155 = vmatpush1.msra.mxu0 0.0
    %2156 = vmatprep.subr.mxu0 0.0
    %2157 = vmatpush1.msra.mxu0 0.0
    %2158 = vmatprep.subr.mxu0 0.0
    %2159 = vmatpush1.msra.mxu0 0.0
    %2160 = vmatprep.subr.mxu0 0.0
    %2161 = vmatpush1.msra.mxu0 0.0
    %2162 = vmatprep.subr.mxu0 0.0
    %2163 = vmatpush1.msra.mxu0 0.0
    %2164 = vmatprep.subr.mxu0 0.0
    %2165 = vmatpush1.msra.mxu0 0.0
    %2166 = vmatprep.subr.mxu0 0.0
    %2167 = vmatpush1.msra.mxu0 0.0
    %2168 = vmatprep.subr.mxu0 0.0
    %2169 = vmatpush1.msra.mxu0 0.0
    %2170 = vmatprep.subr.mxu0 0.0
    %2171 = vmatpush1.msra.mxu0 0.0
    %2172 = vmatprep.subr.mxu0 0.0
    %2173 = vmatpush1.msra.mxu0 %v97
    %2174 = vmatprep.subr.mxu0 0.0
    %2175 = vmatpush2.msra.mxu0 0.0
    %2176 = vmatprep.subr.mxu0 0.0
    %2177 = vmatpush2.msra.mxu0 0.0
    %2178 = vmatprep.subr.mxu0 0.0
    %2179 = vmatpush2.msra.mxu0 0.0
    %2180 = vmatprep.subr.mxu0 0.0
    %2181 = vmatpush2.msra.mxu0 0.0
    %2182 = vmatprep.subr.mxu0 0.0
    %2183 = vmatpush2.msra.mxu0 0.0
    %2184 = vmatprep.subr.mxu0 0.0
    %2185 = vmatpush2.msra.mxu0 0.0
    %2186 = vmatprep.subr.mxu0 0.0
    %2187 = vmatpush2.msra.mxu0 0.0
    %2188 = vmatprep.subr.mxu0 0.0
    %2189 = vmatpush2.msra.mxu0 0.0
    %2190 = vmatprep.subr.mxu0 0.0
    %2191 = vmatpush2.msra.mxu0 0.0
    %2192 = vmatprep.subr.mxu0 0.0
    %2193 = vmatpush2.msra.mxu0 0.0
    %2194 = vmatprep.subr.mxu0 0.0
    %2195 = vmatpush2.msra.mxu0 0.0
    %2196 = vmatprep.subr.mxu0 0.0
    %2197 = vmatpush2.msra.mxu0 0.0
    %2198 = vmatprep.subr.mxu0 0.0
    %2199 = vmatpush2.msra.mxu0 0.0
    %2200 = vmatprep.subr.mxu0 0.0
    %2201 = vmatpush2.msra.mxu0 0.0
    %2202 = vmatprep.subr.mxu0 0.0
    %2203 = vmatpush2.msra.mxu0 0.0
    %2204 = vmatprep.subr.mxu0 0.0
    %2205 = vmatpush2.msra.mxu0 0.0
    %2206 = vmatprep.mubr.f32.mxu0 0.0
    %2207 = vmatmul.mubr.f32.gmra.mxu0 %v2140
    %v2208 = vpop.f32.mrf.mxu0
    %v2209 = vadd.f32 0.0, %v2208
    %v2210 = vpop.f32.mrf.mxu0
    %2211 = vdwg.mxu0
    %v2213 = vsel %vm1337, %v1423, 0
    %2215 = vmatprep.subr.mxu0 0.0
    %2216 = vmatpush1.msra.mxu0 0.0
    %2217 = vmatprep.subr.mxu0 0.0
    %2218 = vmatpush1.msra.mxu0 0.0
    %2219 = vmatprep.subr.mxu0 0.0
    %2220 = vmatpush1.msra.mxu0 0.0
    %2221 = vmatprep.subr.mxu0 0.0
    %2222 = vmatpush1.msra.mxu0 0.0
    %2223 = vmatprep.subr.mxu0 0.0
    %2224 = vmatpush1.msra.mxu0 0.0
    %2225 = vmatprep.subr.mxu0 0.0
    %2226 = vmatpush1.msra.mxu0 0.0
    %2227 = vmatprep.subr.mxu0 0.0
    %2228 = vmatpush1.msra.mxu0 0.0
    %2229 = vmatprep.subr.mxu0 0.0
    %2230 = vmatpush1.msra.mxu0 0.0
    %2231 = vmatprep.subr.mxu0 0.0
    %2232 = vmatpush1.msra.mxu0 0.0
    %2233 = vmatprep.subr.mxu0 0.0
    %2234 = vmatpush1.msra.mxu0 0.0
    %2235 = vmatprep.subr.mxu0 0.0
    %2236 = vmatpush1.msra.mxu0 0.0
    %2237 = vmatprep.subr.mxu0 0.0
    %2238 = vmatpush1.msra.mxu0 0.0
    %2239 = vmatprep.subr.mxu0 0.0
    %2240 = vmatpush1.msra.mxu0 0.0
    %2241 = vmatprep.subr.mxu0 0.0
    %2242 = vmatpush1.msra.mxu0 0.0
    %2243 = vmatprep.subr.mxu0 0.0
    %2244 = vmatpush1.msra.mxu0 0.0
    %2245 = vmatprep.subr.mxu0 0.0
    %2246 = vmatpush1.msra.mxu0 %v98
    %2247 = vmatprep.subr.mxu0 0.0
    %2248 = vmatpush2.msra.mxu0 0.0
    %2249 = vmatprep.subr.mxu0 0.0
    %2250 = vmatpush2.msra.mxu0 0.0
    %2251 = vmatprep.subr.mxu0 0.0
    %2252 = vmatpush2.msra.mxu0 0.0
    %2253 = vmatprep.subr.mxu0 0.0
    %2254 = vmatpush2.msra.mxu0 0.0
    %2255 = vmatprep.subr.mxu0 0.0
    %2256 = vmatpush2.msra.mxu0 0.0
    %2257 = vmatprep.subr.mxu0 0.0
    %2258 = vmatpush2.msra.mxu0 0.0
    %2259 = vmatprep.subr.mxu0 0.0
    %2260 = vmatpush2.msra.mxu0 0.0
    %2261 = vmatprep.subr.mxu0 0.0
    %2262 = vmatpush2.msra.mxu0 0.0
    %2263 = vmatprep.subr.mxu0 0.0
    %2264 = vmatpush2.msra.mxu0 0.0
    %2265 = vmatprep.subr.mxu0 0.0
    %2266 = vmatpush2.msra.mxu0 0.0
    %2267 = vmatprep.subr.mxu0 0.0
    %2268 = vmatpush2.msra.mxu0 0.0
    %2269 = vmatprep.subr.mxu0 0.0
    %2270 = vmatpush2.msra.mxu0 0.0
    %2271 = vmatprep.subr.mxu0 0.0
    %2272 = vmatpush2.msra.mxu0 0.0
    %2273 = vmatprep.subr.mxu0 0.0
    %2274 = vmatpush2.msra.mxu0 0.0
    %2275 = vmatprep.subr.mxu0 0.0
    %2276 = vmatpush2.msra.mxu0 0.0
    %2277 = vmatprep.subr.mxu0 0.0
    %2278 = vmatpush2.msra.mxu0 0.0
    %2279 = vmatprep.mubr.f32.mxu0 0.0
    %2280 = vmatmul.mubr.f32.gmra.mxu0 %v2213
    %v2281 = vpop.f32.mrf.mxu0
    %v2282 = vadd.f32 0.0, %v2281
    %v2283 = vpop.f32.mrf.mxu0
    %2284 = vdwg.mxu0
    %v2286 = vsel %vm1337, %v1425, 0
    %2288 = vmatprep.subr.mxu0 0.0
    %2289 = vmatpush1.msra.mxu0 0.0
    %2290 = vmatprep.subr.mxu0 0.0
    %2291 = vmatpush1.msra.mxu0 0.0
    %2292 = vmatprep.subr.mxu0 0.0
    %2293 = vmatpush1.msra.mxu0 0.0
    %2294 = vmatprep.subr.mxu0 0.0
    %2295 = vmatpush1.msra.mxu0 0.0
    %2296 = vmatprep.subr.mxu0 0.0
    %2297 = vmatpush1.msra.mxu0 0.0
    %2298 = vmatprep.subr.mxu0 0.0
    %2299 = vmatpush1.msra.mxu0 0.0
    %2300 = vmatprep.subr.mxu0 0.0
    %2301 = vmatpush1.msra.mxu0 0.0
    %2302 = vmatprep.subr.mxu0 0.0
    %2303 = vmatpush1.msra.mxu0 0.0
    %2304 = vmatprep.subr.mxu0 0.0
    %2305 = vmatpush1.msra.mxu0 0.0
    %2306 = vmatprep.subr.mxu0 0.0
    %2307 = vmatpush1.msra.mxu0 0.0
    %2308 = vmatprep.subr.mxu0 0.0
    %2309 = vmatpush1.msra.mxu0 0.0
    %2310 = vmatprep.subr.mxu0 0.0
    %2311 = vmatpush1.msra.mxu0 0.0
    %2312 = vmatprep.subr.mxu0 0.0
    %2313 = vmatpush1.msra.mxu0 0.0
    %2314 = vmatprep.subr.mxu0 0.0
    %2315 = vmatpush1.msra.mxu0 0.0
    %2316 = vmatprep.subr.mxu0 0.0
    %2317 = vmatpush1.msra.mxu0 0.0
    %2318 = vmatprep.subr.mxu0 0.0
    %2319 = vmatpush1.msra.mxu0 %v99
    %2320 = vmatprep.subr.mxu0 0.0
    %2321 = vmatpush2.msra.mxu0 0.0
    %2322 = vmatprep.subr.mxu0 0.0
    %2323 = vmatpush2.msra.mxu0 0.0
    %2324 = vmatprep.subr.mxu0 0.0
    %2325 = vmatpush2.msra.mxu0 0.0
    %2326 = vmatprep.subr.mxu0 0.0
    %2327 = vmatpush2.msra.mxu0 0.0
    %2328 = vmatprep.subr.mxu0 0.0
    %2329 = vmatpush2.msra.mxu0 0.0
    %2330 = vmatprep.subr.mxu0 0.0
    %2331 = vmatpush2.msra.mxu0 0.0
    %2332 = vmatprep.subr.mxu0 0.0
    %2333 = vmatpush2.msra.mxu0 0.0
    %2334 = vmatprep.subr.mxu0 0.0
    %2335 = vmatpush2.msra.mxu0 0.0
    %2336 = vmatprep.subr.mxu0 0.0
    %2337 = vmatpush2.msra.mxu0 0.0
    %2338 = vmatprep.subr.mxu0 0.0
    %2339 = vmatpush2.msra.mxu0 0.0
    %2340 = vmatprep.subr.mxu0 0.0
    %2341 = vmatpush2.msra.mxu0 0.0
    %2342 = vmatprep.subr.mxu0 0.0
    %2343 = vmatpush2.msra.mxu0 0.0
    %2344 = vmatprep.subr.mxu0 0.0
    %2345 = vmatpush2.msra.mxu0 0.0
    %2346 = vmatprep.subr.mxu0 0.0
    %2347 = vmatpush2.msra.mxu0 0.0
    %2348 = vmatprep.subr.mxu0 0.0
    %2349 = vmatpush2.msra.mxu0 0.0
    %2350 = vmatprep.subr.mxu0 0.0
    %2351 = vmatpush2.msra.mxu0 0.0
    %2352 = vmatprep.mubr.f32.mxu0 0.0
    %2353 = vmatmul.mubr.f32.gmra.mxu0 %v2286
    %v2354 = vpop.f32.mrf.mxu0
    %v2355 = vadd.f32 0.0, %v2354
    %v2356 = vpop.f32.mrf.mxu0
    %2357 = vdwg.mxu0
    %v2359 = vsel %vm1337, %v1427, 0
    %2361 = vmatprep.subr.mxu0 0.0
    %2362 = vmatpush1.msra.mxu0 0.0
    %2363 = vmatprep.subr.mxu0 0.0
    %2364 = vmatpush1.msra.mxu0 0.0
    %2365 = vmatprep.subr.mxu0 0.0
    %2366 = vmatpush1.msra.mxu0 0.0
    %2367 = vmatprep.subr.mxu0 0.0
    %2368 = vmatpush1.msra.mxu0 0.0
    %2369 = vmatprep.subr.mxu0 0.0
    %2370 = vmatpush1.msra.mxu0 0.0
    %2371 = vmatprep.subr.mxu0 0.0
    %2372 = vmatpush1.msra.mxu0 0.0
    %2373 = vmatprep.subr.mxu0 0.0
    %2374 = vmatpush1.msra.mxu0 0.0
    %2375 = vmatprep.subr.mxu0 0.0
    %2376 = vmatpush1.msra.mxu0 0.0
    %2377 = vmatprep.subr.mxu0 0.0
    %2378 = vmatpush1.msra.mxu0 0.0
    %2379 = vmatprep.subr.mxu0 0.0
    %2380 = vmatpush1.msra.mxu0 0.0
    %2381 = vmatprep.subr.mxu0 0.0
    %2382 = vmatpush1.msra.mxu0 0.0
    %2383 = vmatprep.subr.mxu0 0.0
    %2384 = vmatpush1.msra.mxu0 0.0
    %2385 = vmatprep.subr.mxu0 0.0
    %2386 = vmatpush1.msra.mxu0 0.0
    %2387 = vmatprep.subr.mxu0 0.0
    %2388 = vmatpush1.msra.mxu0 0.0
    %2389 = vmatprep.subr.mxu0 0.0
    %2390 = vmatpush1.msra.mxu0 0.0
    %2391 = vmatprep.subr.mxu0 0.0
    %2392 = vmatpush1.msra.mxu0 %v100
    %2393 = vmatprep.subr.mxu0 0.0
    %2394 = vmatpush2.msra.mxu0 0.0
    %2395 = vmatprep.subr.mxu0 0.0
    %2396 = vmatpush2.msra.mxu0 0.0
    %2397 = vmatprep.subr.mxu0 0.0
    %2398 = vmatpush2.msra.mxu0 0.0
    %2399 = vmatprep.subr.mxu0 0.0
    %2400 = vmatpush2.msra.mxu0 0.0
    %2401 = vmatprep.subr.mxu0 0.0
    %2402 = vmatpush2.msra.mxu0 0.0
    %2403 = vmatprep.subr.mxu0 0.0
    %2404 = vmatpush2.msra.mxu0 0.0
    %2405 = vmatprep.subr.mxu0 0.0
    %2406 = vmatpush2.msra.mxu0 0.0
    %2407 = vmatprep.subr.mxu0 0.0
    %2408 = vmatpush2.msra.mxu0 0.0
    %2409 = vmatprep.subr.mxu0 0.0
    %2410 = vmatpush2.msra.mxu0 0.0
    %2411 = vmatprep.subr.mxu0 0.0
    %2412 = vmatpush2.msra.mxu0 0.0
    %2413 = vmatprep.subr.mxu0 0.0
    %2414 = vmatpush2.msra.mxu0 0.0
    %2415 = vmatprep.subr.mxu0 0.0
    %2416 = vmatpush2.msra.mxu0 0.0
    %2417 = vmatprep.subr.mxu0 0.0
    %2418 = vmatpush2.msra.mxu0 0.0
    %2419 = vmatprep.subr.mxu0 0.0
    %2420 = vmatpush2.msra.mxu0 0.0
    %2421 = vmatprep.subr.mxu0 0.0
    %2422 = vmatpush2.msra.mxu0 0.0
    %2423 = vmatprep.subr.mxu0 0.0
    %2424 = vmatpush2.msra.mxu0 0.0
    %2425 = vmatprep.mubr.f32.mxu0 0.0
    %2426 = vmatmul.mubr.f32.gmra.mxu0 %v2359
    %v2427 = vpop.f32.mrf.mxu0
    %v2428 = vadd.f32 0.0, %v2427
    %v2429 = vpop.f32.mrf.mxu0
    %2430 = vdwg.mxu0
    %v2432 = vsel %vm1337, %v1429, 0
    %2434 = vmatprep.subr.mxu0 0.0
    %2435 = vmatpush1.msra.mxu0 0.0
    %2436 = vmatprep.subr.mxu0 0.0
    %2437 = vmatpush1.msra.mxu0 0.0
    %2438 = vmatprep.subr.mxu0 0.0
    %2439 = vmatpush1.msra.mxu0 0.0
    %2440 = vmatprep.subr.mxu0 0.0
    %2441 = vmatpush1.msra.mxu0 0.0
    %2442 = vmatprep.subr.mxu0 0.0
    %2443 = vmatpush1.msra.mxu0 0.0
    %2444 = vmatprep.subr.mxu0 0.0
    %2445 = vmatpush1.msra.mxu0 0.0
    %2446 = vmatprep.subr.mxu0 0.0
    %2447 = vmatpush1.msra.mxu0 0.0
    %2448 = vmatprep.subr.mxu0 0.0
    %2449 = vmatpush1.msra.mxu0 0.0
    %2450 = vmatprep.subr.mxu0 0.0
    %2451 = vmatpush1.msra.mxu0 0.0
    %2452 = vmatprep.subr.mxu0 0.0
    %2453 = vmatpush1.msra.mxu0 0.0
    %2454 = vmatprep.subr.mxu0 0.0
    %2455 = vmatpush1.msra.mxu0 0.0
    %2456 = vmatprep.subr.mxu0 0.0
    %2457 = vmatpush1.msra.mxu0 0.0
    %2458 = vmatprep.subr.mxu0 0.0
    %2459 = vmatpush1.msra.mxu0 0.0
    %2460 = vmatprep.subr.mxu0 0.0
    %2461 = vmatpush1.msra.mxu0 0.0
    %2462 = vmatprep.subr.mxu0 0.0
    %2463 = vmatpush1.msra.mxu0 0.0
    %2464 = vmatprep.subr.mxu0 0.0
    %2465 = vmatpush1.msra.mxu0 %v101
    %2466 = vmatprep.subr.mxu0 0.0
    %2467 = vmatpush2.msra.mxu0 0.0
    %2468 = vmatprep.subr.mxu0 0.0
    %2469 = vmatpush2.msra.mxu0 0.0
    %2470 = vmatprep.subr.mxu0 0.0
    %2471 = vmatpush2.msra.mxu0 0.0
    %2472 = vmatprep.subr.mxu0 0.0
    %2473 = vmatpush2.msra.mxu0 0.0
    %2474 = vmatprep.subr.mxu0 0.0
    %2475 = vmatpush2.msra.mxu0 0.0
    %2476 = vmatprep.subr.mxu0 0.0
    %2477 = vmatpush2.msra.mxu0 0.0
    %2478 = vmatprep.subr.mxu0 0.0
    %2479 = vmatpush2.msra.mxu0 0.0
    %2480 = vmatprep.subr.mxu0 0.0
    %2481 = vmatpush2.msra.mxu0 0.0
    %2482 = vmatprep.subr.mxu0 0.0
    %2483 = vmatpush2.msra.mxu0 0.0
    %2484 = vmatprep.subr.mxu0 0.0
    %2485 = vmatpush2.msra.mxu0 0.0
    %2486 = vmatprep.subr.mxu0 0.0
    %2487 = vmatpush2.msra.mxu0 0.0
    %2488 = vmatprep.subr.mxu0 0.0
    %2489 = vmatpush2.msra.mxu0 0.0
    %2490 = vmatprep.subr.mxu0 0.0
    %2491 = vmatpush2.msra.mxu0 0.0
    %2492 = vmatprep.subr.mxu0 0.0
    %2493 = vmatpush2.msra.mxu0 0.0
    %2494 = vmatprep.subr.mxu0 0.0
    %2495 = vmatpush2.msra.mxu0 0.0
    %2496 = vmatprep.subr.mxu0 0.0
    %2497 = vmatpush2.msra.mxu0 0.0
    %2498 = vmatprep.mubr.f32.mxu0 0.0
    %2499 = vmatmul.mubr.f32.gmra.mxu0 %v2432
    %v2500 = vpop.f32.mrf.mxu0
    %v2501 = vadd.f32 0.0, %v2500
    %v2502 = vpop.f32.mrf.mxu0
    %2503 = vdwg.mxu0
    %v2505 = vsel %vm1337, %v1431, 0
    %2507 = vmatprep.subr.mxu0 0.0
    %2508 = vmatpush1.msra.mxu0 0.0
    %2509 = vmatprep.subr.mxu0 0.0
    %2510 = vmatpush1.msra.mxu0 0.0
    %2511 = vmatprep.subr.mxu0 0.0
    %2512 = vmatpush1.msra.mxu0 0.0
    %2513 = vmatprep.subr.mxu0 0.0
    %2514 = vmatpush1.msra.mxu0 0.0
    %2515 = vmatprep.subr.mxu0 0.0
    %2516 = vmatpush1.msra.mxu0 0.0
    %2517 = vmatprep.subr.mxu0 0.0
    %2518 = vmatpush1.msra.mxu0 0.0
    %2519 = vmatprep.subr.mxu0 0.0
    %2520 = vmatpush1.msra.mxu0 0.0
    %2521 = vmatprep.subr.mxu0 0.0
    %2522 = vmatpush1.msra.mxu0 0.0
    %2523 = vmatprep.subr.mxu0 0.0
    %2524 = vmatpush1.msra.mxu0 0.0
    %2525 = vmatprep.subr.mxu0 0.0
    %2526 = vmatpush1.msra.mxu0 0.0
    %2527 = vmatprep.subr.mxu0 0.0
    %2528 = vmatpush1.msra.mxu0 0.0
    %2529 = vmatprep.subr.mxu0 0.0
    %2530 = vmatpush1.msra.mxu0 0.0
    %2531 = vmatprep.subr.mxu0 0.0
    %2532 = vmatpush1.msra.mxu0 0.0
    %2533 = vmatprep.subr.mxu0 0.0
    %2534 = vmatpush1.msra.mxu0 0.0
    %2535 = vmatprep.subr.mxu0 0.0
    %2536 = vmatpush1.msra.mxu0 0.0
    %2537 = vmatprep.subr.mxu0 0.0
    %2538 = vmatpush1.msra.mxu0 %v102
    %2539 = vmatprep.subr.mxu0 0.0
    %2540 = vmatpush2.msra.mxu0 0.0
    %2541 = vmatprep.subr.mxu0 0.0
    %2542 = vmatpush2.msra.mxu0 0.0
    %2543 = vmatprep.subr.mxu0 0.0
    %2544 = vmatpush2.msra.mxu0 0.0
    %2545 = vmatprep.subr.mxu0 0.0
    %2546 = vmatpush2.msra.mxu0 0.0
    %2547 = vmatprep.subr.mxu0 0.0
    %2548 = vmatpush2.msra.mxu0 0.0
    %2549 = vmatprep.subr.mxu0 0.0
    %2550 = vmatpush2.msra.mxu0 0.0
    %2551 = vmatprep.subr.mxu0 0.0
    %2552 = vmatpush2.msra.mxu0 0.0
    %2553 = vmatprep.subr.mxu0 0.0
    %2554 = vmatpush2.msra.mxu0 0.0
    %2555 = vmatprep.subr.mxu0 0.0
    %2556 = vmatpush2.msra.mxu0 0.0
    %2557 = vmatprep.subr.mxu0 0.0
    %2558 = vmatpush2.msra.mxu0 0.0
    %2559 = vmatprep.subr.mxu0 0.0
    %2560 = vmatpush2.msra.mxu0 0.0
    %2561 = vmatprep.subr.mxu0 0.0
    %2562 = vmatpush2.msra.mxu0 0.0
    %2563 = vmatprep.subr.mxu0 0.0
    %2564 = vmatpush2.msra.mxu0 0.0
    %2565 = vmatprep.subr.mxu0 0.0
    %2566 = vmatpush2.msra.mxu0 0.0
    %2567 = vmatprep.subr.mxu0 0.0
    %2568 = vmatpush2.msra.mxu0 0.0
    %2569 = vmatprep.subr.mxu0 0.0
    %2570 = vmatpush2.msra.mxu0 0.0
    %2571 = vmatprep.mubr.f32.mxu0 0.0
    %2572 = vmatmul.mubr.f32.gmra.mxu0 %v2505
    %v2573 = vpop.f32.mrf.mxu0
    %v2574 = vadd.f32 0.0, %v2573
    %v2575 = vpop.f32.mrf.mxu0
    %2576 = vdwg.mxu0
    %v2578 = vsel %vm1337, %v1433, 0
    %2580 = vmatprep.subr.mxu0 0.0
    %2581 = vmatpush1.msra.mxu0 0.0
    %2582 = vmatprep.subr.mxu0 0.0
    %2583 = vmatpush1.msra.mxu0 0.0
    %2584 = vmatprep.subr.mxu0 0.0
    %2585 = vmatpush1.msra.mxu0 0.0
    %2586 = vmatprep.subr.mxu0 0.0
    %2587 = vmatpush1.msra.mxu0 0.0
    %2588 = vmatprep.subr.mxu0 0.0
    %2589 = vmatpush1.msra.mxu0 0.0
    %2590 = vmatprep.subr.mxu0 0.0
    %2591 = vmatpush1.msra.mxu0 0.0
    %2592 = vmatprep.subr.mxu0 0.0
    %2593 = vmatpush1.msra.mxu0 0.0
    %2594 = vmatprep.subr.mxu0 0.0
    %2595 = vmatpush1.msra.mxu0 0.0
    %2596 = vmatprep.subr.mxu0 0.0
    %2597 = vmatpush1.msra.mxu0 0.0
    %2598 = vmatprep.subr.mxu0 0.0
    %2599 = vmatpush1.msra.mxu0 0.0
    %2600 = vmatprep.subr.mxu0 0.0
    %2601 = vmatpush1.msra.mxu0 0.0
    %2602 = vmatprep.subr.mxu0 0.0
    %2603 = vmatpush1.msra.mxu0 0.0
    %2604 = vmatprep.subr.mxu0 0.0
    %2605 = vmatpush1.msra.mxu0 0.0
    %2606 = vmatprep.subr.mxu0 0.0
    %2607 = vmatpush1.msra.mxu0 0.0
    %2608 = vmatprep.subr.mxu0 0.0
    %2609 = vmatpush1.msra.mxu0 0.0
    %2610 = vmatprep.subr.mxu0 0.0
    %2611 = vmatpush1.msra.mxu0 %v103
    %2612 = vmatprep.subr.mxu0 0.0
    %2613 = vmatpush2.msra.mxu0 0.0
    %2614 = vmatprep.subr.mxu0 0.0
    %2615 = vmatpush2.msra.mxu0 0.0
    %2616 = vmatprep.subr.mxu0 0.0
    %2617 = vmatpush2.msra.mxu0 0.0
    %2618 = vmatprep.subr.mxu0 0.0
    %2619 = vmatpush2.msra.mxu0 0.0
    %2620 = vmatprep.subr.mxu0 0.0
    %2621 = vmatpush2.msra.mxu0 0.0
    %2622 = vmatprep.subr.mxu0 0.0
    %2623 = vmatpush2.msra.mxu0 0.0
    %2624 = vmatprep.subr.mxu0 0.0
    %2625 = vmatpush2.msra.mxu0 0.0
    %2626 = vmatprep.subr.mxu0 0.0
    %2627 = vmatpush2.msra.mxu0 0.0
    %2628 = vmatprep.subr.mxu0 0.0
    %2629 = vmatpush2.msra.mxu0 0.0
    %2630 = vmatprep.subr.mxu0 0.0
    %2631 = vmatpush2.msra.mxu0 0.0
    %2632 = vmatprep.subr.mxu0 0.0
    %2633 = vmatpush2.msra.mxu0 0.0
    %2634 = vmatprep.subr.mxu0 0.0
    %2635 = vmatpush2.msra.mxu0 0.0
    %2636 = vmatprep.subr.mxu0 0.0
    %2637 = vmatpush2.msra.mxu0 0.0
    %2638 = vmatprep.subr.mxu0 0.0
    %2639 = vmatpush2.msra.mxu0 0.0
    %2640 = vmatprep.subr.mxu0 0.0
    %2641 = vmatpush2.msra.mxu0 0.0
    %2642 = vmatprep.subr.mxu0 0.0
    %2643 = vmatpush2.msra.mxu0 0.0
    %2644 = vmatprep.mubr.f32.mxu0 0.0
    %2645 = vmatmul.mubr.f32.gmra.mxu0 %v2578
    %v2646 = vpop.f32.mrf.mxu0
    %v2647 = vadd.f32 0.0, %v2646
    %v2648 = vpop.f32.mrf.mxu0
    %2649 = vdwg.mxu0
    %v2650 = vrcp.pop %v1436
    %v2651 = vrcp.pop %v1439
    %v2652 = vrcp.pop %v1442
    %v2653 = vrcp.pop %v1445
    %v2654 = vrcp.pop %v1448
    %v2655 = vrcp.pop %v1451
    %v2656 = vrcp.pop %v1454
    %v2657 = vrcp.pop %v1457
    %v2658 = vrcp.pop %v1460
    %v2659 = vrcp.pop %v1463
    %v2660 = vrcp.pop %v1466
    %v2661 = vrcp.pop %v1469
    %v2662 = vrcp.pop %v1472
    %v2663 = vrcp.pop %v1475
    %v2664 = vrcp.pop %v1478
    %v2665 = vrcp.pop %v1481
    %v2666 = vmul.f32 %v1552, %v2650
    %v2667 = vmul.f32 %v1625, %v2651
    %v2668 = vmul.f32 %v1698, %v2652
    %v2669 = vmul.f32 %v1771, %v2653
    %v2670 = vmul.f32 %v1844, %v2654
    %v2671 = vmul.f32 %v1917, %v2655
    %v2672 = vmul.f32 %v1990, %v2656
    %v2673 = vmul.f32 %v2063, %v2657
    %v2674 = vmul.f32 %v2136, %v2658
    %v2675 = vmul.f32 %v2209, %v2659
    %v2676 = vmul.f32 %v2282, %v2660
    %v2677 = vmul.f32 %v2355, %v2661
    %v2678 = vmul.f32 %v2428, %v2662
    %v2679 = vmul.f32 %v2501, %v2663
    %v2680 = vmul.f32 %v2574, %v2664
    %v2681 = vmul.f32 %v2647, %v2665
    %2682 = vst.msk [vmem:[#allocation8] sm:$0xff] %vm104, %v2666
    %2683 = vst.msk [vmem:[#allocation8 + $0x8] sm:$0xff] %vm104, %v2667
    %2684 = vst.msk [vmem:[#allocation8 + $0x10] sm:$0xff] %vm104, %v2668
    %2685 = vst.msk [vmem:[#allocation8 + $0x18] sm:$0xff] %vm104, %v2669
    %2686 = vst.msk [vmem:[#allocation8 + $0x20] sm:$0xff] %vm104, %v2670
    %2687 = vst.msk [vmem:[#allocation8 + $0x28] sm:$0xff] %vm104, %v2671
    %2688 = vst.msk [vmem:[#allocation8 + $0x30] sm:$0xff] %vm104, %v2672
    %2689 = vst.msk [vmem:[#allocation8 + $0x38] sm:$0xff] %vm104, %v2673
    %2690 = vst.msk [vmem:[#allocation8 + $0x40] sm:$0xff] %vm104, %v2674
    %2691 = vst.msk [vmem:[#allocation8 + $0x48] sm:$0xff] %vm104, %v2675
    %2692 = vst.msk [vmem:[#allocation8 + $0x50] sm:$0xff] %vm104, %v2676
    %2693 = vst.msk [vmem:[#allocation8 + $0x58] sm:$0xff] %vm104, %v2677
    %2694 = vst.msk [vmem:[#allocation8 + $0x60] sm:$0xff] %vm104, %v2678
    %2695 = vst.msk [vmem:[#allocation8 + $0x68] sm:$0xff] %vm104, %v2679
    %2696 = vst.msk [vmem:[#allocation8 + $0x70] sm:$0xff] %vm104, %v2680
    %2697 = vst.msk [vmem:[#allocation8 + $0x78] sm:$0xff] %vm104, %v2681
    // Predicated region
    $region26: #{tpu_custom_call.1} parent=1 // pred_check
      _
    $region27: #{tpu_custom_call.1} parent=1 // pred_check_branch
      %2699 = sbr.rel (0) target = $region29
    $region28: #{tpu_custom_call.1} parent=1 // pred_region
      %s2701 = ssub.s32 2048, 2048
      %2702 = vsyncadd [#allocation4], %s2701
      %s2703 = sshll.u32 [#allocation8], 4
      %s2704 = int_to_ptr.vmem [resolvable:$true] %s2703
      %2709 = dma.vmem_to_hbm [thread:$0]  %s2704, 2048, %s3, [#allocation4], 128, 128, 8
    $region29: #{tpu_custom_call.1} parent=1 // pred_fallthru
      _
    // Predicated region
    $region30: #{tpu_custom_call.1} parent=1 // pred_check
      _
    $region31: #{tpu_custom_call.1} parent=1 // pred_check_branch
      %2711 = sbr.rel (0) target = $region33
    $region32: #{tpu_custom_call.1} parent=1 // pred_region
      %2712 = dma.done [#allocation4], 2048
    $region33: #{tpu_custom_call.1} parent=1 // pred_fallthru
      _
    %2713 = vsyncpa [#allocation3], 1
    %2714 = vsyncpa [#allocation6], 1
    %2715 = vsyncpa [#allocation4], 1

</llo_original>
